<compile_context>
chip_gen: v5e
topology: v5e:2x2
jax: 0.10.0
libtpu: 0.0.40
codegen_flags: <defaults>
</compile_context>

<pallas_src>
import functools
import math

import jax
import jax.numpy as jnp
import numpy as np
from jax.experimental import pallas as pl
from jax.experimental.pallas import tpu as pltpu


# ---------------------------------------------------------------------------
# Fused kernel
# ---------------------------------------------------------------------------
def _fused_kernel(alpha_ref,                                # SMEM (2, M)
                  x_ref, swt_ref, sb_ref,                   # inputs
                  wdt_ref, wut_ref, wct_ref, bc_ref,
                  f0_ref, out_ref, feat_ref, sub_ref,       # outputs
                  f0_acc,                                    # scratch
                  *, num_models, tile_f, n_tiles):
    j = pl.program_id(0)

    # --- alpha-weighted merge of this F-tile (bf16 stream -> f32 accumulate) ---
    wm = alpha_ref[0, 0] * swt_ref[0].astype(jnp.float32)        # (Din, tile_f)
    bm = alpha_ref[1, 0] * sb_ref[0]                             # (1,  tile_f)
    for i in range(1, num_models):                               # tiny static loop
        wm = wm + alpha_ref[0, i] * swt_ref[i].astype(jnp.float32)
        bm = bm + alpha_ref[1, i] * sb_ref[i]

    # --- encoder tile: feature0[:, tile] = x @ Wm_tile + bm_tile (MXU native) ---
    f0_tile = jnp.dot(x_ref[...], wm,
                      preferred_element_type=jnp.float32) + bm    # (B, tile_f)

    # Park the tile; dynamic index only on the leading (untiled) scratch axis.
    f0_acc[j] = f0_tile

    # --- last step: assemble feature0, run surgery MLP + residual + head ---
    @pl.when(j == n_tiles - 1)
    def _():
        for t in range(n_tiles):                                  # static slices
            f0_ref[:, t * tile_f:(t + 1) * tile_f] = f0_acc[t]
        f0 = f0_ref[...]                                          # (B, F)

        h = jnp.maximum(
            jnp.dot(f0, wdt_ref[...], preferred_element_type=jnp.float32), 0.0)
        sub = jnp.dot(h, wut_ref[...], preferred_element_type=jnp.float32)
        feat = f0 - sub
        out = jnp.dot(feat, wct_ref[...],
                      preferred_element_type=jnp.float32) + bc_ref[...]

        sub_ref[...] = sub
        feat_ref[...] = feat
        out_ref[...] = out


def fused_forward(alpha, x_flat, stacked_wt, stacked_b, wdt, wut, wct, bc_2d,
                  *, tile_f=256):
    """One pallas_call implementing merge + encoder + surgery + head.

    alpha      : (2, M)  f32          row 0 for W, row 1 for b   (SMEM)
    x_flat     : (B, Din) f32
    stacked_wt : (M, Din, F) bf16     per-model encoder weights, [in, out]
    stacked_b  : (M, 1, F)   f32      per-model encoder biases
    wdt        : (F, R) f32           down_proj^T
    wut        : (R, F) f32           up_proj^T
    wct        : (F, C) f32           classifier^T
    bc_2d      : (1, C) f32
    """
    B, Din = x_flat.shape
    M, _, F = stacked_wt.shape
    R = wdt.shape[1]
    C = wct.shape[1]
    assert F % tile_f == 0, "feature dim must be a multiple of tile_f"
    n_tiles = F // tile_f

    kernel = functools.partial(_fused_kernel, num_models=M, tile_f=tile_f,
                               n_tiles=n_tiles)

    return pl.pallas_call(
        kernel,
        out_shape=(
            jax.ShapeDtypeStruct((B, F), jnp.float32),   # feature0
            jax.ShapeDtypeStruct((B, C), jnp.float32),   # logits
            jax.ShapeDtypeStruct((B, F), jnp.float32),   # feature (post surgery)
            jax.ShapeDtypeStruct((B, F), jnp.float32),   # feature_sub
        ),
        grid_spec=pltpu.PrefetchScalarGridSpec(
            num_scalar_prefetch=0,
            grid=(n_tiles,),
            in_specs=[
                pl.BlockSpec(memory_space=pltpu.MemorySpace.SMEM),       # alpha
                pl.BlockSpec((B, Din), lambda j: (0, 0)),                # x_flat
                pl.BlockSpec((M, Din, tile_f), lambda j: (0, 0, j)),     # stacked W^T
                pl.BlockSpec((M, 1, tile_f), lambda j: (0, 0, j)),       # stacked b
                pl.BlockSpec((F, R), lambda j: (0, 0)),                  # down_proj^T
                pl.BlockSpec((R, F), lambda j: (0, 0)),                  # up_proj^T
                pl.BlockSpec((F, C), lambda j: (0, 0)),                  # head W^T
                pl.BlockSpec((1, C), lambda j: (0, 0)),                  # head bias
            ],
            out_specs=(
                pl.BlockSpec((B, F), lambda j: (0, 0)),   # feature0 (resident)
                pl.BlockSpec((B, C), lambda j: (0, 0)),   # logits
                pl.BlockSpec((B, F), lambda j: (0, 0)),   # feature
                pl.BlockSpec((B, F), lambda j: (0, 0)),   # feature_sub
            ),
            scratch_shapes=[pltpu.VMEM((n_tiles, B, tile_f), jnp.float32)],
        ),
        compiler_params=pltpu.CompilerParams(
            # Output blocks are revisited across the F-tile axis (feature0 is
            # assembled across steps; surgery runs only at the last step).
            dimension_semantics=("arbitrary",),
        ),
    )(alpha, x_flat, stacked_wt, stacked_b, wdt, wut, wct, bc_2d)


# ---------------------------------------------------------------------------
# JAX-side AlphaWrapper equivalent (glue only; all compute in the fused kernel)
# ---------------------------------------------------------------------------
class AlphaWrapperPallas:
    def __init__(self, alpha, stacked_W, stacked_b, wd, wu, wc, bc, *, tile_f=256):
        # alpha: (num_params=2, num_models) — row 0 for W, row 1 for b
        self.alpha = alpha.astype(jnp.float32)
        # Big stacked encoder weights are streamed in bf16 (HBM-bandwidth-bound
        # path) and pre-transposed once host-side to [in, out] so every
        # in-kernel dot is MXU-native. All accumulation stays in f32.
        self.stacked_Wt = jnp.transpose(stacked_W, (0, 2, 1)).astype(jnp.bfloat16)
        self.stacked_b = stacked_b.astype(jnp.float32)            # (M, 1, F)
        self.wdt = wd.T.astype(jnp.float32)                       # (F, R)
        self.wut = wu.T.astype(jnp.float32)                       # (R, F)
        self.wct = wc.T.astype(jnp.float32)                       # (F, C)
        self.bc = bc.astype(jnp.float32)                          # (1, C)
        self.tile_f = tile_f

    def forward(self, inp_nchw):
        B = inp_nchw.shape[0]
        x_flat = inp_nchw.reshape(B, -1).astype(jnp.float32)
        feature0, out, feature, feature_sub = fused_forward(
            self.alpha, x_flat, self.stacked_Wt, self.stacked_b,
            self.wdt, self.wut, self.wct, self.bc, tile_f=self.tile_f)
        return out, feature, feature0, feature_sub


def reference_forward(inp_nchw, alpha, stacked_W, stacked_b, wd, wu, wc, bc):
    B = inp_nchw.shape[0]
    x = inp_nchw.reshape(B, -1).astype(jnp.float32)
    # Reference uses the same bf16-rounded encoder weights the kernel streams.
    Wq = stacked_W.astype(jnp.bfloat16).astype(jnp.float32)
    Wm = jnp.einsum("m,mij->ij", alpha[0], Wq)
    bm = jnp.einsum("m,mij->ij", alpha[1], stacked_b)
    f0 = x @ Wm.T + bm
    h = jax.nn.relu(f0 @ wd.T)
    sub = h @ wu.T
    feat = f0 - sub
    out = feat @ wc.T + bc
    return out, feat, f0, sub


if __name__ == "__main__":
    key = jax.random.PRNGKey(0)
    B, Cin, H, W = 8, 3, 16, 16          # NCHW input images
    Din = Cin * H * W                     # 768
    F = 512                               # encoder feature dim (as in the module)
    R = 16                                # surgery bottleneck rank
    NUM_CLASSES = 10
    NUM_TASKS = 2
    NUM_MODELS = 1 + NUM_TASKS            # pretrained + task vectors
    NUM_PARAMS = 2                        # (W, b) of the proxy encoder

    ks = jax.random.split(key, 8)

    # input images
    inp = jax.random.normal(ks[0], (B, Cin, H, W), jnp.float32)

    # paramslist: per-model encoder params, stacked along the model axis
    stacked_W = jax.random.normal(ks[1], (NUM_MODELS, F, Din), jnp.float32) * 0.04
    stacked_b = jax.random.normal(ks[2], (NUM_MODELS, 1, F), jnp.float32) * 0.01

    # ralpha (num_params, num_tasks), then alpha = cat(ones, ralpha) along dim 1
    ralpha = jax.random.uniform(ks[3], (NUM_PARAMS, NUM_TASKS), jnp.float32,
                                0.1, 0.5)
    alpha = jnp.concatenate(
        [jnp.ones((NUM_PARAMS, 1), jnp.float32), ralpha], axis=1
    )  # (NUM_PARAMS, NUM_MODELS)

    # down_proj: kaiming_uniform_(a=sqrt(5)) -> U(-1/sqrt(fan_in), 1/sqrt(fan_in))
    bound = 1.0 / math.sqrt(F)
    wd = jax.random.uniform(ks[4], (R, F), jnp.float32, -bound, bound)
    # up_proj: original __init__ zero-inits this; use small random values here so
    # the surgery path is actually exercised numerically.
    wu = jax.random.uniform(ks[5], (F, R), jnp.float32, -0.05, 0.05)

    # classification head  # TODO(synk): real head comes from a finetuned checkpoint
    wc = jax.random.normal(ks[6], (NUM_CLASSES, F), jnp.float32) * 0.02
    bc = jax.random.normal(ks[7], (1, NUM_CLASSES), jnp.float32) * 0.01

    model = AlphaWrapperPallas(alpha, stacked_W, stacked_b, wd, wu, wc, bc,
                               tile_f=256)
    out, feat, feat0, feat_sub = jax.block_until_ready(model.forward(inp))

    ref_out, ref_feat, ref_f0, ref_sub = reference_forward(
        inp, alpha, stacked_W, stacked_b, wd, wu, wc, bc)

    np.testing.assert_allclose(np.asarray(feat0), np.asarray(ref_f0),
                               rtol=2e-2, atol=2e-2)
    np.testing.assert_allclose(np.asarray(feat_sub), np.asarray(ref_sub),
                               rtol=2e-2, atol=2e-2)
    np.testing.assert_allclose(np.asarray(feat), np.asarray(ref_feat),
                               rtol=2e-2, atol=2e-2)
    np.testing.assert_allclose(np.asarray(out), np.asarray(ref_out),
                               rtol=2e-2, atol=2e-2)

    print("KERNEL_OK")
</pallas_src>

<mosaic_0001>
module attributes {stable_mosaic.version = 11 : i64} {
  func.func @_fused_kernel(%arg0: i32, %arg1: memref<2x3xf32, #tpu.memory_space<smem>>, %arg2: memref<8x768xf32, #tpu.memory_space<vmem>>, %arg3: memref<3x768x256xbf16, #tpu.memory_space<vmem>>, %arg4: memref<3x1x256xf32, #tpu.memory_space<vmem>>, %arg5: memref<512x16xf32, #tpu.memory_space<vmem>>, %arg6: memref<16x512xf32, #tpu.memory_space<vmem>>, %arg7: memref<512x10xf32, #tpu.memory_space<vmem>>, %arg8: memref<1x10xf32, #tpu.memory_space<vmem>>, %arg9: memref<8x512xf32, #tpu.memory_space<vmem>>, %arg10: memref<8x10xf32, #tpu.memory_space<vmem>>, %arg11: memref<8x512xf32, #tpu.memory_space<vmem>>, %arg12: memref<8x512xf32, #tpu.memory_space<vmem>>, %arg13: memref<2x8x256xf32, #tpu.memory_space<vmem>>) attributes {dimension_semantics = [#tpu.dimension_semantics<arbitrary>], iteration_bounds = array<i64: 2>, scalar_prefetch = 0 : i64, scratch_operands = 1 : i64, tpu.core_type = #tpu.core_type<tc>, window_params = [{transform_indices = @transform_0, window_bounds = array<i64: 2, 3>}, {pipeline_mode = #tpu.pipeline_mode<synchronous>, transform_indices = @transform_1, window_bounds = array<i64: 8, 768>}, {transform_indices = @transform_2, window_bounds = array<i64: 3, 768, 256>}, {transform_indices = @transform_3, window_bounds = array<i64: 3, 1, 256>}, {pipeline_mode = #tpu.pipeline_mode<synchronous>, transform_indices = @transform_4, window_bounds = array<i64: 512, 16>}, {pipeline_mode = #tpu.pipeline_mode<synchronous>, transform_indices = @transform_5, window_bounds = array<i64: 16, 512>}, {pipeline_mode = #tpu.pipeline_mode<synchronous>, transform_indices = @transform_6, window_bounds = array<i64: 512, 10>}, {pipeline_mode = #tpu.pipeline_mode<synchronous>, transform_indices = @transform_7, window_bounds = array<i64: 1, 10>}, {pipeline_mode = #tpu.pipeline_mode<synchronous>, transform_indices = @transform_8, window_bounds = array<i64: 8, 512>}, {pipeline_mode = #tpu.pipeline_mode<synchronous>, transform_indices = @transform_9, window_bounds = array<i64: 8, 10>}, {pipeline_mode = #tpu.pipeline_mode<synchronous>, transform_indices = @transform_10, window_bounds = array<i64: 8, 512>}, {pipeline_mode = #tpu.pipeline_mode<synchronous>, transform_indices = @transform_11, window_bounds = array<i64: 8, 512>}]} {
    %c0 = arith.constant 0 : index
    %c0_0 = arith.constant 0 : index
    %0 = memref.load %arg1[%c0, %c0_0] : memref<2x3xf32, #tpu.memory_space<smem>>
    %c0_1 = arith.constant 0 : index
    %c0_2 = arith.constant 0 : index
    %c0_3 = arith.constant 0 : index
    %1 = vector.load %arg3[%c0_1, %c0_2, %c0_3] : memref<3x768x256xbf16, #tpu.memory_space<vmem>>, vector<1x768x256xbf16>
    %2 = vector.shape_cast %1 : vector<1x768x256xbf16> to vector<768x256xbf16>
    %3 = arith.extf %2 : vector<768x256xbf16> to vector<768x256xf32>
    %4 = vector.broadcast %0 : f32 to vector<768x256xf32>
    %5 = arith.mulf %4, %3 : vector<768x256xf32>
    %c1 = arith.constant 1 : index
    %c0_4 = arith.constant 0 : index
    %6 = memref.load %arg1[%c1, %c0_4] : memref<2x3xf32, #tpu.memory_space<smem>>
    %c0_5 = arith.constant 0 : index
    %c0_6 = arith.constant 0 : index
    %c0_7 = arith.constant 0 : index
    %7 = vector.load %arg4[%c0_5, %c0_6, %c0_7] : memref<3x1x256xf32, #tpu.memory_space<vmem>>, vector<1x1x256xf32>
    %8 = vector.shape_cast %7 : vector<1x1x256xf32> to vector<1x256xf32>
    %9 = vector.broadcast %6 : f32 to vector<1x256xf32>
    %10 = arith.mulf %9, %8 : vector<1x256xf32>
    %c0_8 = arith.constant 0 : index
    %c1_9 = arith.constant 1 : index
    %11 = memref.load %arg1[%c0_8, %c1_9] : memref<2x3xf32, #tpu.memory_space<smem>>
    %c1_10 = arith.constant 1 : index
    %c0_11 = arith.constant 0 : index
    %c0_12 = arith.constant 0 : index
    %12 = vector.load %arg3[%c1_10, %c0_11, %c0_12] : memref<3x768x256xbf16, #tpu.memory_space<vmem>>, vector<1x768x256xbf16>
    %13 = vector.shape_cast %12 : vector<1x768x256xbf16> to vector<768x256xbf16>
    %14 = arith.extf %13 : vector<768x256xbf16> to vector<768x256xf32>
    %15 = vector.broadcast %11 : f32 to vector<768x256xf32>
    %16 = arith.mulf %15, %14 : vector<768x256xf32>
    %17 = arith.addf %5, %16 : vector<768x256xf32>
    %c1_13 = arith.constant 1 : index
    %c1_14 = arith.constant 1 : index
    %18 = memref.load %arg1[%c1_13, %c1_14] : memref<2x3xf32, #tpu.memory_space<smem>>
    %c1_15 = arith.constant 1 : index
    %c0_16 = arith.constant 0 : index
    %c0_17 = arith.constant 0 : index
    %19 = vector.load %arg4[%c1_15, %c0_16, %c0_17] : memref<3x1x256xf32, #tpu.memory_space<vmem>>, vector<1x1x256xf32>
    %20 = vector.shape_cast %19 : vector<1x1x256xf32> to vector<1x256xf32>
    %21 = vector.broadcast %18 : f32 to vector<1x256xf32>
    %22 = arith.mulf %21, %20 : vector<1x256xf32>
    %23 = arith.addf %10, %22 : vector<1x256xf32>
    %c0_18 = arith.constant 0 : index
    %c2 = arith.constant 2 : index
    %24 = memref.load %arg1[%c0_18, %c2] : memref<2x3xf32, #tpu.memory_space<smem>>
    %c2_19 = arith.constant 2 : index
    %c0_20 = arith.constant 0 : index
    %c0_21 = arith.constant 0 : index
    %25 = vector.load %arg3[%c2_19, %c0_20, %c0_21] : memref<3x768x256xbf16, #tpu.memory_space<vmem>>, vector<1x768x256xbf16>
    %26 = vector.shape_cast %25 : vector<1x768x256xbf16> to vector<768x256xbf16>
    %27 = arith.extf %26 : vector<768x256xbf16> to vector<768x256xf32>
    %28 = vector.broadcast %24 : f32 to vector<768x256xf32>
    %29 = arith.mulf %28, %27 : vector<768x256xf32>
    %30 = arith.addf %17, %29 : vector<768x256xf32>
    %c1_22 = arith.constant 1 : index
    %c2_23 = arith.constant 2 : index
    %31 = memref.load %arg1[%c1_22, %c2_23] : memref<2x3xf32, #tpu.memory_space<smem>>
    %c2_24 = arith.constant 2 : index
    %c0_25 = arith.constant 0 : index
    %c0_26 = arith.constant 0 : index
    %32 = vector.load %arg4[%c2_24, %c0_25, %c0_26] : memref<3x1x256xf32, #tpu.memory_space<vmem>>, vector<1x1x256xf32>
    %33 = vector.shape_cast %32 : vector<1x1x256xf32> to vector<1x256xf32>
    %34 = vector.broadcast %31 : f32 to vector<1x256xf32>
    %35 = arith.mulf %34, %33 : vector<1x256xf32>
    %36 = arith.addf %23, %35 : vector<1x256xf32>
    %c0_27 = arith.constant 0 : index
    %c0_28 = arith.constant 0 : index
    %37 = vector.load %arg2[%c0_27, %c0_28] : memref<8x768xf32, #tpu.memory_space<vmem>>, vector<8x768xf32>
    %cst = arith.constant dense<0.000000e+00> : vector<8x256xf32>
    %38 = tpu.matmul %37, %30, %cst {dimension_numbers = #tpu.dot_dimension_numbers<[1], [0], [0], [1], [0, 0, 1, 1], [], []>} : vector<8x768xf32>, vector<768x256xf32>, vector<8x256xf32> -> vector<8x256xf32>
    %39 = vector.broadcast %36 : vector<1x256xf32> to vector<8x256xf32>
    %40 = arith.addf %38, %39 : vector<8x256xf32>
    %41 = arith.index_cast %arg0 : i32 to index
    %c0_29 = arith.constant 0 : index
    %c0_30 = arith.constant 0 : index
    %42 = vector.load %arg13[%41, %c0_29, %c0_30] : memref<2x8x256xf32, #tpu.memory_space<vmem>>, vector<1x8x256xf32>
    %43 = vector.shape_cast %42 : vector<1x8x256xf32> to vector<8x256xf32>
    %44 = vector.shape_cast %40 : vector<8x256xf32> to vector<1x8x256xf32>
    tpu.vector_store %arg13[%41, %c0_29, %c0_30], %44 {strides = array<i32>} : memref<2x8x256xf32, #tpu.memory_space<vmem>>, vector<1x8x256xf32>,
    %c1_i32 = arith.constant 1 : i32
    %45 = arith.cmpi eq, %arg0, %c1_i32 : i32
    %46 = arith.extui %45 : i1 to i32
    %c0_i32 = arith.constant 0 : i32
    %47 = arith.cmpi ne, %46, %c0_i32 : i32
    scf.if %47 {
      %c0_31 = arith.constant 0 : index
      %c0_32 = arith.constant 0 : index
      %c0_33 = arith.constant 0 : index
      %48 = vector.load %arg13[%c0_31, %c0_32, %c0_33] : memref<2x8x256xf32, #tpu.memory_space<vmem>>, vector<1x8x256xf32>
      %49 = vector.shape_cast %48 : vector<1x8x256xf32> to vector<8x256xf32>
      %c0_34 = arith.constant 0 : index
      %c0_35 = arith.constant 0 : index
      %50 = vector.load %arg9[%c0_34, %c0_35] : memref<8x512xf32, #tpu.memory_space<vmem>>, vector<8x256xf32>
      tpu.vector_store %arg9[%c0_34, %c0_35], %49 {strides = array<i32>} : memref<8x512xf32, #tpu.memory_space<vmem>>, vector<8x256xf32>,
      %c1_36 = arith.constant 1 : index
      %c0_37 = arith.constant 0 : index
      %c0_38 = arith.constant 0 : index
      %51 = vector.load %arg13[%c1_36, %c0_37, %c0_38] : memref<2x8x256xf32, #tpu.memory_space<vmem>>, vector<1x8x256xf32>
      %52 = vector.shape_cast %51 : vector<1x8x256xf32> to vector<8x256xf32>
      %c0_39 = arith.constant 0 : index
      %c256 = arith.constant 256 : index
      %53 = vector.load %arg9[%c0_39, %c256] : memref<8x512xf32, #tpu.memory_space<vmem>>, vector<8x256xf32>
      tpu.vector_store %arg9[%c0_39, %c256], %52 {strides = array<i32>} : memref<8x512xf32, #tpu.memory_space<vmem>>, vector<8x256xf32>,
      %c0_40 = arith.constant 0 : index
      %c0_41 = arith.constant 0 : index
      %54 = vector.load %arg9[%c0_40, %c0_41] : memref<8x512xf32, #tpu.memory_space<vmem>>, vector<8x512xf32>
      %c0_42 = arith.constant 0 : index
      %c0_43 = arith.constant 0 : index
      %55 = vector.load %arg5[%c0_42, %c0_43] : memref<512x16xf32, #tpu.memory_space<vmem>>, vector<512x16xf32>
      %cst_44 = arith.constant dense<0.000000e+00> : vector<8x16xf32>
      %56 = tpu.matmul %54, %55, %cst_44 {dimension_numbers = #tpu.dot_dimension_numbers<[1], [0], [0], [1], [0, 0, 1, 1], [], []>} : vector<8x512xf32>, vector<512x16xf32>, vector<8x16xf32> -> vector<8x16xf32>
      %cst_45 = arith.constant 0.000000e+00 : f32
      %57 = vector.broadcast %cst_45 : f32 to vector<8x16xf32>
      %58 = arith.maximumf %56, %57 : vector<8x16xf32>
      %c0_46 = arith.constant 0 : index
      %c0_47 = arith.constant 0 : index
      %59 = vector.load %arg6[%c0_46, %c0_47] : memref<16x512xf32, #tpu.memory_space<vmem>>, vector<16x512xf32>
      %cst_48 = arith.constant dense<0.000000e+00> : vector<8x512xf32>
      %60 = tpu.matmul %58, %59, %cst_48 {dimension_numbers = #tpu.dot_dimension_numbers<[1], [0], [0], [1], [0, 0, 1, 1], [], []>} : vector<8x16xf32>, vector<16x512xf32>, vector<8x512xf32> -> vector<8x512xf32>
      %61 = arith.subf %54, %60 : vector<8x512xf32>
      %c0_49 = arith.constant 0 : index
      %c0_50 = arith.constant 0 : index
      %62 = vector.load %arg7[%c0_49, %c0_50] : memref<512x10xf32, #tpu.memory_space<vmem>>, vector<512x10xf32>
      %cst_51 = arith.constant dense<0.000000e+00> : vector<8x10xf32>
      %63 = tpu.matmul %61, %62, %cst_51 {dimension_numbers = #tpu.dot_dimension_numbers<[1], [0], [0], [1], [0, 0, 1, 1], [], []>} : vector<8x512xf32>, vector<512x10xf32>, vector<8x10xf32> -> vector<8x10xf32>
      %c0_52 = arith.constant 0 : index
      %c0_53 = arith.constant 0 : index
      %64 = vector.load %arg8[%c0_52, %c0_53] : memref<1x10xf32, #tpu.memory_space<vmem>>, vector<1x10xf32>
      %65 = vector.broadcast %64 : vector<1x10xf32> to vector<8x10xf32>
      %66 = arith.addf %63, %65 : vector<8x10xf32>
      %c0_54 = arith.constant 0 : index
      %c0_55 = arith.constant 0 : index
      %67 = vector.load %arg12[%c0_54, %c0_55] : memref<8x512xf32, #tpu.memory_space<vmem>>, vector<8x512xf32>
      tpu.vector_store %arg12[%c0_54, %c0_55], %60 {strides = array<i32>} : memref<8x512xf32, #tpu.memory_space<vmem>>, vector<8x512xf32>,
      %c0_56 = arith.constant 0 : index
      %c0_57 = arith.constant 0 : index
      %68 = vector.load %arg11[%c0_56, %c0_57] : memref<8x512xf32, #tpu.memory_space<vmem>>, vector<8x512xf32>
      tpu.vector_store %arg11[%c0_56, %c0_57], %61 {strides = array<i32>} : memref<8x512xf32, #tpu.memory_space<vmem>>, vector<8x512xf32>,
      %c0_58 = arith.constant 0 : index
      %c0_59 = arith.constant 0 : index
      %69 = vector.load %arg10[%c0_58, %c0_59] : memref<8x10xf32, #tpu.memory_space<vmem>>, vector<8x10xf32>
      tpu.vector_store %arg10[%c0_58, %c0_59], %66 {strides = array<i32>} : memref<8x10xf32, #tpu.memory_space<vmem>>, vector<8x10xf32>,
    } else {
    }
    return
  }
  func.func @transform_0(%arg0: i32) -> (i32, i32) {
    %c0_i32 = arith.constant 0 : i32
    %c0_i32_0 = arith.constant 0 : i32
    %c0_i32_1 = arith.constant 0 : i32
    return %c0_i32, %c0_i32_0 : i32, i32
  }
  func.func @transform_1(%arg0: i32) -> (i32, i32) {
    %c0_i32 = arith.constant 0 : i32
    %c0_i32_0 = arith.constant 0 : i32
    %c0_i32_1 = arith.constant 0 : i32
    return %c0_i32, %c0_i32_0 : i32, i32
  }
  func.func @transform_2(%arg0: i32) -> (i32, i32, i32) {
    %c0_i32 = arith.constant 0 : i32
    %c0_i32_0 = arith.constant 0 : i32
    %c0_i32_1 = arith.constant 0 : i32
    return %c0_i32, %c0_i32_0, %arg0 : i32, i32, i32
  }
  func.func @transform_3(%arg0: i32) -> (i32, i32, i32) {
    %c0_i32 = arith.constant 0 : i32
    %c0_i32_0 = arith.constant 0 : i32
    %c0_i32_1 = arith.constant 0 : i32
    return %c0_i32, %c0_i32_0, %arg0 : i32, i32, i32
  }
  func.func @transform_4(%arg0: i32) -> (i32, i32) {
    %c0_i32 = arith.constant 0 : i32
    %c0_i32_0 = arith.constant 0 : i32
    %c0_i32_1 = arith.constant 0 : i32
    return %c0_i32, %c0_i32_0 : i32, i32
  }
  func.func @transform_5(%arg0: i32) -> (i32, i32) {
    %c0_i32 = arith.constant 0 : i32
    %c0_i32_0 = arith.constant 0 : i32
    %c0_i32_1 = arith.constant 0 : i32
    return %c0_i32, %c0_i32_0 : i32, i32
  }
  func.func @transform_6(%arg0: i32) -> (i32, i32) {
    %c0_i32 = arith.constant 0 : i32
    %c0_i32_0 = arith.constant 0 : i32
    %c0_i32_1 = arith.constant 0 : i32
    return %c0_i32, %c0_i32_0 : i32, i32
  }
  func.func @transform_7(%arg0: i32) -> (i32, i32) {
    %c0_i32 = arith.constant 0 : i32
    %c0_i32_0 = arith.constant 0 : i32
    %c0_i32_1 = arith.constant 0 : i32
    return %c0_i32, %c0_i32_0 : i32, i32
  }
  func.func @transform_8(%arg0: i32) -> (i32, i32) {
    %c0_i32 = arith.constant 0 : i32
    %c0_i32_0 = arith.constant 0 : i32
    %c0_i32_1 = arith.constant 0 : i32
    return %c0_i32, %c0_i32_0 : i32, i32
  }
  func.func @transform_9(%arg0: i32) -> (i32, i32) {
    %c0_i32 = arith.constant 0 : i32
    %c0_i32_0 = arith.constant 0 : i32
    %c0_i32_1 = arith.constant 0 : i32
    return %c0_i32, %c0_i32_0 : i32, i32
  }
  func.func @transform_10(%arg0: i32) -> (i32, i32) {
    %c0_i32 = arith.constant 0 : i32
    %c0_i32_0 = arith.constant 0 : i32
    %c0_i32_1 = arith.constant 0 : i32
    return %c0_i32, %c0_i32_0 : i32, i32
  }
  func.func @transform_11(%arg0: i32) -> (i32, i32) {
    %c0_i32 = arith.constant 0 : i32
    %c0_i32_0 = arith.constant 0 : i32
    %c0_i32_1 = arith.constant 0 : i32
    return %c0_i32, %c0_i32_0 : i32, i32
  }
}

</mosaic_0001>

<llo_original>
// kernel: tpu_custom_call.1
$region0: #{tpu_custom_call.1}
  #allocation0 [shape = 'u32[]', space=smem, size = 0x4, offset = 0x4, fixed_abs, tag = 'smem constant byte address 0x4 - core index']
  #allocation1 [shape = 'u32[72,128]{1,0:T(1,128)}', space=vmem, size = 0x9000, scoped, tag = 'internal scratch']
  #allocation2 [shape = 'f32[2,8,256]{2,1,0:T(8,128)}', space=vmem, size = 0x4000, scoped, tag = 'scratch operand']
  %s0 = inlined_call_operand.hbm [shape: f32[2,3], index: 0, kind: input, shape index: {}]
  %s1 = inlined_call_operand.hbm [shape: f32[8,768], index: 1, kind: input, shape index: {}]
  %s2 = inlined_call_operand.hbm [shape: bf16[3,768,512], index: 2, kind: input, shape index: {}]
  %s3 = inlined_call_operand.hbm [shape: f32[3,1,512], index: 3, kind: input, shape index: {}]
  %s4 = inlined_call_operand.vmem [shape: f32[512,16], index: 4, kind: input, shape index: {}]
  %s5 = inlined_call_operand.hbm [shape: f32[16,512], index: 5, kind: input, shape index: {}]
  %s6 = inlined_call_operand.vmem [shape: f32[512,10], index: 6, kind: input, shape index: {}]
  %s7 = inlined_call_operand.hbm [shape: f32[1,10], index: 7, kind: input, shape index: {}]
  %s8 = inlined_call_operand.hbm [shape: f32[8,512], index: 8, kind: output, shape index: {0}]
  %s9 = inlined_call_operand.hbm [shape: f32[8,10], index: 9, kind: output, shape index: {1}]
  %s10 = inlined_call_operand.hbm [shape: f32[8,512], index: 10, kind: output, shape index: {2}]
  %s11 = inlined_call_operand.hbm [shape: f32[8,512], index: 11, kind: output, shape index: {3}]
  %12 = xla_tuple %s8, %s9, %s10, %s11
  %s13 = sld [smem:[#allocation0]]
  $region117: #{tpu_custom_call.1} parent=0
    _
  %s15 = ssub.s32 1, %s13
  %s16 = scalar_select 0, %s15, %s13
  $region1: #{tpu_custom_call.1} parent=0
    #allocation3 [shape = 'u8[1024]{0}', space=smem, size = 0x400, scoped, tag = 'input window, operand 0, single buffered']
    #allocation4 [shape = 's32[2]{0}', space=sflag, size = 0x8, scoped, tag = 'scoped memory for tpu_custom_call.1']
    #allocation5 [shape = 's32[2]{0}', space=sflag, size = 0x8, scoped, tag = 'scoped memory for tpu_custom_call.1']
    #allocation6 [shape = 's32[2]{0}', space=sflag, size = 0x8, scoped, tag = 'scoped memory for tpu_custom_call.1']
    #allocation7 [shape = 'u8[24576]{0}', space=vmem, size = 0x6000, scoped, tag = 'input window, operand 1, single buffered']
    #allocation8 [shape = 'u8[2359296]{0}', space=vmem, size = 0x240000, scoped, tag = 'input window, operand 2']
    #allocation9 [shape = 's32[2]{0}', space=sflag, size = 0x8, scoped, tag = 'scoped memory for tpu_custom_call.1']
    #allocation10 [shape = 'u8[6144]{0}', space=vmem, size = 0x1800, scoped, tag = 'input window, operand 3']
    #allocation11 [shape = 'u8[32768]{0}', space=vmem, size = 0x8000, scoped, tag = 'input window, operand 5, single buffered']
    #allocation12 [shape = 's32[1]{0}', space=sflag, size = 0x4, scoped, tag = 'scoped memory for tpu_custom_call.1']
    #allocation13 [shape = 'u8[512]{0}', space=vmem, size = 0x400, scoped, tag = 'input window, operand 7, single buffered']
    #allocation14 [shape = 'u8[16384]{0}', space=vmem, size = 0x4000, scoped, tag = 'output window, operand 0, single buffered']
    #allocation15 [shape = 'u8[4096]{0}', space=vmem, size = 0x1000, scoped, tag = 'output window, operand 1, single buffered']
    #allocation16 [shape = 's32[1]{0}', space=sflag, size = 0x4, scoped, tag = 'scoped memory for tpu_custom_call.1']
    #allocation17 [shape = 'u8[16384]{0}', space=vmem, size = 0x4000, scoped, tag = 'output window, operand 2, single buffered']
    #allocation18 [shape = 'u8[16384]{0}', space=vmem, size = 0x4000, scoped, tag = 'output window, operand 3, single buffered']
    #allocation19 [shape = 's32[1]{0}', space=sflag, size = 0x4, scoped, tag = 'scoped memory for tpu_custom_call.1']
    %17 = vsyncpa [#allocation6], 0
    %18 = vsyncpa [#allocation4], 0
    %19 = vsyncpa [#allocation9], 0
    %s20 = scalar_lea.sflag [#allocation9], 1
    %21 = vsyncpa %s20, 0
    %22 = vsyncpa [#allocation12], 0
    %23 = vsyncpa [#allocation5], 0
    %24 = vsyncpa [#allocation16], 0
    %25 = vsyncpa [#allocation19], 0
    loop: start=0, step=1, limit=4
    $region2: #{tpu_custom_call.1} parent=1 // loop_pre_header
      _
    $region3: #{tpu_custom_call.1} parent=1 // loop_header
      %s27 = sphi 0, %s31
      %p28 = scmp.ge.s32.totalorder %s27, 4
      %s35 = sphi 0, %s35
      %s37 = sphi 0, %s35
      %s38 = sphi 0, %s37
      %s52 = sphi 0, %s38
      %s56 = sphi 0, %s56
      %s58 = sphi 0, %s56
      %s59 = sphi 0, %s58
      %s73 = sphi 0, %s59
      %s79 = sphi 0, %s81
      %s82 = sphi 0, %s79
      %s83 = sphi 0, %s82
      %s99 = sphi 0, %s83
      %s105 = sphi 0, %s107
      %s108 = sphi 0, %s105
      %s109 = sphi 0, %s108
      %s125 = sphi 0, %s109
      %s129 = sphi 0, %s129
      %s131 = sphi 0, %s129
      %s132 = sphi 0, %s131
      %s146 = sphi 0, %s132
      %s150 = sphi 0, %s150
      %s152 = sphi 0, %s150
      %s153 = sphi 0, %s152
      %s167 = sphi 0, %s153
      %s171 = sphi 0, %s171
      %s173 = sphi 0, %s171
      %s174 = sphi 0, %s173
      %s188 = sphi 0, %s174
      %s192 = sphi 0, %s192
      %s194 = sphi 0, %s192
      %s195 = sphi 0, %s194
      %s209 = sphi 0, %s195
      %s213 = sphi 0, %s213
      %s215 = sphi 0, %s213
      %s216 = sphi 0, %s215
      %s230 = sphi 0, %s216
      %s234 = sphi 0, %s234
      %s236 = sphi 0, %s234
      %s237 = sphi 0, %s236
      %s251 = sphi 0, %s237
      %s255 = sphi 0, %s255
      %s257 = sphi 0, %s255
      %s258 = sphi 0, %s257
      %s272 = sphi 0, %s258
      %s276 = sphi 0, %s276
      %s278 = sphi 0, %s276
      %s279 = sphi 0, %s278
      %s293 = sphi 0, %s279
    $region4: #{tpu_custom_call.1} parent=1 // loop_header_branch
      %30 = sbr.rel (%p28) target = $region8
    $region5: #{tpu_custom_call.1} parent=1 // loop_body
      %s32 = ssub.s32 %s27, 1
      %s33 = ssub.s32 %s27, 2
      %s34 = sadd.s32 %s27, 1
      %s36 = sadd.s32 %s35, 1
      %p39 = scmp.eq.s32.totalorder %s27, 1
      %p40 = scmp.ne.s32.totalorder %s35, %s37
      %p41 = scmp.eq.s32.totalorder %s27, 0
      %p42 = por %p40, %p41
      %p43 = scmp.ne.s32.totalorder %s35, %s37
      %p44 = scmp.eq.s32.totalorder %s32, 1
      %p45 = por %p43, %p44
      %p46 = scmp.ne.s32.totalorder %s37, %s38
      %p47 = scmp.eq.s32.totalorder %s32, 0
      %p48 = por %p46, %p47
      %p49 = scmp.ne.s32.totalorder %s37, %s38
      %p50 = scmp.eq.s32.totalorder %s33, 1
      %p51 = por %p49, %p50
      %p53 = scmp.ne.s32.totalorder %s38, %s52
      %p54 = scmp.eq.s32.totalorder %s33, 0
      %p55 = por %p53, %p54
      %s57 = sadd.s32 %s56, 1
      %p60 = scmp.eq.s32.totalorder %s27, 1
      %p61 = scmp.ne.s32.totalorder %s56, %s58
      %p62 = scmp.eq.s32.totalorder %s27, 0
      %p63 = por %p61, %p62
      %p64 = scmp.ne.s32.totalorder %s56, %s58
      %p65 = scmp.eq.s32.totalorder %s32, 1
      %p66 = por %p64, %p65
      %p67 = scmp.ne.s32.totalorder %s58, %s59
      %p68 = scmp.eq.s32.totalorder %s32, 0
      %p69 = por %p67, %p68
      %p70 = scmp.ne.s32.totalorder %s58, %s59
      %p71 = scmp.eq.s32.totalorder %s33, 1
      %p72 = por %p70, %p71
      %p74 = scmp.ne.s32.totalorder %s59, %s73
      %p75 = scmp.eq.s32.totalorder %s33, 0
      %p76 = por %p74, %p75
      %s77 = ssub.s32 %s27, %s34
      %p78 = scmp.eq.s32.totalorder %s77, 0
      %s80 = sadd.s32 %s79, 1
      %s81 = scalar_select %p78, %s79, %s80
      %p84 = pneg %p78
      %p85 = scmp.eq.s32.totalorder %s27, 1
      %p86 = por %p84, %p85
      %p87 = scmp.ne.s32.totalorder %s79, %s82
      %p88 = scmp.eq.s32.totalorder %s27, 0
      %p89 = por %p87, %p88
      %p90 = scmp.ne.s32.totalorder %s79, %s82
      %p91 = scmp.eq.s32.totalorder %s32, 1
      %p92 = por %p90, %p91
      %p93 = scmp.ne.s32.totalorder %s82, %s83
      %p94 = scmp.eq.s32.totalorder %s32, 0
      %p95 = por %p93, %p94
      %p96 = scmp.ne.s32.totalorder %s82, %s83
      %p97 = scmp.eq.s32.totalorder %s33, 1
      %p98 = por %p96, %p97
      %p100 = scmp.ne.s32.totalorder %s83, %s99
      %p101 = scmp.eq.s32.totalorder %s33, 0
      %p102 = por %p100, %p101
      %s103 = ssub.s32 %s27, %s34
      %p104 = scmp.eq.s32.totalorder %s103, 0
      %s106 = sadd.s32 %s105, 1
      %s107 = scalar_select %p104, %s105, %s106
      %p110 = pneg %p104
      %p111 = scmp.eq.s32.totalorder %s27, 1
      %p112 = por %p110, %p111
      %p113 = scmp.ne.s32.totalorder %s105, %s108
      %p114 = scmp.eq.s32.totalorder %s27, 0
      %p115 = por %p113, %p114
      %p116 = scmp.ne.s32.totalorder %s105, %s108
      %p117 = scmp.eq.s32.totalorder %s32, 1
      %p118 = por %p116, %p117
      %p119 = scmp.ne.s32.totalorder %s108, %s109
      %p120 = scmp.eq.s32.totalorder %s32, 0
      %p121 = por %p119, %p120
      %p122 = scmp.ne.s32.totalorder %s108, %s109
      %p123 = scmp.eq.s32.totalorder %s33, 1
      %p124 = por %p122, %p123
      %p126 = scmp.ne.s32.totalorder %s109, %s125
      %p127 = scmp.eq.s32.totalorder %s33, 0
      %p128 = por %p126, %p127
      %s130 = sadd.s32 %s129, 1
      %p133 = scmp.eq.s32.totalorder %s27, 1
      %p134 = scmp.ne.s32.totalorder %s129, %s131
      %p135 = scmp.eq.s32.totalorder %s27, 0
      %p136 = por %p134, %p135
      %p137 = scmp.ne.s32.totalorder %s129, %s131
      %p138 = scmp.eq.s32.totalorder %s32, 1
      %p139 = por %p137, %p138
      %p140 = scmp.ne.s32.totalorder %s131, %s132
      %p141 = scmp.eq.s32.totalorder %s32, 0
      %p142 = por %p140, %p141
      %p143 = scmp.ne.s32.totalorder %s131, %s132
      %p144 = scmp.eq.s32.totalorder %s33, 1
      %p145 = por %p143, %p144
      %p147 = scmp.ne.s32.totalorder %s132, %s146
      %p148 = scmp.eq.s32.totalorder %s33, 0
      %p149 = por %p147, %p148
      %s151 = sadd.s32 %s150, 1
      %p154 = scmp.eq.s32.totalorder %s27, 1
      %p155 = scmp.ne.s32.totalorder %s150, %s152
      %p156 = scmp.eq.s32.totalorder %s27, 0
      %p157 = por %p155, %p156
      %p158 = scmp.ne.s32.totalorder %s150, %s152
      %p159 = scmp.eq.s32.totalorder %s32, 1
      %p160 = por %p158, %p159
      %p161 = scmp.ne.s32.totalorder %s152, %s153
      %p162 = scmp.eq.s32.totalorder %s32, 0
      %p163 = por %p161, %p162
      %p164 = scmp.ne.s32.totalorder %s152, %s153
      %p165 = scmp.eq.s32.totalorder %s33, 1
      %p166 = por %p164, %p165
      %p168 = scmp.ne.s32.totalorder %s153, %s167
      %p169 = scmp.eq.s32.totalorder %s33, 0
      %p170 = por %p168, %p169
      %s172 = sadd.s32 %s171, 1
      %p175 = scmp.eq.s32.totalorder %s27, 1
      %p176 = scmp.ne.s32.totalorder %s171, %s173
      %p177 = scmp.eq.s32.totalorder %s27, 0
      %p178 = por %p176, %p177
      %p179 = scmp.ne.s32.totalorder %s171, %s173
      %p180 = scmp.eq.s32.totalorder %s32, 1
      %p181 = por %p179, %p180
      %p182 = scmp.ne.s32.totalorder %s173, %s174
      %p183 = scmp.eq.s32.totalorder %s32, 0
      %p184 = por %p182, %p183
      %p185 = scmp.ne.s32.totalorder %s173, %s174
      %p186 = scmp.eq.s32.totalorder %s33, 1
      %p187 = por %p185, %p186
      %p189 = scmp.ne.s32.totalorder %s174, %s188
      %p190 = scmp.eq.s32.totalorder %s33, 0
      %p191 = por %p189, %p190
      %s193 = sadd.s32 %s192, 1
      %p196 = scmp.eq.s32.totalorder %s27, 1
      %p197 = scmp.ne.s32.totalorder %s192, %s194
      %p198 = scmp.eq.s32.totalorder %s27, 0
      %p199 = por %p197, %p198
      %p200 = scmp.ne.s32.totalorder %s192, %s194
      %p201 = scmp.eq.s32.totalorder %s32, 1
      %p202 = por %p200, %p201
      %p203 = scmp.ne.s32.totalorder %s194, %s195
      %p204 = scmp.eq.s32.totalorder %s32, 0
      %p205 = por %p203, %p204
      %p206 = scmp.ne.s32.totalorder %s194, %s195
      %p207 = scmp.eq.s32.totalorder %s33, 1
      %p208 = por %p206, %p207
      %p210 = scmp.ne.s32.totalorder %s195, %s209
      %p211 = scmp.eq.s32.totalorder %s33, 0
      %p212 = por %p210, %p211
      %s214 = sadd.s32 %s213, 1
      %p217 = scmp.eq.s32.totalorder %s27, 1
      %p218 = scmp.ne.s32.totalorder %s213, %s215
      %p219 = scmp.eq.s32.totalorder %s27, 0
      %p220 = por %p218, %p219
      %p221 = scmp.ne.s32.totalorder %s213, %s215
      %p222 = scmp.eq.s32.totalorder %s32, 1
      %p223 = por %p221, %p222
      %p224 = scmp.ne.s32.totalorder %s215, %s216
      %p225 = scmp.eq.s32.totalorder %s32, 0
      %p226 = por %p224, %p225
      %p227 = scmp.ne.s32.totalorder %s215, %s216
      %p228 = scmp.eq.s32.totalorder %s33, 1
      %p229 = por %p227, %p228
      %p231 = scmp.ne.s32.totalorder %s216, %s230
      %p232 = scmp.eq.s32.totalorder %s33, 0
      %p233 = por %p231, %p232
      %s235 = sadd.s32 %s234, 1
      %p238 = scmp.eq.s32.totalorder %s27, 1
      %p239 = scmp.ne.s32.totalorder %s234, %s236
      %p240 = scmp.eq.s32.totalorder %s27, 0
      %p241 = por %p239, %p240
      %p242 = scmp.ne.s32.totalorder %s234, %s236
      %p243 = scmp.eq.s32.totalorder %s32, 1
      %p244 = por %p242, %p243
      %p245 = scmp.ne.s32.totalorder %s236, %s237
      %p246 = scmp.eq.s32.totalorder %s32, 0
      %p247 = por %p245, %p246
      %p248 = scmp.ne.s32.totalorder %s236, %s237
      %p249 = scmp.eq.s32.totalorder %s33, 1
      %p250 = por %p248, %p249
      %p252 = scmp.ne.s32.totalorder %s237, %s251
      %p253 = scmp.eq.s32.totalorder %s33, 0
      %p254 = por %p252, %p253
      %s256 = sadd.s32 %s255, 1
      %p259 = scmp.eq.s32.totalorder %s27, 1
      %p260 = scmp.ne.s32.totalorder %s255, %s257
      %p261 = scmp.eq.s32.totalorder %s27, 0
      %p262 = por %p260, %p261
      %p263 = scmp.ne.s32.totalorder %s255, %s257
      %p264 = scmp.eq.s32.totalorder %s32, 1
      %p265 = por %p263, %p264
      %p266 = scmp.ne.s32.totalorder %s257, %s258
      %p267 = scmp.eq.s32.totalorder %s32, 0
      %p268 = por %p266, %p267
      %p269 = scmp.ne.s32.totalorder %s257, %s258
      %p270 = scmp.eq.s32.totalorder %s33, 1
      %p271 = por %p269, %p270
      %p273 = scmp.ne.s32.totalorder %s258, %s272
      %p274 = scmp.eq.s32.totalorder %s33, 0
      %p275 = por %p273, %p274
      %s277 = sadd.s32 %s276, 1
      %p280 = scmp.eq.s32.totalorder %s27, 1
      %p281 = scmp.ne.s32.totalorder %s276, %s278
      %p282 = scmp.eq.s32.totalorder %s27, 0
      %p283 = por %p281, %p282
      %p284 = scmp.ne.s32.totalorder %s276, %s278
      %p285 = scmp.eq.s32.totalorder %s32, 1
      %p286 = por %p284, %p285
      %p287 = scmp.ne.s32.totalorder %s278, %s279
      %p288 = scmp.eq.s32.totalorder %s32, 0
      %p289 = por %p287, %p288
      %p290 = scmp.ne.s32.totalorder %s278, %s279
      %p291 = scmp.eq.s32.totalorder %s33, 1
      %p292 = por %p290, %p291
      %p294 = scmp.ne.s32.totalorder %s279, %s293
      %p295 = scmp.eq.s32.totalorder %s33, 0
      %p296 = por %p294, %p295
      %p297 = scmp.le.s32.totalorder 1, %s27
      %p298 = scmp.lt.s32.totalorder %s27, 3
      %p299 = pnand %p297, %p298
      %p300 = pneg %p299
      // Predicated region
      $region9: #{tpu_custom_call.1} parent=5 // pred_check
        _
      $region10: #{tpu_custom_call.1} parent=5 // pred_check_branch
        %302 = sbr.rel (%p299) target = $region12
      $region11: #{tpu_custom_call.1} parent=5 // pred_region
        %s303 = ssub.s32 %s27, 1
        // Predicated region
        $region13: #{tpu_custom_call.1} parent=11 // pred_check
          %p304 = pneg %p48
        $region14: #{tpu_custom_call.1} parent=11 // pred_check_branch
          %306 = sbr.rel (%p304) target = $region16
        $region15: #{tpu_custom_call.1} parent=11 // pred_region
          %308 = vsyncadd [#allocation6], 0
          %s310 = sshll.u32 %s0, 4
          %s311 = int_to_ptr.hbm [resolvable:$true] %s310
          %313 = dma.hbm_to_smem %s311, 32, [#allocation3], [#allocation6]
        $region16: #{tpu_custom_call.1} parent=11 // pred_fallthru
          _
        // Predicated region
        $region17: #{tpu_custom_call.1} parent=11 // pred_check
          %p314 = pneg %p69
        $region18: #{tpu_custom_call.1} parent=11 // pred_check_branch
          %316 = sbr.rel (%p314) target = $region20
        $region19: #{tpu_custom_call.1} parent=11 // pred_region
          %318 = vsyncadd [#allocation4], 0
          %s320 = sshll.u32 %s1, 4
          %s321 = int_to_ptr.hbm [resolvable:$true] %s320
          %s322 = sshll.u32 [#allocation7], 4
          %s323 = int_to_ptr.vmem [resolvable:$true] %s322
          %325 = dma.hbm_to_vmem [thread:$0]  %s321, 768, %s323, [#allocation4]
        $region20: #{tpu_custom_call.1} parent=11 // pred_fallthru
          _
        // Predicated region
        $region21: #{tpu_custom_call.1} parent=11 // pred_check
          %p326 = pneg %p142
        $region22: #{tpu_custom_call.1} parent=11 // pred_check_branch
          %328 = sbr.rel (%p326) target = $region24
        $region23: #{tpu_custom_call.1} parent=11 // pred_region
          _
        $region24: #{tpu_custom_call.1} parent=11 // pred_fallthru
          _
        // Predicated region
        $region25: #{tpu_custom_call.1} parent=11 // pred_check
          %p329 = pneg %p163
        $region26: #{tpu_custom_call.1} parent=11 // pred_check_branch
          %331 = sbr.rel (%p329) target = $region28
        $region27: #{tpu_custom_call.1} parent=11 // pred_region
          %333 = vsyncadd [#allocation12], 0
          %s334 = sshll.u32 %s5, 4
          %s335 = int_to_ptr.hbm [resolvable:$true] %s334
          %s336 = sshll.u32 [#allocation11], 4
          %s337 = int_to_ptr.vmem [resolvable:$true] %s336
          %342 = dma.hbm_to_vmem [thread:$0]  %s335, 1024, %s337, [#allocation12], 512, 512, 32
        $region28: #{tpu_custom_call.1} parent=11 // pred_fallthru
          _
        // Predicated region
        $region29: #{tpu_custom_call.1} parent=11 // pred_check
          %p343 = pneg %p184
        $region30: #{tpu_custom_call.1} parent=11 // pred_check_branch
          %345 = sbr.rel (%p343) target = $region32
        $region31: #{tpu_custom_call.1} parent=11 // pred_region
          _
        $region32: #{tpu_custom_call.1} parent=11 // pred_fallthru
          _
        // Predicated region
        $region33: #{tpu_custom_call.1} parent=11 // pred_check
          %p346 = pneg %p205
        $region34: #{tpu_custom_call.1} parent=11 // pred_check_branch
          %348 = sbr.rel (%p346) target = $region36
        $region35: #{tpu_custom_call.1} parent=11 // pred_region
          %350 = vsyncadd [#allocation12], 0
          %s352 = sshll.u32 %s7, 4
          %s353 = int_to_ptr.hbm [resolvable:$true] %s352
          %s354 = sshll.u32 [#allocation13], 4
          %s355 = int_to_ptr.vmem [resolvable:$true] %s354
          %357 = dma.hbm_to_vmem [thread:$0]  %s353, 16, %s355, [#allocation12]
        $region36: #{tpu_custom_call.1} parent=11 // pred_fallthru
          _
      $region12: #{tpu_custom_call.1} parent=5 // pred_fallthru
        _
      %p358 = scmp.lt.s32.totalorder %s27, 2
      // Predicated region
      $region37: #{tpu_custom_call.1} parent=5 // pred_check
        %p359 = pneg %p358
      $region38: #{tpu_custom_call.1} parent=5 // pred_check_branch
        %361 = sbr.rel (%p359) target = $region40
      $region39: #{tpu_custom_call.1} parent=5 // pred_region
        // Predicated region
        $region41: #{tpu_custom_call.1} parent=39 // pred_check
          %p362 = pneg %p89
        $region42: #{tpu_custom_call.1} parent=39 // pred_check_branch
          %364 = sbr.rel (%p362) target = $region44
        $region43: #{tpu_custom_call.1} parent=39 // pred_region
          %s365 = sand.u32 %s27, 1
          %s366 = scalar_lea.sflag [#allocation9], %s365
          %s367 = sand.u32 %s79, 1
          %s368 = smul.addr %s367, 2304
          %s369 = scalar_lea.vmem [#allocation8], %s368
          %s370 = smul.u32 2, %s27
          %372 = vsyncadd %s366, 0
          %s373 = smul.addr %s370, 4
          %s374 = scalar_lea.hbm %s2, %s373
          %s375 = sshll.u32 %s374, 4
          %s376 = int_to_ptr.hbm [resolvable:$true] %s375
          %s377 = sshll.u32 %s369, 4
          %s378 = int_to_ptr.vmem [resolvable:$true] %s377
          %383 = dma.hbm_to_vmem [thread:$0]  %s376, 36864, %s378, %s366, 256, 128, 8
        $region44: #{tpu_custom_call.1} parent=39 // pred_fallthru
          _
        // Predicated region
        $region45: #{tpu_custom_call.1} parent=39 // pred_check
          %p384 = pneg %p115
        $region46: #{tpu_custom_call.1} parent=39 // pred_check_branch
          %386 = sbr.rel (%p384) target = $region48
        $region47: #{tpu_custom_call.1} parent=39 // pred_region
          %s387 = sand.u32 %s27, 1
          %s388 = scalar_lea.sflag [#allocation9], %s387
          %s389 = sand.u32 %s105, 1
          %s390 = smul.addr %s389, 6
          %s391 = scalar_lea.vmem [#allocation10], %s390
          %s392 = smul.u32 2, %s27
          %394 = vsyncadd %s388, 0
          %s395 = scalar_lea.hbm %s3, %s392
          %s396 = sshll.u32 %s395, 4
          %s397 = int_to_ptr.hbm [resolvable:$true] %s396
          %s398 = sshll.u32 %s391, 4
          %s399 = int_to_ptr.vmem [resolvable:$true] %s398
          %404 = dma.hbm_to_vmem [thread:$0]  %s397, 96, %s399, %s388, 64, 32, 2
        $region48: #{tpu_custom_call.1} parent=39 // pred_fallthru
          _
      $region40: #{tpu_custom_call.1} parent=5 // pred_fallthru
        _
      %p405 = scmp.le.s32.totalorder 1, %s27
      %p406 = scmp.lt.s32.totalorder %s27, 3
      %p407 = pnand %p405, %p406
      %p408 = pneg %p407
      // Predicated region
      $region49: #{tpu_custom_call.1} parent=5 // pred_check
        _
      $region50: #{tpu_custom_call.1} parent=5 // pred_check_branch
        %410 = sbr.rel (%p407) target = $region52
      $region51: #{tpu_custom_call.1} parent=5 // pred_region
        %s411 = ssub.s32 %s27, 1
        // Predicated region
        $region53: #{tpu_custom_call.1} parent=51 // pred_check
          %p412 = pneg %p48
        $region54: #{tpu_custom_call.1} parent=51 // pred_check_branch
          %414 = sbr.rel (%p412) target = $region56
        $region55: #{tpu_custom_call.1} parent=51 // pred_region
          %416 = dma.done [#allocation6], 32
        $region56: #{tpu_custom_call.1} parent=51 // pred_fallthru
          _
        // Predicated region
        $region57: #{tpu_custom_call.1} parent=51 // pred_check
          %p417 = pneg %p69
        $region58: #{tpu_custom_call.1} parent=51 // pred_check_branch
          %419 = sbr.rel (%p417) target = $region60
        $region59: #{tpu_custom_call.1} parent=51 // pred_region
          %421 = dma.done [#allocation4], 768
        $region60: #{tpu_custom_call.1} parent=51 // pred_fallthru
          _
        %s422 = sand.u32 %s32, 1
        %s423 = scalar_lea.sflag [#allocation9], %s422
        %s424 = sand.u32 %s82, 1
        %s425 = smul.addr %s424, 2304
        %s426 = scalar_lea.vmem [#allocation8], %s425
        // Predicated region
        $region61: #{tpu_custom_call.1} parent=51 // pred_check
          %p427 = pneg %p95
        $region62: #{tpu_custom_call.1} parent=51 // pred_check_branch
          %429 = sbr.rel (%p427) target = $region64
        $region63: #{tpu_custom_call.1} parent=51 // pred_region
          %431 = dma.done %s423, 36864
        $region64: #{tpu_custom_call.1} parent=51 // pred_fallthru
          _
        %s432 = sand.u32 %s32, 1
        %s433 = scalar_lea.sflag [#allocation9], %s432
        %s434 = sand.u32 %s108, 1
        %s435 = smul.addr %s434, 6
        %s436 = scalar_lea.vmem [#allocation10], %s435
        // Predicated region
        $region65: #{tpu_custom_call.1} parent=51 // pred_check
          %p437 = pneg %p121
        $region66: #{tpu_custom_call.1} parent=51 // pred_check_branch
          %439 = sbr.rel (%p437) target = $region68
        $region67: #{tpu_custom_call.1} parent=51 // pred_region
          %441 = dma.done %s433, 96
        $region68: #{tpu_custom_call.1} parent=51 // pred_fallthru
          _
        // Predicated region
        $region69: #{tpu_custom_call.1} parent=51 // pred_check
          %p442 = pneg %p163
        $region70: #{tpu_custom_call.1} parent=51 // pred_check_branch
          %444 = sbr.rel (%p442) target = $region72
        $region71: #{tpu_custom_call.1} parent=51 // pred_region
          %446 = dma.done [#allocation12], 1024
        $region72: #{tpu_custom_call.1} parent=51 // pred_fallthru
          _
        // Predicated region
        $region73: #{tpu_custom_call.1} parent=51 // pred_check
          %p447 = pneg %p205
        $region74: #{tpu_custom_call.1} parent=51 // pred_check_branch
          %449 = sbr.rel (%p447) target = $region76
        $region75: #{tpu_custom_call.1} parent=51 // pred_region
          %451 = dma.done [#allocation12], 16
        $region76: #{tpu_custom_call.1} parent=51 // pred_fallthru
          _
        %452 = sfence
        %p453 = pneg %p48
        %p454 = pneg %p45
        %p455 = pneg %p69
        %p456 = pneg %p66
        %s457 = sand.u32 %s32, 1
        %s458 = scalar_lea.sflag [#allocation9], %s457
        %s459 = sand.u32 %s82, 1
        %s460 = smul.addr %s459, 2304
        %s461 = scalar_lea.vmem [#allocation8], %s460
        %p462 = pneg %p95
        %p463 = pneg %p92
        %s464 = sand.u32 %s32, 1
        %s465 = scalar_lea.sflag [#allocation9], %s464
        %s466 = sand.u32 %s108, 1
        %s467 = smul.addr %s466, 6
        %s468 = scalar_lea.vmem [#allocation10], %s467
        %p469 = pneg %p121
        %p470 = pneg %p118
        %p471 = pneg %p142
        %p472 = pneg %p139
        %p473 = pneg %p163
        %p474 = pneg %p160
        %p475 = pneg %p184
        %p476 = pneg %p181
        %p477 = pneg %p205
        %p478 = pneg %p202
        %p479 = pneg %p226
        %p480 = pneg %p223
        %p481 = pneg %p247
        %p482 = pneg %p244
        %p483 = pneg %p268
        %p484 = pneg %p265
        %p485 = pneg %p289
        %p486 = pneg %p286
        %s487 = smul.u32 2, %s32
        %s488 = smul.u32 2, %s32
        %s489 = sld [smem:[#allocation3]]
        %v490 = vld [vmem:[%s426] sm:$0xff]
        %v491 = vld [vmem:[%s426 + $0x8] sm:$0xff]
        %v492 = vld [vmem:[%s426 + $0x10] sm:$0xff]
        %v493 = vld [vmem:[%s426 + $0x18] sm:$0xff]
        %v494 = vld [vmem:[%s426 + $0x20] sm:$0xff]
        %v495 = vld [vmem:[%s426 + $0x28] sm:$0xff]
        %v496 = vld [vmem:[%s426 + $0x30] sm:$0xff]
        %v497 = vld [vmem:[%s426 + $0x38] sm:$0xff]
        %v498 = vld [vmem:[%s426 + $0x40] sm:$0xff]
        %v499 = vld [vmem:[%s426 + $0x48] sm:$0xff]
        %v500 = vld [vmem:[%s426 + $0x50] sm:$0xff]
        %v501 = vld [vmem:[%s426 + $0x58] sm:$0xff]
        %v502 = vld [vmem:[%s426 + $0x60] sm:$0xff]
        %v503 = vld [vmem:[%s426 + $0x68] sm:$0xff]
        %v504 = vld [vmem:[%s426 + $0x70] sm:$0xff]
        %v505 = vld [vmem:[%s426 + $0x78] sm:$0xff]
        %v506 = vld [vmem:[%s426 + $0x80] sm:$0xff]
        %v507 = vld [vmem:[%s426 + $0x88] sm:$0xff]
        %v508 = vld [vmem:[%s426 + $0x90] sm:$0xff]
        %v509 = vld [vmem:[%s426 + $0x98] sm:$0xff]
        %v510 = vld [vmem:[%s426 + $0xa0] sm:$0xff]
        %v511 = vld [vmem:[%s426 + $0xa8] sm:$0xff]
        %v512 = vld [vmem:[%s426 + $0xb0] sm:$0xff]
        %v513 = vld [vmem:[%s426 + $0xb8] sm:$0xff]
        %v514 = vld [vmem:[%s426 + $0xc0] sm:$0xff]
        %v515 = vld [vmem:[%s426 + $0xc8] sm:$0xff]
        %v516 = vld [vmem:[%s426 + $0xd0] sm:$0xff]
        %v517 = vld [vmem:[%s426 + $0xd8] sm:$0xff]
        %v518 = vld [vmem:[%s426 + $0xe0] sm:$0xff]
        %v519 = vld [vmem:[%s426 + $0xe8] sm:$0xff]
        %v520 = vld [vmem:[%s426 + $0xf0] sm:$0xff]
        %v521 = vld [vmem:[%s426 + $0xf8] sm:$0xff]
        %v522 = vld [vmem:[%s426 + $0x100] sm:$0xff]
        %v523 = vld [vmem:[%s426 + $0x108] sm:$0xff]
        %v524 = vld [vmem:[%s426 + $0x110] sm:$0xff]
        %v525 = vld [vmem:[%s426 + $0x118] sm:$0xff]
        %v526 = vld [vmem:[%s426 + $0x120] sm:$0xff]
        %v527 = vld [vmem:[%s426 + $0x128] sm:$0xff]
        %v528 = vld [vmem:[%s426 + $0x130] sm:$0xff]
        %v529 = vld [vmem:[%s426 + $0x138] sm:$0xff]
        %v530 = vld [vmem:[%s426 + $0x140] sm:$0xff]
        %v531 = vld [vmem:[%s426 + $0x148] sm:$0xff]
        %v532 = vld [vmem:[%s426 + $0x150] sm:$0xff]
        %v533 = vld [vmem:[%s426 + $0x158] sm:$0xff]
        %v534 = vld [vmem:[%s426 + $0x160] sm:$0xff]
        %v535 = vld [vmem:[%s426 + $0x168] sm:$0xff]
        %v536 = vld [vmem:[%s426 + $0x170] sm:$0xff]
        %v537 = vld [vmem:[%s426 + $0x178] sm:$0xff]
        %v538 = vld [vmem:[%s426 + $0x180] sm:$0xff]
        %v539 = vld [vmem:[%s426 + $0x188] sm:$0xff]
        %v540 = vld [vmem:[%s426 + $0x190] sm:$0xff]
        %v541 = vld [vmem:[%s426 + $0x198] sm:$0xff]
        %v542 = vld [vmem:[%s426 + $0x1a0] sm:$0xff]
        %v543 = vld [vmem:[%s426 + $0x1a8] sm:$0xff]
        %v544 = vld [vmem:[%s426 + $0x1b0] sm:$0xff]
        %v545 = vld [vmem:[%s426 + $0x1b8] sm:$0xff]
        %v546 = vld [vmem:[%s426 + $0x1c0] sm:$0xff]
        %v547 = vld [vmem:[%s426 + $0x1c8] sm:$0xff]
        %v548 = vld [vmem:[%s426 + $0x1d0] sm:$0xff]
        %v549 = vld [vmem:[%s426 + $0x1d8] sm:$0xff]
        %v550 = vld [vmem:[%s426 + $0x1e0] sm:$0xff]
        %v551 = vld [vmem:[%s426 + $0x1e8] sm:$0xff]
        %v552 = vld [vmem:[%s426 + $0x1f0] sm:$0xff]
        %v553 = vld [vmem:[%s426 + $0x1f8] sm:$0xff]
        %v554 = vld [vmem:[%s426 + $0x200] sm:$0xff]
        %v555 = vld [vmem:[%s426 + $0x208] sm:$0xff]
        %v556 = vld [vmem:[%s426 + $0x210] sm:$0xff]
        %v557 = vld [vmem:[%s426 + $0x218] sm:$0xff]
        %v558 = vld [vmem:[%s426 + $0x220] sm:$0xff]
        %v559 = vld [vmem:[%s426 + $0x228] sm:$0xff]
        %v560 = vld [vmem:[%s426 + $0x230] sm:$0xff]
        %v561 = vld [vmem:[%s426 + $0x238] sm:$0xff]
        %v562 = vld [vmem:[%s426 + $0x240] sm:$0xff]
        %v563 = vld [vmem:[%s426 + $0x248] sm:$0xff]
        %v564 = vld [vmem:[%s426 + $0x250] sm:$0xff]
        %v565 = vld [vmem:[%s426 + $0x258] sm:$0xff]
        %v566 = vld [vmem:[%s426 + $0x260] sm:$0xff]
        %v567 = vld [vmem:[%s426 + $0x268] sm:$0xff]
        %v568 = vld [vmem:[%s426 + $0x270] sm:$0xff]
        %v569 = vld [vmem:[%s426 + $0x278] sm:$0xff]
        %v570 = vld [vmem:[%s426 + $0x280] sm:$0xff]
        %v571 = vld [vmem:[%s426 + $0x288] sm:$0xff]
        %v572 = vld [vmem:[%s426 + $0x290] sm:$0xff]
        %v573 = vld [vmem:[%s426 + $0x298] sm:$0xff]
        %v574 = vld [vmem:[%s426 + $0x2a0] sm:$0xff]
        %v575 = vld [vmem:[%s426 + $0x2a8] sm:$0xff]
        %v576 = vld [vmem:[%s426 + $0x2b0] sm:$0xff]
        %v577 = vld [vmem:[%s426 + $0x2b8] sm:$0xff]
        %v578 = vld [vmem:[%s426 + $0x2c0] sm:$0xff]
        %v579 = vld [vmem:[%s426 + $0x2c8] sm:$0xff]
        %v580 = vld [vmem:[%s426 + $0x2d0] sm:$0xff]
        %v581 = vld [vmem:[%s426 + $0x2d8] sm:$0xff]
        %v582 = vld [vmem:[%s426 + $0x2e0] sm:$0xff]
        %v583 = vld [vmem:[%s426 + $0x2e8] sm:$0xff]
        %v584 = vld [vmem:[%s426 + $0x2f0] sm:$0xff]
        %v585 = vld [vmem:[%s426 + $0x2f8] sm:$0xff]
        %v586 = vunpack.c.l.bf16 %v490
        %v587 = vunpack.c.h.bf16 %v490
        %v588 = vunpack.c.l.bf16 %v491
        %v589 = vunpack.c.h.bf16 %v491
        %v590 = vunpack.c.l.bf16 %v492
        %v591 = vunpack.c.h.bf16 %v492
        %v592 = vunpack.c.l.bf16 %v493
        %v593 = vunpack.c.h.bf16 %v493
        %v594 = vunpack.c.l.bf16 %v494
        %v595 = vunpack.c.h.bf16 %v494
        %v596 = vunpack.c.l.bf16 %v495
        %v597 = vunpack.c.h.bf16 %v495
        %v598 = vunpack.c.l.bf16 %v496
        %v599 = vunpack.c.h.bf16 %v496
        %v600 = vunpack.c.l.bf16 %v497
        %v601 = vunpack.c.h.bf16 %v497
        %v602 = vunpack.c.l.bf16 %v498
        %v603 = vunpack.c.h.bf16 %v498
        %v604 = vunpack.c.l.bf16 %v499
        %v605 = vunpack.c.h.bf16 %v499
        %v606 = vunpack.c.l.bf16 %v500
        %v607 = vunpack.c.h.bf16 %v500
        %v608 = vunpack.c.l.bf16 %v501
        %v609 = vunpack.c.h.bf16 %v501
        %v610 = vunpack.c.l.bf16 %v502
        %v611 = vunpack.c.h.bf16 %v502
        %v612 = vunpack.c.l.bf16 %v503
        %v613 = vunpack.c.h.bf16 %v503
        %v614 = vunpack.c.l.bf16 %v504
        %v615 = vunpack.c.h.bf16 %v504
        %v616 = vunpack.c.l.bf16 %v505
        %v617 = vunpack.c.h.bf16 %v505
        %v618 = vunpack.c.l.bf16 %v506
        %v619 = vunpack.c.h.bf16 %v506
        %v620 = vunpack.c.l.bf16 %v507
        %v621 = vunpack.c.h.bf16 %v507
        %v622 = vunpack.c.l.bf16 %v508
        %v623 = vunpack.c.h.bf16 %v508
        %v624 = vunpack.c.l.bf16 %v509
        %v625 = vunpack.c.h.bf16 %v509
        %v626 = vunpack.c.l.bf16 %v510
        %v627 = vunpack.c.h.bf16 %v510
        %v628 = vunpack.c.l.bf16 %v511
        %v629 = vunpack.c.h.bf16 %v511
        %v630 = vunpack.c.l.bf16 %v512
        %v631 = vunpack.c.h.bf16 %v512
        %v632 = vunpack.c.l.bf16 %v513
        %v633 = vunpack.c.h.bf16 %v513
        %v634 = vunpack.c.l.bf16 %v514
        %v635 = vunpack.c.h.bf16 %v514
        %v636 = vunpack.c.l.bf16 %v515
        %v637 = vunpack.c.h.bf16 %v515
        %v638 = vunpack.c.l.bf16 %v516
        %v639 = vunpack.c.h.bf16 %v516
        %v640 = vunpack.c.l.bf16 %v517
        %v641 = vunpack.c.h.bf16 %v517
        %v642 = vunpack.c.l.bf16 %v518
        %v643 = vunpack.c.h.bf16 %v518
        %v644 = vunpack.c.l.bf16 %v519
        %v645 = vunpack.c.h.bf16 %v519
        %v646 = vunpack.c.l.bf16 %v520
        %v647 = vunpack.c.h.bf16 %v520
        %v648 = vunpack.c.l.bf16 %v521
        %v649 = vunpack.c.h.bf16 %v521
        %v650 = vunpack.c.l.bf16 %v522
        %v651 = vunpack.c.h.bf16 %v522
        %v652 = vunpack.c.l.bf16 %v523
        %v653 = vunpack.c.h.bf16 %v523
        %v654 = vunpack.c.l.bf16 %v524
        %v655 = vunpack.c.h.bf16 %v524
        %v656 = vunpack.c.l.bf16 %v525
        %v657 = vunpack.c.h.bf16 %v525
        %v658 = vunpack.c.l.bf16 %v526
        %v659 = vunpack.c.h.bf16 %v526
        %v660 = vunpack.c.l.bf16 %v527
        %v661 = vunpack.c.h.bf16 %v527
        %v662 = vunpack.c.l.bf16 %v528
        %v663 = vunpack.c.h.bf16 %v528
        %v664 = vunpack.c.l.bf16 %v529
        %v665 = vunpack.c.h.bf16 %v529
        %v666 = vunpack.c.l.bf16 %v530
        %v667 = vunpack.c.h.bf16 %v530
        %v668 = vunpack.c.l.bf16 %v531
        %v669 = vunpack.c.h.bf16 %v531
        %v670 = vunpack.c.l.bf16 %v532
        %v671 = vunpack.c.h.bf16 %v532
        %v672 = vunpack.c.l.bf16 %v533
        %v673 = vunpack.c.h.bf16 %v533
        %v674 = vunpack.c.l.bf16 %v534
        %v675 = vunpack.c.h.bf16 %v534
        %v676 = vunpack.c.l.bf16 %v535
        %v677 = vunpack.c.h.bf16 %v535
        %v678 = vunpack.c.l.bf16 %v536
        %v679 = vunpack.c.h.bf16 %v536
        %v680 = vunpack.c.l.bf16 %v537
        %v681 = vunpack.c.h.bf16 %v537
        %v682 = vunpack.c.l.bf16 %v538
        %v683 = vunpack.c.h.bf16 %v538
        %v684 = vunpack.c.l.bf16 %v539
        %v685 = vunpack.c.h.bf16 %v539
        %v686 = vunpack.c.l.bf16 %v540
        %v687 = vunpack.c.h.bf16 %v540
        %v688 = vunpack.c.l.bf16 %v541
        %v689 = vunpack.c.h.bf16 %v541
        %v690 = vunpack.c.l.bf16 %v542
        %v691 = vunpack.c.h.bf16 %v542
        %v692 = vunpack.c.l.bf16 %v543
        %v693 = vunpack.c.h.bf16 %v543
        %v694 = vunpack.c.l.bf16 %v544
        %v695 = vunpack.c.h.bf16 %v544
        %v696 = vunpack.c.l.bf16 %v545
        %v697 = vunpack.c.h.bf16 %v545
        %v698 = vunpack.c.l.bf16 %v546
        %v699 = vunpack.c.h.bf16 %v546
        %v700 = vunpack.c.l.bf16 %v547
        %v701 = vunpack.c.h.bf16 %v547
        %v702 = vunpack.c.l.bf16 %v548
        %v703 = vunpack.c.h.bf16 %v548
        %v704 = vunpack.c.l.bf16 %v549
        %v705 = vunpack.c.h.bf16 %v549
        %v706 = vunpack.c.l.bf16 %v550
        %v707 = vunpack.c.h.bf16 %v550
        %v708 = vunpack.c.l.bf16 %v551
        %v709 = vunpack.c.h.bf16 %v551
        %v710 = vunpack.c.l.bf16 %v552
        %v711 = vunpack.c.h.bf16 %v552
        %v712 = vunpack.c.l.bf16 %v553
        %v713 = vunpack.c.h.bf16 %v553
        %v714 = vunpack.c.l.bf16 %v554
        %v715 = vunpack.c.h.bf16 %v554
        %v716 = vunpack.c.l.bf16 %v555
        %v717 = vunpack.c.h.bf16 %v555
        %v718 = vunpack.c.l.bf16 %v556
        %v719 = vunpack.c.h.bf16 %v556
        %v720 = vunpack.c.l.bf16 %v557
        %v721 = vunpack.c.h.bf16 %v557
        %v722 = vunpack.c.l.bf16 %v558
        %v723 = vunpack.c.h.bf16 %v558
        %v724 = vunpack.c.l.bf16 %v559
        %v725 = vunpack.c.h.bf16 %v559
        %v726 = vunpack.c.l.bf16 %v560
        %v727 = vunpack.c.h.bf16 %v560
        %v728 = vunpack.c.l.bf16 %v561
        %v729 = vunpack.c.h.bf16 %v561
        %v730 = vunpack.c.l.bf16 %v562
        %v731 = vunpack.c.h.bf16 %v562
        %v732 = vunpack.c.l.bf16 %v563
        %v733 = vunpack.c.h.bf16 %v563
        %v734 = vunpack.c.l.bf16 %v564
        %v735 = vunpack.c.h.bf16 %v564
        %v736 = vunpack.c.l.bf16 %v565
        %v737 = vunpack.c.h.bf16 %v565
        %v738 = vunpack.c.l.bf16 %v566
        %v739 = vunpack.c.h.bf16 %v566
        %v740 = vunpack.c.l.bf16 %v567
        %v741 = vunpack.c.h.bf16 %v567
        %v742 = vunpack.c.l.bf16 %v568
        %v743 = vunpack.c.h.bf16 %v568
        %v744 = vunpack.c.l.bf16 %v569
        %v745 = vunpack.c.h.bf16 %v569
        %v746 = vunpack.c.l.bf16 %v570
        %v747 = vunpack.c.h.bf16 %v570
        %v748 = vunpack.c.l.bf16 %v571
        %v749 = vunpack.c.h.bf16 %v571
        %v750 = vunpack.c.l.bf16 %v572
        %v751 = vunpack.c.h.bf16 %v572
        %v752 = vunpack.c.l.bf16 %v573
        %v753 = vunpack.c.h.bf16 %v573
        %v754 = vunpack.c.l.bf16 %v574
        %v755 = vunpack.c.h.bf16 %v574
        %v756 = vunpack.c.l.bf16 %v575
        %v757 = vunpack.c.h.bf16 %v575
        %v758 = vunpack.c.l.bf16 %v576
        %v759 = vunpack.c.h.bf16 %v576
        %v760 = vunpack.c.l.bf16 %v577
        %v761 = vunpack.c.h.bf16 %v577
        %v762 = vunpack.c.l.bf16 %v578
        %v763 = vunpack.c.h.bf16 %v578
        %v764 = vunpack.c.l.bf16 %v579
        %v765 = vunpack.c.h.bf16 %v579
        %v766 = vunpack.c.l.bf16 %v580
        %v767 = vunpack.c.h.bf16 %v580
        %v768 = vunpack.c.l.bf16 %v581
        %v769 = vunpack.c.h.bf16 %v581
        %v770 = vunpack.c.l.bf16 %v582
        %v771 = vunpack.c.h.bf16 %v582
        %v772 = vunpack.c.l.bf16 %v583
        %v773 = vunpack.c.h.bf16 %v583
        %v774 = vunpack.c.l.bf16 %v584
        %v775 = vunpack.c.h.bf16 %v584
        %v776 = vunpack.c.l.bf16 %v585
        %v777 = vunpack.c.h.bf16 %v585
        %v778 = vstv %s489
        %v779 = vmul.f32 %v778, %v586
        %v780 = vmul.f32 %v778, %v587
        %v781 = vmul.f32 %v778, %v588
        %v782 = vmul.f32 %v778, %v589
        %v783 = vmul.f32 %v778, %v590
        %v784 = vmul.f32 %v778, %v591
        %v785 = vmul.f32 %v778, %v592
        %v786 = vmul.f32 %v778, %v593
        %v787 = vmul.f32 %v778, %v594
        %v788 = vmul.f32 %v778, %v595
        %v789 = vmul.f32 %v778, %v596
        %v790 = vmul.f32 %v778, %v597
        %v791 = vmul.f32 %v778, %v598
        %v792 = vmul.f32 %v778, %v599
        %v793 = vmul.f32 %v778, %v600
        %v794 = vmul.f32 %v778, %v601
        %v795 = vmul.f32 %v778, %v602
        %v796 = vmul.f32 %v778, %v603
        %v797 = vmul.f32 %v778, %v604
        %v798 = vmul.f32 %v778, %v605
        %v799 = vmul.f32 %v778, %v606
        %v800 = vmul.f32 %v778, %v607
        %v801 = vmul.f32 %v778, %v608
        %v802 = vmul.f32 %v778, %v609
        %v803 = vmul.f32 %v778, %v610
        %v804 = vmul.f32 %v778, %v611
        %v805 = vmul.f32 %v778, %v612
        %v806 = vmul.f32 %v778, %v613
        %v807 = vmul.f32 %v778, %v614
        %v808 = vmul.f32 %v778, %v615
        %v809 = vmul.f32 %v778, %v616
        %v810 = vmul.f32 %v778, %v617
        %v811 = vmul.f32 %v778, %v618
        %v812 = vmul.f32 %v778, %v619
        %v813 = vmul.f32 %v778, %v620
        %v814 = vmul.f32 %v778, %v621
        %v815 = vmul.f32 %v778, %v622
        %v816 = vmul.f32 %v778, %v623
        %v817 = vmul.f32 %v778, %v624
        %v818 = vmul.f32 %v778, %v625
        %v819 = vmul.f32 %v778, %v626
        %v820 = vmul.f32 %v778, %v627
        %v821 = vmul.f32 %v778, %v628
        %v822 = vmul.f32 %v778, %v629
        %v823 = vmul.f32 %v778, %v630
        %v824 = vmul.f32 %v778, %v631
        %v825 = vmul.f32 %v778, %v632
        %v826 = vmul.f32 %v778, %v633
        %v827 = vmul.f32 %v778, %v634
        %v828 = vmul.f32 %v778, %v635
        %v829 = vmul.f32 %v778, %v636
        %v830 = vmul.f32 %v778, %v637
        %v831 = vmul.f32 %v778, %v638
        %v832 = vmul.f32 %v778, %v639
        %v833 = vmul.f32 %v778, %v640
        %v834 = vmul.f32 %v778, %v641
        %v835 = vmul.f32 %v778, %v642
        %v836 = vmul.f32 %v778, %v643
        %v837 = vmul.f32 %v778, %v644
        %v838 = vmul.f32 %v778, %v645
        %v839 = vmul.f32 %v778, %v646
        %v840 = vmul.f32 %v778, %v647
        %v841 = vmul.f32 %v778, %v648
        %v842 = vmul.f32 %v778, %v649
        %v843 = vmul.f32 %v778, %v650
        %v844 = vmul.f32 %v778, %v651
        %v845 = vmul.f32 %v778, %v652
        %v846 = vmul.f32 %v778, %v653
        %v847 = vmul.f32 %v778, %v654
        %v848 = vmul.f32 %v778, %v655
        %v849 = vmul.f32 %v778, %v656
        %v850 = vmul.f32 %v778, %v657
        %v851 = vmul.f32 %v778, %v658
        %v852 = vmul.f32 %v778, %v659
        %v853 = vmul.f32 %v778, %v660
        %v854 = vmul.f32 %v778, %v661
        %v855 = vmul.f32 %v778, %v662
        %v856 = vmul.f32 %v778, %v663
        %v857 = vmul.f32 %v778, %v664
        %v858 = vmul.f32 %v778, %v665
        %v859 = vmul.f32 %v778, %v666
        %v860 = vmul.f32 %v778, %v667
        %v861 = vmul.f32 %v778, %v668
        %v862 = vmul.f32 %v778, %v669
        %v863 = vmul.f32 %v778, %v670
        %v864 = vmul.f32 %v778, %v671
        %v865 = vmul.f32 %v778, %v672
        %v866 = vmul.f32 %v778, %v673
        %v867 = vmul.f32 %v778, %v674
        %v868 = vmul.f32 %v778, %v675
        %v869 = vmul.f32 %v778, %v676
        %v870 = vmul.f32 %v778, %v677
        %v871 = vmul.f32 %v778, %v678
        %v872 = vmul.f32 %v778, %v679
        %v873 = vmul.f32 %v778, %v680
        %v874 = vmul.f32 %v778, %v681
        %v875 = vmul.f32 %v778, %v682
        %v876 = vmul.f32 %v778, %v683
        %v877 = vmul.f32 %v778, %v684
        %v878 = vmul.f32 %v778, %v685
        %v879 = vmul.f32 %v778, %v686
        %v880 = vmul.f32 %v778, %v687
        %v881 = vmul.f32 %v778, %v688
        %v882 = vmul.f32 %v778, %v689
        %v883 = vmul.f32 %v778, %v690
        %v884 = vmul.f32 %v778, %v691
        %v885 = vmul.f32 %v778, %v692
        %v886 = vmul.f32 %v778, %v693
        %v887 = vmul.f32 %v778, %v694
        %v888 = vmul.f32 %v778, %v695
        %v889 = vmul.f32 %v778, %v696
        %v890 = vmul.f32 %v778, %v697
        %v891 = vmul.f32 %v778, %v698
        %v892 = vmul.f32 %v778, %v699
        %v893 = vmul.f32 %v778, %v700
        %v894 = vmul.f32 %v778, %v701
        %v895 = vmul.f32 %v778, %v702
        %v896 = vmul.f32 %v778, %v703
        %v897 = vmul.f32 %v778, %v704
        %v898 = vmul.f32 %v778, %v705
        %v899 = vmul.f32 %v778, %v706
        %v900 = vmul.f32 %v778, %v707
        %v901 = vmul.f32 %v778, %v708
        %v902 = vmul.f32 %v778, %v709
        %v903 = vmul.f32 %v778, %v710
        %v904 = vmul.f32 %v778, %v711
        %v905 = vmul.f32 %v778, %v712
        %v906 = vmul.f32 %v778, %v713
        %v907 = vmul.f32 %v778, %v714
        %v908 = vmul.f32 %v778, %v715
        %v909 = vmul.f32 %v778, %v716
        %v910 = vmul.f32 %v778, %v717
        %v911 = vmul.f32 %v778, %v718
        %v912 = vmul.f32 %v778, %v719
        %v913 = vmul.f32 %v778, %v720
        %v914 = vmul.f32 %v778, %v721
        %v915 = vmul.f32 %v778, %v722
        %v916 = vmul.f32 %v778, %v723
        %v917 = vmul.f32 %v778, %v724
        %v918 = vmul.f32 %v778, %v725
        %v919 = vmul.f32 %v778, %v726
        %v920 = vmul.f32 %v778, %v727
        %v921 = vmul.f32 %v778, %v728
        %v922 = vmul.f32 %v778, %v729
        %v923 = vmul.f32 %v778, %v730
        %v924 = vmul.f32 %v778, %v731
        %v925 = vmul.f32 %v778, %v732
        %v926 = vmul.f32 %v778, %v733
        %v927 = vmul.f32 %v778, %v734
        %v928 = vmul.f32 %v778, %v735
        %v929 = vmul.f32 %v778, %v736
        %v930 = vmul.f32 %v778, %v737
        %v931 = vmul.f32 %v778, %v738
        %v932 = vmul.f32 %v778, %v739
        %v933 = vmul.f32 %v778, %v740
        %v934 = vmul.f32 %v778, %v741
        %v935 = vmul.f32 %v778, %v742
        %v936 = vmul.f32 %v778, %v743
        %v937 = vmul.f32 %v778, %v744
        %v938 = vmul.f32 %v778, %v745
        %v939 = vmul.f32 %v778, %v746
        %v940 = vmul.f32 %v778, %v747
        %v941 = vmul.f32 %v778, %v748
        %v942 = vmul.f32 %v778, %v749
        %v943 = vmul.f32 %v778, %v750
        %v944 = vmul.f32 %v778, %v751
        %v945 = vmul.f32 %v778, %v752
        %v946 = vmul.f32 %v778, %v753
        %v947 = vmul.f32 %v778, %v754
        %v948 = vmul.f32 %v778, %v755
        %v949 = vmul.f32 %v778, %v756
        %v950 = vmul.f32 %v778, %v757
        %v951 = vmul.f32 %v778, %v758
        %v952 = vmul.f32 %v778, %v759
        %v953 = vmul.f32 %v778, %v760
        %v954 = vmul.f32 %v778, %v761
        %v955 = vmul.f32 %v778, %v762
        %v956 = vmul.f32 %v778, %v763
        %v957 = vmul.f32 %v778, %v764
        %v958 = vmul.f32 %v778, %v765
        %v959 = vmul.f32 %v778, %v766
        %v960 = vmul.f32 %v778, %v767
        %v961 = vmul.f32 %v778, %v768
        %v962 = vmul.f32 %v778, %v769
        %v963 = vmul.f32 %v778, %v770
        %v964 = vmul.f32 %v778, %v771
        %v965 = vmul.f32 %v778, %v772
        %v966 = vmul.f32 %v778, %v773
        %v967 = vmul.f32 %v778, %v774
        %v968 = vmul.f32 %v778, %v775
        %v969 = vmul.f32 %v778, %v776
        %v970 = vmul.f32 %v778, %v777
        %s971 = sld [smem:[#allocation3 + $0x80]]
        %v972 = vld [vmem:[%s436] sm:$0x3]
        %v973 = vstv %s971
        %v974 = vmul.f32 %v973, %v972
        %s975 = sld [smem:[#allocation3 + $0x1]]
        %s976 = scalar_lea.vmem %s426, 768 [#allocation8]
        %v977 = vld [vmem:[%s976] sm:$0xff]
        %v978 = vld [vmem:[%s976 + $0x8] sm:$0xff]
        %v979 = vld [vmem:[%s976 + $0x10] sm:$0xff]
        %v980 = vld [vmem:[%s976 + $0x18] sm:$0xff]
        %v981 = vld [vmem:[%s976 + $0x20] sm:$0xff]
        %v982 = vld [vmem:[%s976 + $0x28] sm:$0xff]
        %v983 = vld [vmem:[%s976 + $0x30] sm:$0xff]
        %v984 = vld [vmem:[%s976 + $0x38] sm:$0xff]
        %v985 = vld [vmem:[%s976 + $0x40] sm:$0xff]
        %v986 = vld [vmem:[%s976 + $0x48] sm:$0xff]
        %v987 = vld [vmem:[%s976 + $0x50] sm:$0xff]
        %v988 = vld [vmem:[%s976 + $0x58] sm:$0xff]
        %v989 = vld [vmem:[%s976 + $0x60] sm:$0xff]
        %v990 = vld [vmem:[%s976 + $0x68] sm:$0xff]
        %v991 = vld [vmem:[%s976 + $0x70] sm:$0xff]
        %v992 = vld [vmem:[%s976 + $0x78] sm:$0xff]
        %v993 = vld [vmem:[%s976 + $0x80] sm:$0xff]
        %v994 = vld [vmem:[%s976 + $0x88] sm:$0xff]
        %v995 = vld [vmem:[%s976 + $0x90] sm:$0xff]
        %v996 = vld [vmem:[%s976 + $0x98] sm:$0xff]
        %v997 = vld [vmem:[%s976 + $0xa0] sm:$0xff]
        %v998 = vld [vmem:[%s976 + $0xa8] sm:$0xff]
        %v999 = vld [vmem:[%s976 + $0xb0] sm:$0xff]
        %v1000 = vld [vmem:[%s976 + $0xb8] sm:$0xff]
        %v1001 = vld [vmem:[%s976 + $0xc0] sm:$0xff]
        %v1002 = vld [vmem:[%s976 + $0xc8] sm:$0xff]
        %v1003 = vld [vmem:[%s976 + $0xd0] sm:$0xff]
        %v1004 = vld [vmem:[%s976 + $0xd8] sm:$0xff]
        %v1005 = vld [vmem:[%s976 + $0xe0] sm:$0xff]
        %v1006 = vld [vmem:[%s976 + $0xe8] sm:$0xff]
        %v1007 = vld [vmem:[%s976 + $0xf0] sm:$0xff]
        %v1008 = vld [vmem:[%s976 + $0xf8] sm:$0xff]
        %v1009 = vld [vmem:[%s976 + $0x100] sm:$0xff]
        %v1010 = vld [vmem:[%s976 + $0x108] sm:$0xff]
        %v1011 = vld [vmem:[%s976 + $0x110] sm:$0xff]
        %v1012 = vld [vmem:[%s976 + $0x118] sm:$0xff]
        %v1013 = vld [vmem:[%s976 + $0x120] sm:$0xff]
        %v1014 = vld [vmem:[%s976 + $0x128] sm:$0xff]
        %v1015 = vld [vmem:[%s976 + $0x130] sm:$0xff]
        %v1016 = vld [vmem:[%s976 + $0x138] sm:$0xff]
        %v1017 = vld [vmem:[%s976 + $0x140] sm:$0xff]
        %v1018 = vld [vmem:[%s976 + $0x148] sm:$0xff]
        %v1019 = vld [vmem:[%s976 + $0x150] sm:$0xff]
        %v1020 = vld [vmem:[%s976 + $0x158] sm:$0xff]
        %v1021 = vld [vmem:[%s976 + $0x160] sm:$0xff]
        %v1022 = vld [vmem:[%s976 + $0x168] sm:$0xff]
        %v1023 = vld [vmem:[%s976 + $0x170] sm:$0xff]
        %v1024 = vld [vmem:[%s976 + $0x178] sm:$0xff]
        %v1025 = vld [vmem:[%s976 + $0x180] sm:$0xff]
        %v1026 = vld [vmem:[%s976 + $0x188] sm:$0xff]
        %v1027 = vld [vmem:[%s976 + $0x190] sm:$0xff]
        %v1028 = vld [vmem:[%s976 + $0x198] sm:$0xff]
        %v1029 = vld [vmem:[%s976 + $0x1a0] sm:$0xff]
        %v1030 = vld [vmem:[%s976 + $0x1a8] sm:$0xff]
        %v1031 = vld [vmem:[%s976 + $0x1b0] sm:$0xff]
        %v1032 = vld [vmem:[%s976 + $0x1b8] sm:$0xff]
        %v1033 = vld [vmem:[%s976 + $0x1c0] sm:$0xff]
        %v1034 = vld [vmem:[%s976 + $0x1c8] sm:$0xff]
        %v1035 = vld [vmem:[%s976 + $0x1d0] sm:$0xff]
        %v1036 = vld [vmem:[%s976 + $0x1d8] sm:$0xff]
        %v1037 = vld [vmem:[%s976 + $0x1e0] sm:$0xff]
        %v1038 = vld [vmem:[%s976 + $0x1e8] sm:$0xff]
        %v1039 = vld [vmem:[%s976 + $0x1f0] sm:$0xff]
        %v1040 = vld [vmem:[%s976 + $0x1f8] sm:$0xff]
        %v1041 = vld [vmem:[%s976 + $0x200] sm:$0xff]
        %v1042 = vld [vmem:[%s976 + $0x208] sm:$0xff]
        %v1043 = vld [vmem:[%s976 + $0x210] sm:$0xff]
        %v1044 = vld [vmem:[%s976 + $0x218] sm:$0xff]
        %v1045 = vld [vmem:[%s976 + $0x220] sm:$0xff]
        %v1046 = vld [vmem:[%s976 + $0x228] sm:$0xff]
        %v1047 = vld [vmem:[%s976 + $0x230] sm:$0xff]
        %v1048 = vld [vmem:[%s976 + $0x238] sm:$0xff]
        %v1049 = vld [vmem:[%s976 + $0x240] sm:$0xff]
        %v1050 = vld [vmem:[%s976 + $0x248] sm:$0xff]
        %v1051 = vld [vmem:[%s976 + $0x250] sm:$0xff]
        %v1052 = vld [vmem:[%s976 + $0x258] sm:$0xff]
        %v1053 = vld [vmem:[%s976 + $0x260] sm:$0xff]
        %v1054 = vld [vmem:[%s976 + $0x268] sm:$0xff]
        %v1055 = vld [vmem:[%s976 + $0x270] sm:$0xff]
        %v1056 = vld [vmem:[%s976 + $0x278] sm:$0xff]
        %v1057 = vld [vmem:[%s976 + $0x280] sm:$0xff]
        %v1058 = vld [vmem:[%s976 + $0x288] sm:$0xff]
        %v1059 = vld [vmem:[%s976 + $0x290] sm:$0xff]
        %v1060 = vld [vmem:[%s976 + $0x298] sm:$0xff]
        %v1061 = vld [vmem:[%s976 + $0x2a0] sm:$0xff]
        %v1062 = vld [vmem:[%s976 + $0x2a8] sm:$0xff]
        %v1063 = vld [vmem:[%s976 + $0x2b0] sm:$0xff]
        %v1064 = vld [vmem:[%s976 + $0x2b8] sm:$0xff]
        %v1065 = vld [vmem:[%s976 + $0x2c0] sm:$0xff]
        %v1066 = vld [vmem:[%s976 + $0x2c8] sm:$0xff]
        %v1067 = vld [vmem:[%s976 + $0x2d0] sm:$0xff]
        %v1068 = vld [vmem:[%s976 + $0x2d8] sm:$0xff]
        %v1069 = vld [vmem:[%s976 + $0x2e0] sm:$0xff]
        %v1070 = vld [vmem:[%s976 + $0x2e8] sm:$0xff]
        %v1071 = vld [vmem:[%s976 + $0x2f0] sm:$0xff]
        %v1072 = vld [vmem:[%s976 + $0x2f8] sm:$0xff]
        %v1073 = vunpack.c.l.bf16 %v977
        %v1074 = vunpack.c.h.bf16 %v977
        %v1075 = vunpack.c.l.bf16 %v978
        %v1076 = vunpack.c.h.bf16 %v978
        %v1077 = vunpack.c.l.bf16 %v979
        %v1078 = vunpack.c.h.bf16 %v979
        %v1079 = vunpack.c.l.bf16 %v980
        %v1080 = vunpack.c.h.bf16 %v980
        %v1081 = vunpack.c.l.bf16 %v981
        %v1082 = vunpack.c.h.bf16 %v981
        %v1083 = vunpack.c.l.bf16 %v982
        %v1084 = vunpack.c.h.bf16 %v982
        %v1085 = vunpack.c.l.bf16 %v983
        %v1086 = vunpack.c.h.bf16 %v983
        %v1087 = vunpack.c.l.bf16 %v984
        %v1088 = vunpack.c.h.bf16 %v984
        %v1089 = vunpack.c.l.bf16 %v985
        %v1090 = vunpack.c.h.bf16 %v985
        %v1091 = vunpack.c.l.bf16 %v986
        %v1092 = vunpack.c.h.bf16 %v986
        %v1093 = vunpack.c.l.bf16 %v987
        %v1094 = vunpack.c.h.bf16 %v987
        %v1095 = vunpack.c.l.bf16 %v988
        %v1096 = vunpack.c.h.bf16 %v988
        %v1097 = vunpack.c.l.bf16 %v989
        %v1098 = vunpack.c.h.bf16 %v989
        %v1099 = vunpack.c.l.bf16 %v990
        %v1100 = vunpack.c.h.bf16 %v990
        %v1101 = vunpack.c.l.bf16 %v991
        %v1102 = vunpack.c.h.bf16 %v991
        %v1103 = vunpack.c.l.bf16 %v992
        %v1104 = vunpack.c.h.bf16 %v992
        %v1105 = vunpack.c.l.bf16 %v993
        %v1106 = vunpack.c.h.bf16 %v993
        %v1107 = vunpack.c.l.bf16 %v994
        %v1108 = vunpack.c.h.bf16 %v994
        %v1109 = vunpack.c.l.bf16 %v995
        %v1110 = vunpack.c.h.bf16 %v995
        %v1111 = vunpack.c.l.bf16 %v996
        %v1112 = vunpack.c.h.bf16 %v996
        %v1113 = vunpack.c.l.bf16 %v997
        %v1114 = vunpack.c.h.bf16 %v997
        %v1115 = vunpack.c.l.bf16 %v998
        %v1116 = vunpack.c.h.bf16 %v998
        %v1117 = vunpack.c.l.bf16 %v999
        %v1118 = vunpack.c.h.bf16 %v999
        %v1119 = vunpack.c.l.bf16 %v1000
        %v1120 = vunpack.c.h.bf16 %v1000
        %v1121 = vunpack.c.l.bf16 %v1001
        %v1122 = vunpack.c.h.bf16 %v1001
        %v1123 = vunpack.c.l.bf16 %v1002
        %v1124 = vunpack.c.h.bf16 %v1002
        %v1125 = vunpack.c.l.bf16 %v1003
        %v1126 = vunpack.c.h.bf16 %v1003
        %v1127 = vunpack.c.l.bf16 %v1004
        %v1128 = vunpack.c.h.bf16 %v1004
        %v1129 = vunpack.c.l.bf16 %v1005
        %v1130 = vunpack.c.h.bf16 %v1005
        %v1131 = vunpack.c.l.bf16 %v1006
        %v1132 = vunpack.c.h.bf16 %v1006
        %v1133 = vunpack.c.l.bf16 %v1007
        %v1134 = vunpack.c.h.bf16 %v1007
        %v1135 = vunpack.c.l.bf16 %v1008
        %v1136 = vunpack.c.h.bf16 %v1008
        %v1137 = vunpack.c.l.bf16 %v1009
        %v1138 = vunpack.c.h.bf16 %v1009
        %v1139 = vunpack.c.l.bf16 %v1010
        %v1140 = vunpack.c.h.bf16 %v1010
        %v1141 = vunpack.c.l.bf16 %v1011
        %v1142 = vunpack.c.h.bf16 %v1011
        %v1143 = vunpack.c.l.bf16 %v1012
        %v1144 = vunpack.c.h.bf16 %v1012
        %v1145 = vunpack.c.l.bf16 %v1013
        %v1146 = vunpack.c.h.bf16 %v1013
        %v1147 = vunpack.c.l.bf16 %v1014
        %v1148 = vunpack.c.h.bf16 %v1014
        %v1149 = vunpack.c.l.bf16 %v1015
        %v1150 = vunpack.c.h.bf16 %v1015
        %v1151 = vunpack.c.l.bf16 %v1016
        %v1152 = vunpack.c.h.bf16 %v1016
        %v1153 = vunpack.c.l.bf16 %v1017
        %v1154 = vunpack.c.h.bf16 %v1017
        %v1155 = vunpack.c.l.bf16 %v1018
        %v1156 = vunpack.c.h.bf16 %v1018
        %v1157 = vunpack.c.l.bf16 %v1019
        %v1158 = vunpack.c.h.bf16 %v1019
        %v1159 = vunpack.c.l.bf16 %v1020
        %v1160 = vunpack.c.h.bf16 %v1020
        %v1161 = vunpack.c.l.bf16 %v1021
        %v1162 = vunpack.c.h.bf16 %v1021
        %v1163 = vunpack.c.l.bf16 %v1022
        %v1164 = vunpack.c.h.bf16 %v1022
        %v1165 = vunpack.c.l.bf16 %v1023
        %v1166 = vunpack.c.h.bf16 %v1023
        %v1167 = vunpack.c.l.bf16 %v1024
        %v1168 = vunpack.c.h.bf16 %v1024
        %v1169 = vunpack.c.l.bf16 %v1025
        %v1170 = vunpack.c.h.bf16 %v1025
        %v1171 = vunpack.c.l.bf16 %v1026
        %v1172 = vunpack.c.h.bf16 %v1026
        %v1173 = vunpack.c.l.bf16 %v1027
        %v1174 = vunpack.c.h.bf16 %v1027
        %v1175 = vunpack.c.l.bf16 %v1028
        %v1176 = vunpack.c.h.bf16 %v1028
        %v1177 = vunpack.c.l.bf16 %v1029
        %v1178 = vunpack.c.h.bf16 %v1029
        %v1179 = vunpack.c.l.bf16 %v1030
        %v1180 = vunpack.c.h.bf16 %v1030
        %v1181 = vunpack.c.l.bf16 %v1031
        %v1182 = vunpack.c.h.bf16 %v1031
        %v1183 = vunpack.c.l.bf16 %v1032
        %v1184 = vunpack.c.h.bf16 %v1032
        %v1185 = vunpack.c.l.bf16 %v1033
        %v1186 = vunpack.c.h.bf16 %v1033
        %v1187 = vunpack.c.l.bf16 %v1034
        %v1188 = vunpack.c.h.bf16 %v1034
        %v1189 = vunpack.c.l.bf16 %v1035
        %v1190 = vunpack.c.h.bf16 %v1035
        %v1191 = vunpack.c.l.bf16 %v1036
        %v1192 = vunpack.c.h.bf16 %v1036
        %v1193 = vunpack.c.l.bf16 %v1037
        %v1194 = vunpack.c.h.bf16 %v1037
        %v1195 = vunpack.c.l.bf16 %v1038
        %v1196 = vunpack.c.h.bf16 %v1038
        %v1197 = vunpack.c.l.bf16 %v1039
        %v1198 = vunpack.c.h.bf16 %v1039
        %v1199 = vunpack.c.l.bf16 %v1040
        %v1200 = vunpack.c.h.bf16 %v1040
        %v1201 = vunpack.c.l.bf16 %v1041
        %v1202 = vunpack.c.h.bf16 %v1041
        %v1203 = vunpack.c.l.bf16 %v1042
        %v1204 = vunpack.c.h.bf16 %v1042
        %v1205 = vunpack.c.l.bf16 %v1043
        %v1206 = vunpack.c.h.bf16 %v1043
        %v1207 = vunpack.c.l.bf16 %v1044
        %v1208 = vunpack.c.h.bf16 %v1044
        %v1209 = vunpack.c.l.bf16 %v1045
        %v1210 = vunpack.c.h.bf16 %v1045
        %v1211 = vunpack.c.l.bf16 %v1046
        %v1212 = vunpack.c.h.bf16 %v1046
        %v1213 = vunpack.c.l.bf16 %v1047
        %v1214 = vunpack.c.h.bf16 %v1047
        %v1215 = vunpack.c.l.bf16 %v1048
        %v1216 = vunpack.c.h.bf16 %v1048
        %v1217 = vunpack.c.l.bf16 %v1049
        %v1218 = vunpack.c.h.bf16 %v1049
        %v1219 = vunpack.c.l.bf16 %v1050
        %v1220 = vunpack.c.h.bf16 %v1050
        %v1221 = vunpack.c.l.bf16 %v1051
        %v1222 = vunpack.c.h.bf16 %v1051
        %v1223 = vunpack.c.l.bf16 %v1052
        %v1224 = vunpack.c.h.bf16 %v1052
        %v1225 = vunpack.c.l.bf16 %v1053
        %v1226 = vunpack.c.h.bf16 %v1053
        %v1227 = vunpack.c.l.bf16 %v1054
        %v1228 = vunpack.c.h.bf16 %v1054
        %v1229 = vunpack.c.l.bf16 %v1055
        %v1230 = vunpack.c.h.bf16 %v1055
        %v1231 = vunpack.c.l.bf16 %v1056
        %v1232 = vunpack.c.h.bf16 %v1056
        %v1233 = vunpack.c.l.bf16 %v1057
        %v1234 = vunpack.c.h.bf16 %v1057
        %v1235 = vunpack.c.l.bf16 %v1058
        %v1236 = vunpack.c.h.bf16 %v1058
        %v1237 = vunpack.c.l.bf16 %v1059
        %v1238 = vunpack.c.h.bf16 %v1059
        %v1239 = vunpack.c.l.bf16 %v1060
        %v1240 = vunpack.c.h.bf16 %v1060
        %v1241 = vunpack.c.l.bf16 %v1061
        %v1242 = vunpack.c.h.bf16 %v1061
        %v1243 = vunpack.c.l.bf16 %v1062
        %v1244 = vunpack.c.h.bf16 %v1062
        %v1245 = vunpack.c.l.bf16 %v1063
        %v1246 = vunpack.c.h.bf16 %v1063
        %v1247 = vunpack.c.l.bf16 %v1064
        %v1248 = vunpack.c.h.bf16 %v1064
        %v1249 = vunpack.c.l.bf16 %v1065
        %v1250 = vunpack.c.h.bf16 %v1065
        %v1251 = vunpack.c.l.bf16 %v1066
        %v1252 = vunpack.c.h.bf16 %v1066
        %v1253 = vunpack.c.l.bf16 %v1067
        %v1254 = vunpack.c.h.bf16 %v1067
        %v1255 = vunpack.c.l.bf16 %v1068
        %v1256 = vunpack.c.h.bf16 %v1068
        %v1257 = vunpack.c.l.bf16 %v1069
        %v1258 = vunpack.c.h.bf16 %v1069
        %v1259 = vunpack.c.l.bf16 %v1070
        %v1260 = vunpack.c.h.bf16 %v1070
        %v1261 = vunpack.c.l.bf16 %v1071
        %v1262 = vunpack.c.h.bf16 %v1071
        %v1263 = vunpack.c.l.bf16 %v1072
        %v1264 = vunpack.c.h.bf16 %v1072
        %v1265 = vstv %s975
        %v1266 = vmul.f32 %v1265, %v1073
        %v1267 = vmul.f32 %v1265, %v1074
        %v1268 = vmul.f32 %v1265, %v1075
        %v1269 = vmul.f32 %v1265, %v1076
        %v1270 = vmul.f32 %v1265, %v1077
        %v1271 = vmul.f32 %v1265, %v1078
        %v1272 = vmul.f32 %v1265, %v1079
        %v1273 = vmul.f32 %v1265, %v1080
        %v1274 = vmul.f32 %v1265, %v1081
        %v1275 = vmul.f32 %v1265, %v1082
        %v1276 = vmul.f32 %v1265, %v1083
        %v1277 = vmul.f32 %v1265, %v1084
        %v1278 = vmul.f32 %v1265, %v1085
        %v1279 = vmul.f32 %v1265, %v1086
        %v1280 = vmul.f32 %v1265, %v1087
        %v1281 = vmul.f32 %v1265, %v1088
        %v1282 = vmul.f32 %v1265, %v1089
        %v1283 = vmul.f32 %v1265, %v1090
        %v1284 = vmul.f32 %v1265, %v1091
        %v1285 = vmul.f32 %v1265, %v1092
        %v1286 = vmul.f32 %v1265, %v1093
        %v1287 = vmul.f32 %v1265, %v1094
        %v1288 = vmul.f32 %v1265, %v1095
        %v1289 = vmul.f32 %v1265, %v1096
        %v1290 = vmul.f32 %v1265, %v1097
        %v1291 = vmul.f32 %v1265, %v1098
        %v1292 = vmul.f32 %v1265, %v1099
        %v1293 = vmul.f32 %v1265, %v1100
        %v1294 = vmul.f32 %v1265, %v1101
        %v1295 = vmul.f32 %v1265, %v1102
        %v1296 = vmul.f32 %v1265, %v1103
        %v1297 = vmul.f32 %v1265, %v1104
        %v1298 = vmul.f32 %v1265, %v1105
        %v1299 = vmul.f32 %v1265, %v1106
        %v1300 = vmul.f32 %v1265, %v1107
        %v1301 = vmul.f32 %v1265, %v1108
        %v1302 = vmul.f32 %v1265, %v1109
        %v1303 = vmul.f32 %v1265, %v1110
        %v1304 = vmul.f32 %v1265, %v1111
        %v1305 = vmul.f32 %v1265, %v1112
        %v1306 = vmul.f32 %v1265, %v1113
        %v1307 = vmul.f32 %v1265, %v1114
        %v1308 = vmul.f32 %v1265, %v1115
        %v1309 = vmul.f32 %v1265, %v1116
        %v1310 = vmul.f32 %v1265, %v1117
        %v1311 = vmul.f32 %v1265, %v1118
        %v1312 = vmul.f32 %v1265, %v1119
        %v1313 = vmul.f32 %v1265, %v1120
        %v1314 = vmul.f32 %v1265, %v1121
        %v1315 = vmul.f32 %v1265, %v1122
        %v1316 = vmul.f32 %v1265, %v1123
        %v1317 = vmul.f32 %v1265, %v1124
        %v1318 = vmul.f32 %v1265, %v1125
        %v1319 = vmul.f32 %v1265, %v1126
        %v1320 = vmul.f32 %v1265, %v1127
        %v1321 = vmul.f32 %v1265, %v1128
        %v1322 = vmul.f32 %v1265, %v1129
        %v1323 = vmul.f32 %v1265, %v1130
        %v1324 = vmul.f32 %v1265, %v1131
        %v1325 = vmul.f32 %v1265, %v1132
        %v1326 = vmul.f32 %v1265, %v1133
        %v1327 = vmul.f32 %v1265, %v1134
        %v1328 = vmul.f32 %v1265, %v1135
        %v1329 = vmul.f32 %v1265, %v1136
        %v1330 = vmul.f32 %v1265, %v1137
        %v1331 = vmul.f32 %v1265, %v1138
        %v1332 = vmul.f32 %v1265, %v1139
        %v1333 = vmul.f32 %v1265, %v1140
        %v1334 = vmul.f32 %v1265, %v1141
        %v1335 = vmul.f32 %v1265, %v1142
        %v1336 = vmul.f32 %v1265, %v1143
        %v1337 = vmul.f32 %v1265, %v1144
        %v1338 = vmul.f32 %v1265, %v1145
        %v1339 = vmul.f32 %v1265, %v1146
        %v1340 = vmul.f32 %v1265, %v1147
        %v1341 = vmul.f32 %v1265, %v1148
        %v1342 = vmul.f32 %v1265, %v1149
        %v1343 = vmul.f32 %v1265, %v1150
        %v1344 = vmul.f32 %v1265, %v1151
        %v1345 = vmul.f32 %v1265, %v1152
        %v1346 = vmul.f32 %v1265, %v1153
        %v1347 = vmul.f32 %v1265, %v1154
        %v1348 = vmul.f32 %v1265, %v1155
        %v1349 = vmul.f32 %v1265, %v1156
        %v1350 = vmul.f32 %v1265, %v1157
        %v1351 = vmul.f32 %v1265, %v1158
        %v1352 = vmul.f32 %v1265, %v1159
        %v1353 = vmul.f32 %v1265, %v1160
        %v1354 = vmul.f32 %v1265, %v1161
        %v1355 = vmul.f32 %v1265, %v1162
        %v1356 = vmul.f32 %v1265, %v1163
        %v1357 = vmul.f32 %v1265, %v1164
        %v1358 = vmul.f32 %v1265, %v1165
        %v1359 = vmul.f32 %v1265, %v1166
        %v1360 = vmul.f32 %v1265, %v1167
        %v1361 = vmul.f32 %v1265, %v1168
        %v1362 = vmul.f32 %v1265, %v1169
        %v1363 = vmul.f32 %v1265, %v1170
        %v1364 = vmul.f32 %v1265, %v1171
        %v1365 = vmul.f32 %v1265, %v1172
        %v1366 = vmul.f32 %v1265, %v1173
        %v1367 = vmul.f32 %v1265, %v1174
        %v1368 = vmul.f32 %v1265, %v1175
        %v1369 = vmul.f32 %v1265, %v1176
        %v1370 = vmul.f32 %v1265, %v1177
        %v1371 = vmul.f32 %v1265, %v1178
        %v1372 = vmul.f32 %v1265, %v1179
        %v1373 = vmul.f32 %v1265, %v1180
        %v1374 = vmul.f32 %v1265, %v1181
        %v1375 = vmul.f32 %v1265, %v1182
        %v1376 = vmul.f32 %v1265, %v1183
        %v1377 = vmul.f32 %v1265, %v1184
        %v1378 = vmul.f32 %v1265, %v1185
        %v1379 = vmul.f32 %v1265, %v1186
        %v1380 = vmul.f32 %v1265, %v1187
        %v1381 = vmul.f32 %v1265, %v1188
        %v1382 = vmul.f32 %v1265, %v1189
        %v1383 = vmul.f32 %v1265, %v1190
        %v1384 = vmul.f32 %v1265, %v1191
        %v1385 = vmul.f32 %v1265, %v1192
        %v1386 = vmul.f32 %v1265, %v1193
        %v1387 = vmul.f32 %v1265, %v1194
        %v1388 = vmul.f32 %v1265, %v1195
        %v1389 = vmul.f32 %v1265, %v1196
        %v1390 = vmul.f32 %v1265, %v1197
        %v1391 = vmul.f32 %v1265, %v1198
        %v1392 = vmul.f32 %v1265, %v1199
        %v1393 = vmul.f32 %v1265, %v1200
        %v1394 = vmul.f32 %v1265, %v1201
        %v1395 = vmul.f32 %v1265, %v1202
        %v1396 = vmul.f32 %v1265, %v1203
        %v1397 = vmul.f32 %v1265, %v1204
        %v1398 = vmul.f32 %v1265, %v1205
        %v1399 = vmul.f32 %v1265, %v1206
        %v1400 = vmul.f32 %v1265, %v1207
        %v1401 = vmul.f32 %v1265, %v1208
        %v1402 = vmul.f32 %v1265, %v1209
        %v1403 = vmul.f32 %v1265, %v1210
        %v1404 = vmul.f32 %v1265, %v1211
        %v1405 = vmul.f32 %v1265, %v1212
        %v1406 = vmul.f32 %v1265, %v1213
        %v1407 = vmul.f32 %v1265, %v1214
        %v1408 = vmul.f32 %v1265, %v1215
        %v1409 = vmul.f32 %v1265, %v1216
        %v1410 = vmul.f32 %v1265, %v1217
        %v1411 = vmul.f32 %v1265, %v1218
        %v1412 = vmul.f32 %v1265, %v1219
        %v1413 = vmul.f32 %v1265, %v1220
        %v1414 = vmul.f32 %v1265, %v1221
        %v1415 = vmul.f32 %v1265, %v1222
        %v1416 = vmul.f32 %v1265, %v1223
        %v1417 = vmul.f32 %v1265, %v1224
        %v1418 = vmul.f32 %v1265, %v1225
        %v1419 = vmul.f32 %v1265, %v1226
        %v1420 = vmul.f32 %v1265, %v1227
        %v1421 = vmul.f32 %v1265, %v1228
        %v1422 = vmul.f32 %v1265, %v1229
        %v1423 = vmul.f32 %v1265, %v1230
        %v1424 = vmul.f32 %v1265, %v1231
        %v1425 = vmul.f32 %v1265, %v1232
        %v1426 = vmul.f32 %v1265, %v1233
        %v1427 = vmul.f32 %v1265, %v1234
        %v1428 = vmul.f32 %v1265, %v1235
        %v1429 = vmul.f32 %v1265, %v1236
        %v1430 = vmul.f32 %v1265, %v1237
        %v1431 = vmul.f32 %v1265, %v1238
        %v1432 = vmul.f32 %v1265, %v1239
        %v1433 = vmul.f32 %v1265, %v1240
        %v1434 = vmul.f32 %v1265, %v1241
        %v1435 = vmul.f32 %v1265, %v1242
        %v1436 = vmul.f32 %v1265, %v1243
        %v1437 = vmul.f32 %v1265, %v1244
        %v1438 = vmul.f32 %v1265, %v1245
        %v1439 = vmul.f32 %v1265, %v1246
        %v1440 = vmul.f32 %v1265, %v1247
        %v1441 = vmul.f32 %v1265, %v1248
        %v1442 = vmul.f32 %v1265, %v1249
        %v1443 = vmul.f32 %v1265, %v1250
        %v1444 = vmul.f32 %v1265, %v1251
        %v1445 = vmul.f32 %v1265, %v1252
        %v1446 = vmul.f32 %v1265, %v1253
        %v1447 = vmul.f32 %v1265, %v1254
        %v1448 = vmul.f32 %v1265, %v1255
        %v1449 = vmul.f32 %v1265, %v1256
        %v1450 = vmul.f32 %v1265, %v1257
        %v1451 = vmul.f32 %v1265, %v1258
        %v1452 = vmul.f32 %v1265, %v1259
        %v1453 = vmul.f32 %v1265, %v1260
        %v1454 = vmul.f32 %v1265, %v1261
        %v1455 = vmul.f32 %v1265, %v1262
        %v1456 = vmul.f32 %v1265, %v1263
        %v1457 = vmul.f32 %v1265, %v1264
        %v1458 = vadd.f32 %v779, %v1266
        %v1459 = vadd.f32 %v780, %v1267
        %v1460 = vadd.f32 %v781, %v1268
        %v1461 = vadd.f32 %v782, %v1269
        %v1462 = vadd.f32 %v783, %v1270
        %v1463 = vadd.f32 %v784, %v1271
        %v1464 = vadd.f32 %v785, %v1272
        %v1465 = vadd.f32 %v786, %v1273
        %v1466 = vadd.f32 %v787, %v1274
        %v1467 = vadd.f32 %v788, %v1275
        %v1468 = vadd.f32 %v789, %v1276
        %v1469 = vadd.f32 %v790, %v1277
        %v1470 = vadd.f32 %v791, %v1278
        %v1471 = vadd.f32 %v792, %v1279
        %v1472 = vadd.f32 %v793, %v1280
        %v1473 = vadd.f32 %v794, %v1281
        %v1474 = vadd.f32 %v795, %v1282
        %v1475 = vadd.f32 %v796, %v1283
        %v1476 = vadd.f32 %v797, %v1284
        %v1477 = vadd.f32 %v798, %v1285
        %v1478 = vadd.f32 %v799, %v1286
        %v1479 = vadd.f32 %v800, %v1287
        %v1480 = vadd.f32 %v801, %v1288
        %v1481 = vadd.f32 %v802, %v1289
        %v1482 = vadd.f32 %v803, %v1290
        %v1483 = vadd.f32 %v804, %v1291
        %v1484 = vadd.f32 %v805, %v1292
        %v1485 = vadd.f32 %v806, %v1293
        %v1486 = vadd.f32 %v807, %v1294
        %v1487 = vadd.f32 %v808, %v1295
        %v1488 = vadd.f32 %v809, %v1296
        %v1489 = vadd.f32 %v810, %v1297
        %v1490 = vadd.f32 %v811, %v1298
        %v1491 = vadd.f32 %v812, %v1299
        %v1492 = vadd.f32 %v813, %v1300
        %v1493 = vadd.f32 %v814, %v1301
        %v1494 = vadd.f32 %v815, %v1302
        %v1495 = vadd.f32 %v816, %v1303
        %v1496 = vadd.f32 %v817, %v1304
        %v1497 = vadd.f32 %v818, %v1305
        %v1498 = vadd.f32 %v819, %v1306
        %v1499 = vadd.f32 %v820, %v1307
        %v1500 = vadd.f32 %v821, %v1308
        %v1501 = vadd.f32 %v822, %v1309
        %v1502 = vadd.f32 %v823, %v1310
        %v1503 = vadd.f32 %v824, %v1311
        %v1504 = vadd.f32 %v825, %v1312
        %v1505 = vadd.f32 %v826, %v1313
        %v1506 = vadd.f32 %v827, %v1314
        %v1507 = vadd.f32 %v828, %v1315
        %v1508 = vadd.f32 %v829, %v1316
        %v1509 = vadd.f32 %v830, %v1317
        %v1510 = vadd.f32 %v831, %v1318
        %v1511 = vadd.f32 %v832, %v1319
        %v1512 = vadd.f32 %v833, %v1320
        %v1513 = vadd.f32 %v834, %v1321
        %v1514 = vadd.f32 %v835, %v1322
        %v1515 = vadd.f32 %v836, %v1323
        %v1516 = vadd.f32 %v837, %v1324
        %v1517 = vadd.f32 %v838, %v1325
        %v1518 = vadd.f32 %v839, %v1326
        %v1519 = vadd.f32 %v840, %v1327
        %v1520 = vadd.f32 %v841, %v1328
        %v1521 = vadd.f32 %v842, %v1329
        %v1522 = vadd.f32 %v843, %v1330
        %v1523 = vadd.f32 %v844, %v1331
        %v1524 = vadd.f32 %v845, %v1332
        %v1525 = vadd.f32 %v846, %v1333
        %v1526 = vadd.f32 %v847, %v1334
        %v1527 = vadd.f32 %v848, %v1335
        %v1528 = vadd.f32 %v849, %v1336
        %v1529 = vadd.f32 %v850, %v1337
        %v1530 = vadd.f32 %v851, %v1338
        %v1531 = vadd.f32 %v852, %v1339
        %v1532 = vadd.f32 %v853, %v1340
        %v1533 = vadd.f32 %v854, %v1341
        %v1534 = vadd.f32 %v855, %v1342
        %v1535 = vadd.f32 %v856, %v1343
        %v1536 = vadd.f32 %v857, %v1344
        %v1537 = vadd.f32 %v858, %v1345
        %v1538 = vadd.f32 %v859, %v1346
        %v1539 = vadd.f32 %v860, %v1347
        %v1540 = vadd.f32 %v861, %v1348
        %v1541 = vadd.f32 %v862, %v1349
        %v1542 = vadd.f32 %v863, %v1350
        %v1543 = vadd.f32 %v864, %v1351
        %v1544 = vadd.f32 %v865, %v1352
        %v1545 = vadd.f32 %v866, %v1353
        %v1546 = vadd.f32 %v867, %v1354
        %v1547 = vadd.f32 %v868, %v1355
        %v1548 = vadd.f32 %v869, %v1356
        %v1549 = vadd.f32 %v870, %v1357
        %v1550 = vadd.f32 %v871, %v1358
        %v1551 = vadd.f32 %v872, %v1359
        %v1552 = vadd.f32 %v873, %v1360
        %v1553 = vadd.f32 %v874, %v1361
        %v1554 = vadd.f32 %v875, %v1362
        %v1555 = vadd.f32 %v876, %v1363
        %v1556 = vadd.f32 %v877, %v1364
        %v1557 = vadd.f32 %v878, %v1365
        %v1558 = vadd.f32 %v879, %v1366
        %v1559 = vadd.f32 %v880, %v1367
        %v1560 = vadd.f32 %v881, %v1368
        %v1561 = vadd.f32 %v882, %v1369
        %v1562 = vadd.f32 %v883, %v1370
        %v1563 = vadd.f32 %v884, %v1371
        %v1564 = vadd.f32 %v885, %v1372
        %v1565 = vadd.f32 %v886, %v1373
        %v1566 = vadd.f32 %v887, %v1374
        %v1567 = vadd.f32 %v888, %v1375
        %v1568 = vadd.f32 %v889, %v1376
        %v1569 = vadd.f32 %v890, %v1377
        %v1570 = vadd.f32 %v891, %v1378
        %v1571 = vadd.f32 %v892, %v1379
        %v1572 = vadd.f32 %v893, %v1380
        %v1573 = vadd.f32 %v894, %v1381
        %v1574 = vadd.f32 %v895, %v1382
        %v1575 = vadd.f32 %v896, %v1383
        %v1576 = vadd.f32 %v897, %v1384
        %v1577 = vadd.f32 %v898, %v1385
        %v1578 = vadd.f32 %v899, %v1386
        %v1579 = vadd.f32 %v900, %v1387
        %v1580 = vadd.f32 %v901, %v1388
        %v1581 = vadd.f32 %v902, %v1389
        %v1582 = vadd.f32 %v903, %v1390
        %v1583 = vadd.f32 %v904, %v1391
        %v1584 = vadd.f32 %v905, %v1392
        %v1585 = vadd.f32 %v906, %v1393
        %v1586 = vadd.f32 %v907, %v1394
        %v1587 = vadd.f32 %v908, %v1395
        %v1588 = vadd.f32 %v909, %v1396
        %v1589 = vadd.f32 %v910, %v1397
        %v1590 = vadd.f32 %v911, %v1398
        %v1591 = vadd.f32 %v912, %v1399
        %v1592 = vadd.f32 %v913, %v1400
        %v1593 = vadd.f32 %v914, %v1401
        %v1594 = vadd.f32 %v915, %v1402
        %v1595 = vadd.f32 %v916, %v1403
        %v1596 = vadd.f32 %v917, %v1404
        %v1597 = vadd.f32 %v918, %v1405
        %v1598 = vadd.f32 %v919, %v1406
        %v1599 = vadd.f32 %v920, %v1407
        %v1600 = vadd.f32 %v921, %v1408
        %v1601 = vadd.f32 %v922, %v1409
        %v1602 = vadd.f32 %v923, %v1410
        %v1603 = vadd.f32 %v924, %v1411
        %v1604 = vadd.f32 %v925, %v1412
        %v1605 = vadd.f32 %v926, %v1413
        %v1606 = vadd.f32 %v927, %v1414
        %v1607 = vadd.f32 %v928, %v1415
        %v1608 = vadd.f32 %v929, %v1416
        %v1609 = vadd.f32 %v930, %v1417
        %v1610 = vadd.f32 %v931, %v1418
        %v1611 = vadd.f32 %v932, %v1419
        %v1612 = vadd.f32 %v933, %v1420
        %v1613 = vadd.f32 %v934, %v1421
        %v1614 = vadd.f32 %v935, %v1422
        %v1615 = vadd.f32 %v936, %v1423
        %v1616 = vadd.f32 %v937, %v1424
        %v1617 = vadd.f32 %v938, %v1425
        %v1618 = vadd.f32 %v939, %v1426
        %v1619 = vadd.f32 %v940, %v1427
        %v1620 = vadd.f32 %v941, %v1428
        %v1621 = vadd.f32 %v942, %v1429
        %v1622 = vadd.f32 %v943, %v1430
        %v1623 = vadd.f32 %v944, %v1431
        %v1624 = vadd.f32 %v945, %v1432
        %v1625 = vadd.f32 %v946, %v1433
        %v1626 = vadd.f32 %v947, %v1434
        %v1627 = vadd.f32 %v948, %v1435
        %v1628 = vadd.f32 %v949, %v1436
        %v1629 = vadd.f32 %v950, %v1437
        %v1630 = vadd.f32 %v951, %v1438
        %v1631 = vadd.f32 %v952, %v1439
        %v1632 = vadd.f32 %v953, %v1440
        %v1633 = vadd.f32 %v954, %v1441
        %v1634 = vadd.f32 %v955, %v1442
        %v1635 = vadd.f32 %v956, %v1443
        %v1636 = vadd.f32 %v957, %v1444
        %v1637 = vadd.f32 %v958, %v1445
        %v1638 = vadd.f32 %v959, %v1446
        %v1639 = vadd.f32 %v960, %v1447
        %v1640 = vadd.f32 %v961, %v1448
        %v1641 = vadd.f32 %v962, %v1449
        %v1642 = vadd.f32 %v963, %v1450
        %v1643 = vadd.f32 %v964, %v1451
        %v1644 = vadd.f32 %v965, %v1452
        %v1645 = vadd.f32 %v966, %v1453
        %v1646 = vadd.f32 %v967, %v1454
        %v1647 = vadd.f32 %v968, %v1455
        %v1648 = vadd.f32 %v969, %v1456
        %v1649 = vadd.f32 %v970, %v1457
        %s1650 = sld [smem:[#allocation3 + $0x81]]
        %s1651 = scalar_lea.vmem %s436, 2 [#allocation10]
        %v1652 = vld [vmem:[%s1651] sm:$0x3]
        %v1653 = vstv %s1650
        %v1654 = vmul.f32 %v1653, %v1652
        %v1655 = vadd.f32 %v974, %v1654
        %s1656 = sld [smem:[#allocation3 + $0x2]]
        %s1657 = scalar_lea.vmem %s426, 1536 [#allocation8]
        %v1658 = vld [vmem:[%s1657] sm:$0xff]
        %v1659 = vld [vmem:[%s1657 + $0x8] sm:$0xff]
        %v1660 = vld [vmem:[%s1657 + $0x10] sm:$0xff]
        %v1661 = vld [vmem:[%s1657 + $0x18] sm:$0xff]
        %v1662 = vld [vmem:[%s1657 + $0x20] sm:$0xff]
        %v1663 = vld [vmem:[%s1657 + $0x28] sm:$0xff]
        %v1664 = vld [vmem:[%s1657 + $0x30] sm:$0xff]
        %v1665 = vld [vmem:[%s1657 + $0x38] sm:$0xff]
        %v1666 = vld [vmem:[%s1657 + $0x40] sm:$0xff]
        %v1667 = vld [vmem:[%s1657 + $0x48] sm:$0xff]
        %v1668 = vld [vmem:[%s1657 + $0x50] sm:$0xff]
        %v1669 = vld [vmem:[%s1657 + $0x58] sm:$0xff]
        %v1670 = vld [vmem:[%s1657 + $0x60] sm:$0xff]
        %v1671 = vld [vmem:[%s1657 + $0x68] sm:$0xff]
        %v1672 = vld [vmem:[%s1657 + $0x70] sm:$0xff]
        %v1673 = vld [vmem:[%s1657 + $0x78] sm:$0xff]
        %v1674 = vld [vmem:[%s1657 + $0x80] sm:$0xff]
        %v1675 = vld [vmem:[%s1657 + $0x88] sm:$0xff]
        %v1676 = vld [vmem:[%s1657 + $0x90] sm:$0xff]
        %v1677 = vld [vmem:[%s1657 + $0x98] sm:$0xff]
        %v1678 = vld [vmem:[%s1657 + $0xa0] sm:$0xff]
        %v1679 = vld [vmem:[%s1657 + $0xa8] sm:$0xff]
        %v1680 = vld [vmem:[%s1657 + $0xb0] sm:$0xff]
        %v1681 = vld [vmem:[%s1657 + $0xb8] sm:$0xff]
        %v1682 = vld [vmem:[%s1657 + $0xc0] sm:$0xff]
        %v1683 = vld [vmem:[%s1657 + $0xc8] sm:$0xff]
        %v1684 = vld [vmem:[%s1657 + $0xd0] sm:$0xff]
        %v1685 = vld [vmem:[%s1657 + $0xd8] sm:$0xff]
        %v1686 = vld [vmem:[%s1657 + $0xe0] sm:$0xff]
        %v1687 = vld [vmem:[%s1657 + $0xe8] sm:$0xff]
        %v1688 = vld [vmem:[%s1657 + $0xf0] sm:$0xff]
        %v1689 = vld [vmem:[%s1657 + $0xf8] sm:$0xff]
        %v1690 = vld [vmem:[%s1657 + $0x100] sm:$0xff]
        %v1691 = vld [vmem:[%s1657 + $0x108] sm:$0xff]
        %v1692 = vld [vmem:[%s1657 + $0x110] sm:$0xff]
        %v1693 = vld [vmem:[%s1657 + $0x118] sm:$0xff]
        %v1694 = vld [vmem:[%s1657 + $0x120] sm:$0xff]
        %v1695 = vld [vmem:[%s1657 + $0x128] sm:$0xff]
        %v1696 = vld [vmem:[%s1657 + $0x130] sm:$0xff]
        %v1697 = vld [vmem:[%s1657 + $0x138] sm:$0xff]
        %v1698 = vld [vmem:[%s1657 + $0x140] sm:$0xff]
        %v1699 = vld [vmem:[%s1657 + $0x148] sm:$0xff]
        %v1700 = vld [vmem:[%s1657 + $0x150] sm:$0xff]
        %v1701 = vld [vmem:[%s1657 + $0x158] sm:$0xff]
        %v1702 = vld [vmem:[%s1657 + $0x160] sm:$0xff]
        %v1703 = vld [vmem:[%s1657 + $0x168] sm:$0xff]
        %v1704 = vld [vmem:[%s1657 + $0x170] sm:$0xff]
        %v1705 = vld [vmem:[%s1657 + $0x178] sm:$0xff]
        %v1706 = vld [vmem:[%s1657 + $0x180] sm:$0xff]
        %v1707 = vld [vmem:[%s1657 + $0x188] sm:$0xff]
        %v1708 = vld [vmem:[%s1657 + $0x190] sm:$0xff]
        %v1709 = vld [vmem:[%s1657 + $0x198] sm:$0xff]
        %v1710 = vld [vmem:[%s1657 + $0x1a0] sm:$0xff]
        %v1711 = vld [vmem:[%s1657 + $0x1a8] sm:$0xff]
        %v1712 = vld [vmem:[%s1657 + $0x1b0] sm:$0xff]
        %v1713 = vld [vmem:[%s1657 + $0x1b8] sm:$0xff]
        %v1714 = vld [vmem:[%s1657 + $0x1c0] sm:$0xff]
        %v1715 = vld [vmem:[%s1657 + $0x1c8] sm:$0xff]
        %v1716 = vld [vmem:[%s1657 + $0x1d0] sm:$0xff]
        %v1717 = vld [vmem:[%s1657 + $0x1d8] sm:$0xff]
        %v1718 = vld [vmem:[%s1657 + $0x1e0] sm:$0xff]
        %v1719 = vld [vmem:[%s1657 + $0x1e8] sm:$0xff]
        %v1720 = vld [vmem:[%s1657 + $0x1f0] sm:$0xff]
        %v1721 = vld [vmem:[%s1657 + $0x1f8] sm:$0xff]
        %v1722 = vld [vmem:[%s1657 + $0x200] sm:$0xff]
        %v1723 = vld [vmem:[%s1657 + $0x208] sm:$0xff]
        %v1724 = vld [vmem:[%s1657 + $0x210] sm:$0xff]
        %v1725 = vld [vmem:[%s1657 + $0x218] sm:$0xff]
        %v1726 = vld [vmem:[%s1657 + $0x220] sm:$0xff]
        %v1727 = vld [vmem:[%s1657 + $0x228] sm:$0xff]
        %v1728 = vld [vmem:[%s1657 + $0x230] sm:$0xff]
        %v1729 = vld [vmem:[%s1657 + $0x238] sm:$0xff]
        %v1730 = vld [vmem:[%s1657 + $0x240] sm:$0xff]
        %v1731 = vld [vmem:[%s1657 + $0x248] sm:$0xff]
        %v1732 = vld [vmem:[%s1657 + $0x250] sm:$0xff]
        %v1733 = vld [vmem:[%s1657 + $0x258] sm:$0xff]
        %v1734 = vld [vmem:[%s1657 + $0x260] sm:$0xff]
        %v1735 = vld [vmem:[%s1657 + $0x268] sm:$0xff]
        %v1736 = vld [vmem:[%s1657 + $0x270] sm:$0xff]
        %v1737 = vld [vmem:[%s1657 + $0x278] sm:$0xff]
        %v1738 = vld [vmem:[%s1657 + $0x280] sm:$0xff]
        %v1739 = vld [vmem:[%s1657 + $0x288] sm:$0xff]
        %v1740 = vld [vmem:[%s1657 + $0x290] sm:$0xff]
        %v1741 = vld [vmem:[%s1657 + $0x298] sm:$0xff]
        %v1742 = vld [vmem:[%s1657 + $0x2a0] sm:$0xff]
        %v1743 = vld [vmem:[%s1657 + $0x2a8] sm:$0xff]
        %v1744 = vld [vmem:[%s1657 + $0x2b0] sm:$0xff]
        %v1745 = vld [vmem:[%s1657 + $0x2b8] sm:$0xff]
        %v1746 = vld [vmem:[%s1657 + $0x2c0] sm:$0xff]
        %v1747 = vld [vmem:[%s1657 + $0x2c8] sm:$0xff]
        %v1748 = vld [vmem:[%s1657 + $0x2d0] sm:$0xff]
        %v1749 = vld [vmem:[%s1657 + $0x2d8] sm:$0xff]
        %v1750 = vld [vmem:[%s1657 + $0x2e0] sm:$0xff]
        %v1751 = vld [vmem:[%s1657 + $0x2e8] sm:$0xff]
        %v1752 = vld [vmem:[%s1657 + $0x2f0] sm:$0xff]
        %v1753 = vld [vmem:[%s1657 + $0x2f8] sm:$0xff]
        %v1754 = vunpack.c.l.bf16 %v1658
        %v1755 = vunpack.c.h.bf16 %v1658
        %v1756 = vunpack.c.l.bf16 %v1659
        %v1757 = vunpack.c.h.bf16 %v1659
        %v1758 = vunpack.c.l.bf16 %v1660
        %v1759 = vunpack.c.h.bf16 %v1660
        %v1760 = vunpack.c.l.bf16 %v1661
        %v1761 = vunpack.c.h.bf16 %v1661
        %v1762 = vunpack.c.l.bf16 %v1662
        %v1763 = vunpack.c.h.bf16 %v1662
        %v1764 = vunpack.c.l.bf16 %v1663
        %v1765 = vunpack.c.h.bf16 %v1663
        %v1766 = vunpack.c.l.bf16 %v1664
        %v1767 = vunpack.c.h.bf16 %v1664
        %v1768 = vunpack.c.l.bf16 %v1665
        %v1769 = vunpack.c.h.bf16 %v1665
        %v1770 = vunpack.c.l.bf16 %v1666
        %v1771 = vunpack.c.h.bf16 %v1666
        %v1772 = vunpack.c.l.bf16 %v1667
        %v1773 = vunpack.c.h.bf16 %v1667
        %v1774 = vunpack.c.l.bf16 %v1668
        %v1775 = vunpack.c.h.bf16 %v1668
        %v1776 = vunpack.c.l.bf16 %v1669
        %v1777 = vunpack.c.h.bf16 %v1669
        %v1778 = vunpack.c.l.bf16 %v1670
        %v1779 = vunpack.c.h.bf16 %v1670
        %v1780 = vunpack.c.l.bf16 %v1671
        %v1781 = vunpack.c.h.bf16 %v1671
        %v1782 = vunpack.c.l.bf16 %v1672
        %v1783 = vunpack.c.h.bf16 %v1672
        %v1784 = vunpack.c.l.bf16 %v1673
        %v1785 = vunpack.c.h.bf16 %v1673
        %v1786 = vunpack.c.l.bf16 %v1674
        %v1787 = vunpack.c.h.bf16 %v1674
        %v1788 = vunpack.c.l.bf16 %v1675
        %v1789 = vunpack.c.h.bf16 %v1675
        %v1790 = vunpack.c.l.bf16 %v1676
        %v1791 = vunpack.c.h.bf16 %v1676
        %v1792 = vunpack.c.l.bf16 %v1677
        %v1793 = vunpack.c.h.bf16 %v1677
        %v1794 = vunpack.c.l.bf16 %v1678
        %v1795 = vunpack.c.h.bf16 %v1678
        %v1796 = vunpack.c.l.bf16 %v1679
        %v1797 = vunpack.c.h.bf16 %v1679
        %v1798 = vunpack.c.l.bf16 %v1680
        %v1799 = vunpack.c.h.bf16 %v1680
        %v1800 = vunpack.c.l.bf16 %v1681
        %v1801 = vunpack.c.h.bf16 %v1681
        %v1802 = vunpack.c.l.bf16 %v1682
        %v1803 = vunpack.c.h.bf16 %v1682
        %v1804 = vunpack.c.l.bf16 %v1683
        %v1805 = vunpack.c.h.bf16 %v1683
        %v1806 = vunpack.c.l.bf16 %v1684
        %v1807 = vunpack.c.h.bf16 %v1684
        %v1808 = vunpack.c.l.bf16 %v1685
        %v1809 = vunpack.c.h.bf16 %v1685
        %v1810 = vunpack.c.l.bf16 %v1686
        %v1811 = vunpack.c.h.bf16 %v1686
        %v1812 = vunpack.c.l.bf16 %v1687
        %v1813 = vunpack.c.h.bf16 %v1687
        %v1814 = vunpack.c.l.bf16 %v1688
        %v1815 = vunpack.c.h.bf16 %v1688
        %v1816 = vunpack.c.l.bf16 %v1689
        %v1817 = vunpack.c.h.bf16 %v1689
        %v1818 = vunpack.c.l.bf16 %v1690
        %v1819 = vunpack.c.h.bf16 %v1690
        %v1820 = vunpack.c.l.bf16 %v1691
        %v1821 = vunpack.c.h.bf16 %v1691
        %v1822 = vunpack.c.l.bf16 %v1692
        %v1823 = vunpack.c.h.bf16 %v1692
        %v1824 = vunpack.c.l.bf16 %v1693
        %v1825 = vunpack.c.h.bf16 %v1693
        %v1826 = vunpack.c.l.bf16 %v1694
        %v1827 = vunpack.c.h.bf16 %v1694
        %v1828 = vunpack.c.l.bf16 %v1695
        %v1829 = vunpack.c.h.bf16 %v1695
        %v1830 = vunpack.c.l.bf16 %v1696
        %v1831 = vunpack.c.h.bf16 %v1696
        %v1832 = vunpack.c.l.bf16 %v1697
        %v1833 = vunpack.c.h.bf16 %v1697
        %v1834 = vunpack.c.l.bf16 %v1698
        %v1835 = vunpack.c.h.bf16 %v1698
        %v1836 = vunpack.c.l.bf16 %v1699
        %v1837 = vunpack.c.h.bf16 %v1699
        %v1838 = vunpack.c.l.bf16 %v1700
        %v1839 = vunpack.c.h.bf16 %v1700
        %v1840 = vunpack.c.l.bf16 %v1701
        %v1841 = vunpack.c.h.bf16 %v1701
        %v1842 = vunpack.c.l.bf16 %v1702
        %v1843 = vunpack.c.h.bf16 %v1702
        %v1844 = vunpack.c.l.bf16 %v1703
        %v1845 = vunpack.c.h.bf16 %v1703
        %v1846 = vunpack.c.l.bf16 %v1704
        %v1847 = vunpack.c.h.bf16 %v1704
        %v1848 = vunpack.c.l.bf16 %v1705
        %v1849 = vunpack.c.h.bf16 %v1705
        %v1850 = vunpack.c.l.bf16 %v1706
        %v1851 = vunpack.c.h.bf16 %v1706
        %v1852 = vunpack.c.l.bf16 %v1707
        %v1853 = vunpack.c.h.bf16 %v1707
        %v1854 = vunpack.c.l.bf16 %v1708
        %v1855 = vunpack.c.h.bf16 %v1708
        %v1856 = vunpack.c.l.bf16 %v1709
        %v1857 = vunpack.c.h.bf16 %v1709
        %v1858 = vunpack.c.l.bf16 %v1710
        %v1859 = vunpack.c.h.bf16 %v1710
        %v1860 = vunpack.c.l.bf16 %v1711
        %v1861 = vunpack.c.h.bf16 %v1711
        %v1862 = vunpack.c.l.bf16 %v1712
        %v1863 = vunpack.c.h.bf16 %v1712
        %v1864 = vunpack.c.l.bf16 %v1713
        %v1865 = vunpack.c.h.bf16 %v1713
        %v1866 = vunpack.c.l.bf16 %v1714
        %v1867 = vunpack.c.h.bf16 %v1714
        %v1868 = vunpack.c.l.bf16 %v1715
        %v1869 = vunpack.c.h.bf16 %v1715
        %v1870 = vunpack.c.l.bf16 %v1716
        %v1871 = vunpack.c.h.bf16 %v1716
        %v1872 = vunpack.c.l.bf16 %v1717
        %v1873 = vunpack.c.h.bf16 %v1717
        %v1874 = vunpack.c.l.bf16 %v1718
        %v1875 = vunpack.c.h.bf16 %v1718
        %v1876 = vunpack.c.l.bf16 %v1719
        %v1877 = vunpack.c.h.bf16 %v1719
        %v1878 = vunpack.c.l.bf16 %v1720
        %v1879 = vunpack.c.h.bf16 %v1720
        %v1880 = vunpack.c.l.bf16 %v1721
        %v1881 = vunpack.c.h.bf16 %v1721
        %v1882 = vunpack.c.l.bf16 %v1722
        %v1883 = vunpack.c.h.bf16 %v1722
        %v1884 = vunpack.c.l.bf16 %v1723
        %v1885 = vunpack.c.h.bf16 %v1723
        %v1886 = vunpack.c.l.bf16 %v1724
        %v1887 = vunpack.c.h.bf16 %v1724
        %v1888 = vunpack.c.l.bf16 %v1725
        %v1889 = vunpack.c.h.bf16 %v1725
        %v1890 = vunpack.c.l.bf16 %v1726
        %v1891 = vunpack.c.h.bf16 %v1726
        %v1892 = vunpack.c.l.bf16 %v1727
        %v1893 = vunpack.c.h.bf16 %v1727
        %v1894 = vunpack.c.l.bf16 %v1728
        %v1895 = vunpack.c.h.bf16 %v1728
        %v1896 = vunpack.c.l.bf16 %v1729
        %v1897 = vunpack.c.h.bf16 %v1729
        %v1898 = vunpack.c.l.bf16 %v1730
        %v1899 = vunpack.c.h.bf16 %v1730
        %v1900 = vunpack.c.l.bf16 %v1731
        %v1901 = vunpack.c.h.bf16 %v1731
        %v1902 = vunpack.c.l.bf16 %v1732
        %v1903 = vunpack.c.h.bf16 %v1732
        %v1904 = vunpack.c.l.bf16 %v1733
        %v1905 = vunpack.c.h.bf16 %v1733
        %v1906 = vunpack.c.l.bf16 %v1734
        %v1907 = vunpack.c.h.bf16 %v1734
        %v1908 = vunpack.c.l.bf16 %v1735
        %v1909 = vunpack.c.h.bf16 %v1735
        %v1910 = vunpack.c.l.bf16 %v1736
        %v1911 = vunpack.c.h.bf16 %v1736
        %v1912 = vunpack.c.l.bf16 %v1737
        %v1913 = vunpack.c.h.bf16 %v1737
        %v1914 = vunpack.c.l.bf16 %v1738
        %v1915 = vunpack.c.h.bf16 %v1738
        %v1916 = vunpack.c.l.bf16 %v1739
        %v1917 = vunpack.c.h.bf16 %v1739
        %v1918 = vunpack.c.l.bf16 %v1740
        %v1919 = vunpack.c.h.bf16 %v1740
        %v1920 = vunpack.c.l.bf16 %v1741
        %v1921 = vunpack.c.h.bf16 %v1741
        %v1922 = vunpack.c.l.bf16 %v1742
        %v1923 = vunpack.c.h.bf16 %v1742
        %v1924 = vunpack.c.l.bf16 %v1743
        %v1925 = vunpack.c.h.bf16 %v1743
        %v1926 = vunpack.c.l.bf16 %v1744
        %v1927 = vunpack.c.h.bf16 %v1744
        %v1928 = vunpack.c.l.bf16 %v1745
        %v1929 = vunpack.c.h.bf16 %v1745
        %v1930 = vunpack.c.l.bf16 %v1746
        %v1931 = vunpack.c.h.bf16 %v1746
        %v1932 = vunpack.c.l.bf16 %v1747
        %v1933 = vunpack.c.h.bf16 %v1747
        %v1934 = vunpack.c.l.bf16 %v1748
        %v1935 = vunpack.c.h.bf16 %v1748
        %v1936 = vunpack.c.l.bf16 %v1749
        %v1937 = vunpack.c.h.bf16 %v1749
        %v1938 = vunpack.c.l.bf16 %v1750
        %v1939 = vunpack.c.h.bf16 %v1750
        %v1940 = vunpack.c.l.bf16 %v1751
        %v1941 = vunpack.c.h.bf16 %v1751
        %v1942 = vunpack.c.l.bf16 %v1752
        %v1943 = vunpack.c.h.bf16 %v1752
        %v1944 = vunpack.c.l.bf16 %v1753
        %v1945 = vunpack.c.h.bf16 %v1753
        %v1946 = vstv %s1656
        %v1947 = vmul.f32 %v1946, %v1754
        %v1948 = vmul.f32 %v1946, %v1755
        %v1949 = vmul.f32 %v1946, %v1756
        %v1950 = vmul.f32 %v1946, %v1757
        %v1951 = vmul.f32 %v1946, %v1758
        %v1952 = vmul.f32 %v1946, %v1759
        %v1953 = vmul.f32 %v1946, %v1760
        %v1954 = vmul.f32 %v1946, %v1761
        %v1955 = vmul.f32 %v1946, %v1762
        %v1956 = vmul.f32 %v1946, %v1763
        %v1957 = vmul.f32 %v1946, %v1764
        %v1958 = vmul.f32 %v1946, %v1765
        %v1959 = vmul.f32 %v1946, %v1766
        %v1960 = vmul.f32 %v1946, %v1767
        %v1961 = vmul.f32 %v1946, %v1768
        %v1962 = vmul.f32 %v1946, %v1769
        %v1963 = vmul.f32 %v1946, %v1770
        %v1964 = vmul.f32 %v1946, %v1771
        %v1965 = vmul.f32 %v1946, %v1772
        %v1966 = vmul.f32 %v1946, %v1773
        %v1967 = vmul.f32 %v1946, %v1774
        %v1968 = vmul.f32 %v1946, %v1775
        %v1969 = vmul.f32 %v1946, %v1776
        %v1970 = vmul.f32 %v1946, %v1777
        %v1971 = vmul.f32 %v1946, %v1778
        %v1972 = vmul.f32 %v1946, %v1779
        %v1973 = vmul.f32 %v1946, %v1780
        %v1974 = vmul.f32 %v1946, %v1781
        %v1975 = vmul.f32 %v1946, %v1782
        %v1976 = vmul.f32 %v1946, %v1783
        %v1977 = vmul.f32 %v1946, %v1784
        %v1978 = vmul.f32 %v1946, %v1785
        %v1979 = vmul.f32 %v1946, %v1786
        %v1980 = vmul.f32 %v1946, %v1787
        %v1981 = vmul.f32 %v1946, %v1788
        %v1982 = vmul.f32 %v1946, %v1789
        %v1983 = vmul.f32 %v1946, %v1790
        %v1984 = vmul.f32 %v1946, %v1791
        %v1985 = vmul.f32 %v1946, %v1792
        %v1986 = vmul.f32 %v1946, %v1793
        %v1987 = vmul.f32 %v1946, %v1794
        %v1988 = vmul.f32 %v1946, %v1795
        %v1989 = vmul.f32 %v1946, %v1796
        %v1990 = vmul.f32 %v1946, %v1797
        %v1991 = vmul.f32 %v1946, %v1798
        %v1992 = vmul.f32 %v1946, %v1799
        %v1993 = vmul.f32 %v1946, %v1800
        %v1994 = vmul.f32 %v1946, %v1801
        %v1995 = vmul.f32 %v1946, %v1802
        %v1996 = vmul.f32 %v1946, %v1803
        %v1997 = vmul.f32 %v1946, %v1804
        %v1998 = vmul.f32 %v1946, %v1805
        %v1999 = vmul.f32 %v1946, %v1806
        %v2000 = vmul.f32 %v1946, %v1807
        %v2001 = vmul.f32 %v1946, %v1808
        %v2002 = vmul.f32 %v1946, %v1809
        %v2003 = vmul.f32 %v1946, %v1810
        %v2004 = vmul.f32 %v1946, %v1811
        %v2005 = vmul.f32 %v1946, %v1812
        %v2006 = vmul.f32 %v1946, %v1813
        %v2007 = vmul.f32 %v1946, %v1814
        %v2008 = vmul.f32 %v1946, %v1815
        %v2009 = vmul.f32 %v1946, %v1816
        %v2010 = vmul.f32 %v1946, %v1817
        %v2011 = vmul.f32 %v1946, %v1818
        %v2012 = vmul.f32 %v1946, %v1819
        %v2013 = vmul.f32 %v1946, %v1820
        %v2014 = vmul.f32 %v1946, %v1821
        %v2015 = vmul.f32 %v1946, %v1822
        %v2016 = vmul.f32 %v1946, %v1823
        %v2017 = vmul.f32 %v1946, %v1824
        %v2018 = vmul.f32 %v1946, %v1825
        %v2019 = vmul.f32 %v1946, %v1826
        %v2020 = vmul.f32 %v1946, %v1827
        %v2021 = vmul.f32 %v1946, %v1828
        %v2022 = vmul.f32 %v1946, %v1829
        %v2023 = vmul.f32 %v1946, %v1830
        %v2024 = vmul.f32 %v1946, %v1831
        %v2025 = vmul.f32 %v1946, %v1832
        %v2026 = vmul.f32 %v1946, %v1833
        %v2027 = vmul.f32 %v1946, %v1834
        %v2028 = vmul.f32 %v1946, %v1835
        %v2029 = vmul.f32 %v1946, %v1836
        %v2030 = vmul.f32 %v1946, %v1837
        %v2031 = vmul.f32 %v1946, %v1838
        %v2032 = vmul.f32 %v1946, %v1839
        %v2033 = vmul.f32 %v1946, %v1840
        %v2034 = vmul.f32 %v1946, %v1841
        %v2035 = vmul.f32 %v1946, %v1842
        %v2036 = vmul.f32 %v1946, %v1843
        %v2037 = vmul.f32 %v1946, %v1844
        %v2038 = vmul.f32 %v1946, %v1845
        %v2039 = vmul.f32 %v1946, %v1846
        %v2040 = vmul.f32 %v1946, %v1847
        %v2041 = vmul.f32 %v1946, %v1848
        %v2042 = vmul.f32 %v1946, %v1849
        %v2043 = vmul.f32 %v1946, %v1850
        %v2044 = vmul.f32 %v1946, %v1851
        %v2045 = vmul.f32 %v1946, %v1852
        %v2046 = vmul.f32 %v1946, %v1853
        %v2047 = vmul.f32 %v1946, %v1854
        %v2048 = vmul.f32 %v1946, %v1855
        %v2049 = vmul.f32 %v1946, %v1856
        %v2050 = vmul.f32 %v1946, %v1857
        %v2051 = vmul.f32 %v1946, %v1858
        %v2052 = vmul.f32 %v1946, %v1859
        %v2053 = vmul.f32 %v1946, %v1860
        %v2054 = vmul.f32 %v1946, %v1861
        %v2055 = vmul.f32 %v1946, %v1862
        %v2056 = vmul.f32 %v1946, %v1863
        %v2057 = vmul.f32 %v1946, %v1864
        %v2058 = vmul.f32 %v1946, %v1865
        %v2059 = vmul.f32 %v1946, %v1866
        %v2060 = vmul.f32 %v1946, %v1867
        %v2061 = vmul.f32 %v1946, %v1868
        %v2062 = vmul.f32 %v1946, %v1869
        %v2063 = vmul.f32 %v1946, %v1870
        %v2064 = vmul.f32 %v1946, %v1871
        %v2065 = vmul.f32 %v1946, %v1872
        %v2066 = vmul.f32 %v1946, %v1873
        %v2067 = vmul.f32 %v1946, %v1874
        %v2068 = vmul.f32 %v1946, %v1875
        %v2069 = vmul.f32 %v1946, %v1876
        %v2070 = vmul.f32 %v1946, %v1877
        %v2071 = vmul.f32 %v1946, %v1878
        %v2072 = vmul.f32 %v1946, %v1879
        %v2073 = vmul.f32 %v1946, %v1880
        %v2074 = vmul.f32 %v1946, %v1881
        %v2075 = vmul.f32 %v1946, %v1882
        %v2076 = vmul.f32 %v1946, %v1883
        %v2077 = vmul.f32 %v1946, %v1884
        %v2078 = vmul.f32 %v1946, %v1885
        %v2079 = vmul.f32 %v1946, %v1886
        %v2080 = vmul.f32 %v1946, %v1887
        %v2081 = vmul.f32 %v1946, %v1888
        %v2082 = vmul.f32 %v1946, %v1889
        %v2083 = vmul.f32 %v1946, %v1890
        %v2084 = vmul.f32 %v1946, %v1891
        %v2085 = vmul.f32 %v1946, %v1892
        %v2086 = vmul.f32 %v1946, %v1893
        %v2087 = vmul.f32 %v1946, %v1894
        %v2088 = vmul.f32 %v1946, %v1895
        %v2089 = vmul.f32 %v1946, %v1896
        %v2090 = vmul.f32 %v1946, %v1897
        %v2091 = vmul.f32 %v1946, %v1898
        %v2092 = vmul.f32 %v1946, %v1899
        %v2093 = vmul.f32 %v1946, %v1900
        %v2094 = vmul.f32 %v1946, %v1901
        %v2095 = vmul.f32 %v1946, %v1902
        %v2096 = vmul.f32 %v1946, %v1903
        %v2097 = vmul.f32 %v1946, %v1904
        %v2098 = vmul.f32 %v1946, %v1905
        %v2099 = vmul.f32 %v1946, %v1906
        %v2100 = vmul.f32 %v1946, %v1907
        %v2101 = vmul.f32 %v1946, %v1908
        %v2102 = vmul.f32 %v1946, %v1909
        %v2103 = vmul.f32 %v1946, %v1910
        %v2104 = vmul.f32 %v1946, %v1911
        %v2105 = vmul.f32 %v1946, %v1912
        %v2106 = vmul.f32 %v1946, %v1913
        %v2107 = vmul.f32 %v1946, %v1914
        %v2108 = vmul.f32 %v1946, %v1915
        %v2109 = vmul.f32 %v1946, %v1916
        %v2110 = vmul.f32 %v1946, %v1917
        %v2111 = vmul.f32 %v1946, %v1918
        %v2112 = vmul.f32 %v1946, %v1919
        %v2113 = vmul.f32 %v1946, %v1920
        %v2114 = vmul.f32 %v1946, %v1921
        %v2115 = vmul.f32 %v1946, %v1922
        %v2116 = vmul.f32 %v1946, %v1923
        %v2117 = vmul.f32 %v1946, %v1924
        %v2118 = vmul.f32 %v1946, %v1925
        %v2119 = vmul.f32 %v1946, %v1926
        %v2120 = vmul.f32 %v1946, %v1927
        %v2121 = vmul.f32 %v1946, %v1928
        %v2122 = vmul.f32 %v1946, %v1929
        %v2123 = vmul.f32 %v1946, %v1930
        %v2124 = vmul.f32 %v1946, %v1931
        %v2125 = vmul.f32 %v1946, %v1932
        %v2126 = vmul.f32 %v1946, %v1933
        %v2127 = vmul.f32 %v1946, %v1934
        %v2128 = vmul.f32 %v1946, %v1935
        %v2129 = vmul.f32 %v1946, %v1936
        %v2130 = vmul.f32 %v1946, %v1937
        %v2131 = vmul.f32 %v1946, %v1938
        %v2132 = vmul.f32 %v1946, %v1939
        %v2133 = vmul.f32 %v1946, %v1940
        %v2134 = vmul.f32 %v1946, %v1941
        %v2135 = vmul.f32 %v1946, %v1942
        %v2136 = vmul.f32 %v1946, %v1943
        %v2137 = vmul.f32 %v1946, %v1944
        %v2138 = vmul.f32 %v1946, %v1945
        %v2139 = vadd.f32 %v1458, %v1947
        %v2140 = vadd.f32 %v1459, %v1948
        %v2141 = vadd.f32 %v1460, %v1949
        %v2142 = vadd.f32 %v1461, %v1950
        %v2143 = vadd.f32 %v1462, %v1951
        %v2144 = vadd.f32 %v1463, %v1952
        %v2145 = vadd.f32 %v1464, %v1953
        %v2146 = vadd.f32 %v1465, %v1954
        %v2147 = vadd.f32 %v1466, %v1955
        %v2148 = vadd.f32 %v1467, %v1956
        %v2149 = vadd.f32 %v1468, %v1957
        %v2150 = vadd.f32 %v1469, %v1958
        %v2151 = vadd.f32 %v1470, %v1959
        %v2152 = vadd.f32 %v1471, %v1960
        %v2153 = vadd.f32 %v1472, %v1961
        %v2154 = vadd.f32 %v1473, %v1962
        %v2155 = vadd.f32 %v1474, %v1963
        %v2156 = vadd.f32 %v1475, %v1964
        %v2157 = vadd.f32 %v1476, %v1965
        %v2158 = vadd.f32 %v1477, %v1966
        %v2159 = vadd.f32 %v1478, %v1967
        %v2160 = vadd.f32 %v1479, %v1968
        %v2161 = vadd.f32 %v1480, %v1969
        %v2162 = vadd.f32 %v1481, %v1970
        %v2163 = vadd.f32 %v1482, %v1971
        %v2164 = vadd.f32 %v1483, %v1972
        %v2165 = vadd.f32 %v1484, %v1973
        %v2166 = vadd.f32 %v1485, %v1974
        %v2167 = vadd.f32 %v1486, %v1975
        %v2168 = vadd.f32 %v1487, %v1976
        %v2169 = vadd.f32 %v1488, %v1977
        %v2170 = vadd.f32 %v1489, %v1978
        %v2171 = vadd.f32 %v1490, %v1979
        %v2172 = vadd.f32 %v1491, %v1980
        %v2173 = vadd.f32 %v1492, %v1981
        %v2174 = vadd.f32 %v1493, %v1982
        %v2175 = vadd.f32 %v1494, %v1983
        %v2176 = vadd.f32 %v1495, %v1984
        %v2177 = vadd.f32 %v1496, %v1985
        %v2178 = vadd.f32 %v1497, %v1986
        %v2179 = vadd.f32 %v1498, %v1987
        %v2180 = vadd.f32 %v1499, %v1988
        %v2181 = vadd.f32 %v1500, %v1989
        %v2182 = vadd.f32 %v1501, %v1990
        %v2183 = vadd.f32 %v1502, %v1991
        %v2184 = vadd.f32 %v1503, %v1992
        %v2185 = vadd.f32 %v1504, %v1993
        %v2186 = vadd.f32 %v1505, %v1994
        %v2187 = vadd.f32 %v1506, %v1995
        %v2188 = vadd.f32 %v1507, %v1996
        %v2189 = vadd.f32 %v1508, %v1997
        %v2190 = vadd.f32 %v1509, %v1998
        %v2191 = vadd.f32 %v1510, %v1999
        %v2192 = vadd.f32 %v1511, %v2000
        %v2193 = vadd.f32 %v1512, %v2001
        %v2194 = vadd.f32 %v1513, %v2002
        %v2195 = vadd.f32 %v1514, %v2003
        %v2196 = vadd.f32 %v1515, %v2004
        %v2197 = vadd.f32 %v1516, %v2005
        %v2198 = vadd.f32 %v1517, %v2006
        %v2199 = vadd.f32 %v1518, %v2007
        %v2200 = vadd.f32 %v1519, %v2008
        %v2201 = vadd.f32 %v1520, %v2009
        %v2202 = vadd.f32 %v1521, %v2010
        %v2203 = vadd.f32 %v1522, %v2011
        %v2204 = vadd.f32 %v1523, %v2012
        %v2205 = vadd.f32 %v1524, %v2013
        %v2206 = vadd.f32 %v1525, %v2014
        %v2207 = vadd.f32 %v1526, %v2015
        %v2208 = vadd.f32 %v1527, %v2016
        %v2209 = vadd.f32 %v1528, %v2017
        %v2210 = vadd.f32 %v1529, %v2018
        %v2211 = vadd.f32 %v1530, %v2019
        %v2212 = vadd.f32 %v1531, %v2020
        %v2213 = vadd.f32 %v1532, %v2021
        %v2214 = vadd.f32 %v1533, %v2022
        %v2215 = vadd.f32 %v1534, %v2023
        %v2216 = vadd.f32 %v1535, %v2024
        %v2217 = vadd.f32 %v1536, %v2025
        %v2218 = vadd.f32 %v1537, %v2026
        %v2219 = vadd.f32 %v1538, %v2027
        %v2220 = vadd.f32 %v1539, %v2028
        %v2221 = vadd.f32 %v1540, %v2029
        %v2222 = vadd.f32 %v1541, %v2030
        %v2223 = vadd.f32 %v1542, %v2031
        %v2224 = vadd.f32 %v1543, %v2032
        %v2225 = vadd.f32 %v1544, %v2033
        %v2226 = vadd.f32 %v1545, %v2034
        %v2227 = vadd.f32 %v1546, %v2035
        %v2228 = vadd.f32 %v1547, %v2036
        %v2229 = vadd.f32 %v1548, %v2037
        %v2230 = vadd.f32 %v1549, %v2038
        %v2231 = vadd.f32 %v1550, %v2039
        %v2232 = vadd.f32 %v1551, %v2040
        %v2233 = vadd.f32 %v1552, %v2041
        %v2234 = vadd.f32 %v1553, %v2042
        %v2235 = vadd.f32 %v1554, %v2043
        %v2236 = vadd.f32 %v1555, %v2044
        %v2237 = vadd.f32 %v1556, %v2045
        %v2238 = vadd.f32 %v1557, %v2046
        %v2239 = vadd.f32 %v1558, %v2047
        %v2240 = vadd.f32 %v1559, %v2048
        %v2241 = vadd.f32 %v1560, %v2049
        %v2242 = vadd.f32 %v1561, %v2050
        %v2243 = vadd.f32 %v1562, %v2051
        %v2244 = vadd.f32 %v1563, %v2052
        %v2245 = vadd.f32 %v1564, %v2053
        %v2246 = vadd.f32 %v1565, %v2054
        %v2247 = vadd.f32 %v1566, %v2055
        %v2248 = vadd.f32 %v1567, %v2056
        %v2249 = vadd.f32 %v1568, %v2057
        %v2250 = vadd.f32 %v1569, %v2058
        %v2251 = vadd.f32 %v1570, %v2059
        %v2252 = vadd.f32 %v1571, %v2060
        %v2253 = vadd.f32 %v1572, %v2061
        %v2254 = vadd.f32 %v1573, %v2062
        %v2255 = vadd.f32 %v1574, %v2063
        %v2256 = vadd.f32 %v1575, %v2064
        %v2257 = vadd.f32 %v1576, %v2065
        %v2258 = vadd.f32 %v1577, %v2066
        %v2259 = vadd.f32 %v1578, %v2067
        %v2260 = vadd.f32 %v1579, %v2068
        %v2261 = vadd.f32 %v1580, %v2069
        %v2262 = vadd.f32 %v1581, %v2070
        %v2263 = vadd.f32 %v1582, %v2071
        %v2264 = vadd.f32 %v1583, %v2072
        %v2265 = vadd.f32 %v1584, %v2073
        %v2266 = vadd.f32 %v1585, %v2074
        %v2267 = vadd.f32 %v1586, %v2075
        %v2268 = vadd.f32 %v1587, %v2076
        %v2269 = vadd.f32 %v1588, %v2077
        %v2270 = vadd.f32 %v1589, %v2078
        %v2271 = vadd.f32 %v1590, %v2079
        %v2272 = vadd.f32 %v1591, %v2080
        %v2273 = vadd.f32 %v1592, %v2081
        %v2274 = vadd.f32 %v1593, %v2082
        %v2275 = vadd.f32 %v1594, %v2083
        %v2276 = vadd.f32 %v1595, %v2084
        %v2277 = vadd.f32 %v1596, %v2085
        %v2278 = vadd.f32 %v1597, %v2086
        %v2279 = vadd.f32 %v1598, %v2087
        %v2280 = vadd.f32 %v1599, %v2088
        %v2281 = vadd.f32 %v1600, %v2089
        %v2282 = vadd.f32 %v1601, %v2090
        %v2283 = vadd.f32 %v1602, %v2091
        %v2284 = vadd.f32 %v1603, %v2092
        %v2285 = vadd.f32 %v1604, %v2093
        %v2286 = vadd.f32 %v1605, %v2094
        %v2287 = vadd.f32 %v1606, %v2095
        %v2288 = vadd.f32 %v1607, %v2096
        %v2289 = vadd.f32 %v1608, %v2097
        %v2290 = vadd.f32 %v1609, %v2098
        %v2291 = vadd.f32 %v1610, %v2099
        %v2292 = vadd.f32 %v1611, %v2100
        %v2293 = vadd.f32 %v1612, %v2101
        %v2294 = vadd.f32 %v1613, %v2102
        %v2295 = vadd.f32 %v1614, %v2103
        %v2296 = vadd.f32 %v1615, %v2104
        %v2297 = vadd.f32 %v1616, %v2105
        %v2298 = vadd.f32 %v1617, %v2106
        %v2299 = vadd.f32 %v1618, %v2107
        %v2300 = vadd.f32 %v1619, %v2108
        %v2301 = vadd.f32 %v1620, %v2109
        %v2302 = vadd.f32 %v1621, %v2110
        %v2303 = vadd.f32 %v1622, %v2111
        %v2304 = vadd.f32 %v1623, %v2112
        %v2305 = vadd.f32 %v1624, %v2113
        %v2306 = vadd.f32 %v1625, %v2114
        %v2307 = vadd.f32 %v1626, %v2115
        %v2308 = vadd.f32 %v1627, %v2116
        %v2309 = vadd.f32 %v1628, %v2117
        %v2310 = vadd.f32 %v1629, %v2118
        %v2311 = vadd.f32 %v1630, %v2119
        %v2312 = vadd.f32 %v1631, %v2120
        %v2313 = vadd.f32 %v1632, %v2121
        %v2314 = vadd.f32 %v1633, %v2122
        %v2315 = vadd.f32 %v1634, %v2123
        %v2316 = vadd.f32 %v1635, %v2124
        %v2317 = vadd.f32 %v1636, %v2125
        %v2318 = vadd.f32 %v1637, %v2126
        %v2319 = vadd.f32 %v1638, %v2127
        %v2320 = vadd.f32 %v1639, %v2128
        %v2321 = vadd.f32 %v1640, %v2129
        %v2322 = vadd.f32 %v1641, %v2130
        %v2323 = vadd.f32 %v1642, %v2131
        %v2324 = vadd.f32 %v1643, %v2132
        %v2325 = vadd.f32 %v1644, %v2133
        %v2326 = vadd.f32 %v1645, %v2134
        %v2327 = vadd.f32 %v1646, %v2135
        %v2328 = vadd.f32 %v1647, %v2136
        %v2329 = vadd.f32 %v1648, %v2137
        %v2330 = vadd.f32 %v1649, %v2138
        %s2331 = sld [smem:[#allocation3 + $0x82]]
        %s2332 = scalar_lea.vmem %s436, 4 [#allocation10]
        %v2333 = vld [vmem:[%s2332] sm:$0x3]
        %v2334 = vstv %s2331
        %v2335 = vmul.f32 %v2334, %v2333
        %v2336 = vadd.f32 %v1655, %v2335
        %v2337 = vld [vmem:[#allocation7] sm:$0xff]
        %v2338 = vld [vmem:[#allocation7 + $0x8] sm:$0xff]
        %v2339 = vld [vmem:[#allocation7 + $0x10] sm:$0xff]
        %v2340 = vld [vmem:[#allocation7 + $0x18] sm:$0xff]
        %v2341 = vld [vmem:[#allocation7 + $0x20] sm:$0xff]
        %v2342 = vld [vmem:[#allocation7 + $0x28] sm:$0xff]
        %v2344 = vperm.slane %v2336, 0
        %v2345 = vperm.slane %v2336, 1
        %2348 = vmatpush.msra.mxu0 %v2169
        %2349 = vmatpush.msra.mxu0 %v2167
        %2350 = vmatpush.msra.mxu0 %v2165
        %2351 = vmatpush.msra.mxu0 %v2163
        %2352 = vmatpush.msra.mxu0 %v2161
        %2353 = vmatpush.msra.mxu0 %v2159
        %2354 = vmatpush.msra.mxu0 %v2157
        %2355 = vmatpush.msra.mxu0 %v2155
        %2356 = vmatpush.msra.mxu0 %v2153
        %2357 = vmatpush.msra.mxu0 %v2151
        %2358 = vmatpush.msra.mxu0 %v2149
        %2359 = vmatpush.msra.mxu0 %v2147
        %2360 = vmatpush.msra.mxu0 %v2145
        %2361 = vmatpush.msra.mxu0 %v2143
        %2362 = vmatpush.msra.mxu0 %v2141
        %2363 = vmatpush.msra.mxu0 %v2139
        %2364 = vmatmul.f32.gmra.mxu0 %v2337
        %v2365 = vpop.f32.mrf.mxu0
        %v2366 = vadd.f32 %v2344, %v2365
        %2367 = vdwg.mxu0
        %2368 = vmatpush.msra.mxu0 %v2201
        %2369 = vmatpush.msra.mxu0 %v2199
        %2370 = vmatpush.msra.mxu0 %v2197
        %2371 = vmatpush.msra.mxu0 %v2195
        %2372 = vmatpush.msra.mxu0 %v2193
        %2373 = vmatpush.msra.mxu0 %v2191
        %2374 = vmatpush.msra.mxu0 %v2189
        %2375 = vmatpush.msra.mxu0 %v2187
        %2376 = vmatpush.msra.mxu0 %v2185
        %2377 = vmatpush.msra.mxu0 %v2183
        %2378 = vmatpush.msra.mxu0 %v2181
        %2379 = vmatpush.msra.mxu0 %v2179
        %2380 = vmatpush.msra.mxu0 %v2177
        %2381 = vmatpush.msra.mxu0 %v2175
        %2382 = vmatpush.msra.mxu0 %v2173
        %2383 = vmatpush.msra.mxu0 %v2171
        %2384 = vmatmul.f32.gmra.mxu0 %v2338
        %v2385 = vpop.f32.mrf.mxu0
        %v2386 = vadd.f32 %v2366, %v2385
        %2387 = vdwg.mxu0
        %2388 = vmatpush.msra.mxu0 %v2233
        %2389 = vmatpush.msra.mxu0 %v2231
        %2390 = vmatpush.msra.mxu0 %v2229
        %2391 = vmatpush.msra.mxu0 %v2227
        %2392 = vmatpush.msra.mxu0 %v2225
        %2393 = vmatpush.msra.mxu0 %v2223
        %2394 = vmatpush.msra.mxu0 %v2221
        %2395 = vmatpush.msra.mxu0 %v2219
        %2396 = vmatpush.msra.mxu0 %v2217
        %2397 = vmatpush.msra.mxu0 %v2215
        %2398 = vmatpush.msra.mxu0 %v2213
        %2399 = vmatpush.msra.mxu0 %v2211
        %2400 = vmatpush.msra.mxu0 %v2209
        %2401 = vmatpush.msra.mxu0 %v2207
        %2402 = vmatpush.msra.mxu0 %v2205
        %2403 = vmatpush.msra.mxu0 %v2203
        %2404 = vmatmul.f32.gmra.mxu0 %v2339
        %v2405 = vpop.f32.mrf.mxu0
        %v2406 = vadd.f32 %v2386, %v2405
        %2407 = vdwg.mxu0
        %2408 = vmatpush.msra.mxu0 %v2265
        %2409 = vmatpush.msra.mxu0 %v2263
        %2410 = vmatpush.msra.mxu0 %v2261
        %2411 = vmatpush.msra.mxu0 %v2259
        %2412 = vmatpush.msra.mxu0 %v2257
        %2413 = vmatpush.msra.mxu0 %v2255
        %2414 = vmatpush.msra.mxu0 %v2253
        %2415 = vmatpush.msra.mxu0 %v2251
        %2416 = vmatpush.msra.mxu0 %v2249
        %2417 = vmatpush.msra.mxu0 %v2247
        %2418 = vmatpush.msra.mxu0 %v2245
        %2419 = vmatpush.msra.mxu0 %v2243
        %2420 = vmatpush.msra.mxu0 %v2241
        %2421 = vmatpush.msra.mxu0 %v2239
        %2422 = vmatpush.msra.mxu0 %v2237
        %2423 = vmatpush.msra.mxu0 %v2235
        %2424 = vmatmul.f32.gmra.mxu0 %v2340
        %v2425 = vpop.f32.mrf.mxu0
        %v2426 = vadd.f32 %v2406, %v2425
        %2427 = vdwg.mxu0
        %2428 = vmatpush.msra.mxu0 %v2297
        %2429 = vmatpush.msra.mxu0 %v2295
        %2430 = vmatpush.msra.mxu0 %v2293
        %2431 = vmatpush.msra.mxu0 %v2291
        %2432 = vmatpush.msra.mxu0 %v2289
        %2433 = vmatpush.msra.mxu0 %v2287
        %2434 = vmatpush.msra.mxu0 %v2285
        %2435 = vmatpush.msra.mxu0 %v2283
        %2436 = vmatpush.msra.mxu0 %v2281
        %2437 = vmatpush.msra.mxu0 %v2279
        %2438 = vmatpush.msra.mxu0 %v2277
        %2439 = vmatpush.msra.mxu0 %v2275
        %2440 = vmatpush.msra.mxu0 %v2273
        %2441 = vmatpush.msra.mxu0 %v2271
        %2442 = vmatpush.msra.mxu0 %v2269
        %2443 = vmatpush.msra.mxu0 %v2267
        %2444 = vmatmul.f32.gmra.mxu0 %v2341
        %v2445 = vpop.f32.mrf.mxu0
        %v2446 = vadd.f32 %v2426, %v2445
        %2447 = vdwg.mxu0
        %2448 = vmatpush.msra.mxu0 %v2329
        %2449 = vmatpush.msra.mxu0 %v2327
        %2450 = vmatpush.msra.mxu0 %v2325
        %2451 = vmatpush.msra.mxu0 %v2323
        %2452 = vmatpush.msra.mxu0 %v2321
        %2453 = vmatpush.msra.mxu0 %v2319
        %2454 = vmatpush.msra.mxu0 %v2317
        %2455 = vmatpush.msra.mxu0 %v2315
        %2456 = vmatpush.msra.mxu0 %v2313
        %2457 = vmatpush.msra.mxu0 %v2311
        %2458 = vmatpush.msra.mxu0 %v2309
        %2459 = vmatpush.msra.mxu0 %v2307
        %2460 = vmatpush.msra.mxu0 %v2305
        %2461 = vmatpush.msra.mxu0 %v2303
        %2462 = vmatpush.msra.mxu0 %v2301
        %2463 = vmatpush.msra.mxu0 %v2299
        %2464 = vmatmul.f32.gmra.mxu0 %v2342
        %v2465 = vpop.f32.mrf.mxu0
        %v2466 = vadd.f32 %v2446, %v2465
        %2467 = vdwg.mxu0
        %2468 = vmatpush.msra.mxu0 %v2170
        %2469 = vmatpush.msra.mxu0 %v2168
        %2470 = vmatpush.msra.mxu0 %v2166
        %2471 = vmatpush.msra.mxu0 %v2164
        %2472 = vmatpush.msra.mxu0 %v2162
        %2473 = vmatpush.msra.mxu0 %v2160
        %2474 = vmatpush.msra.mxu0 %v2158
        %2475 = vmatpush.msra.mxu0 %v2156
        %2476 = vmatpush.msra.mxu0 %v2154
        %2477 = vmatpush.msra.mxu0 %v2152
        %2478 = vmatpush.msra.mxu0 %v2150
        %2479 = vmatpush.msra.mxu0 %v2148
        %2480 = vmatpush.msra.mxu0 %v2146
        %2481 = vmatpush.msra.mxu0 %v2144
        %2482 = vmatpush.msra.mxu0 %v2142
        %2483 = vmatpush.msra.mxu0 %v2140
        %2484 = vmatmul.f32.gmra.mxu0 %v2337
        %v2485 = vpop.f32.mrf.mxu0
        %v2486 = vadd.f32 %v2345, %v2485
        %2487 = vdwg.mxu0
        %2488 = vmatpush.msra.mxu0 %v2202
        %2489 = vmatpush.msra.mxu0 %v2200
        %2490 = vmatpush.msra.mxu0 %v2198
        %2491 = vmatpush.msra.mxu0 %v2196
        %2492 = vmatpush.msra.mxu0 %v2194
        %2493 = vmatpush.msra.mxu0 %v2192
        %2494 = vmatpush.msra.mxu0 %v2190
        %2495 = vmatpush.msra.mxu0 %v2188
        %2496 = vmatpush.msra.mxu0 %v2186
        %2497 = vmatpush.msra.mxu0 %v2184
        %2498 = vmatpush.msra.mxu0 %v2182
        %2499 = vmatpush.msra.mxu0 %v2180
        %2500 = vmatpush.msra.mxu0 %v2178
        %2501 = vmatpush.msra.mxu0 %v2176
        %2502 = vmatpush.msra.mxu0 %v2174
        %2503 = vmatpush.msra.mxu0 %v2172
        %2504 = vmatmul.f32.gmra.mxu0 %v2338
        %v2505 = vpop.f32.mrf.mxu0
        %v2506 = vadd.f32 %v2486, %v2505
        %2507 = vdwg.mxu0
        %2508 = vmatpush.msra.mxu0 %v2234
        %2509 = vmatpush.msra.mxu0 %v2232
        %2510 = vmatpush.msra.mxu0 %v2230
        %2511 = vmatpush.msra.mxu0 %v2228
        %2512 = vmatpush.msra.mxu0 %v2226
        %2513 = vmatpush.msra.mxu0 %v2224
        %2514 = vmatpush.msra.mxu0 %v2222
        %2515 = vmatpush.msra.mxu0 %v2220
        %2516 = vmatpush.msra.mxu0 %v2218
        %2517 = vmatpush.msra.mxu0 %v2216
        %2518 = vmatpush.msra.mxu0 %v2214
        %2519 = vmatpush.msra.mxu0 %v2212
        %2520 = vmatpush.msra.mxu0 %v2210
        %2521 = vmatpush.msra.mxu0 %v2208
        %2522 = vmatpush.msra.mxu0 %v2206
        %2523 = vmatpush.msra.mxu0 %v2204
        %2524 = vmatmul.f32.gmra.mxu0 %v2339
        %v2525 = vpop.f32.mrf.mxu0
        %v2526 = vadd.f32 %v2506, %v2525
        %2527 = vdwg.mxu0
        %2528 = vmatpush.msra.mxu0 %v2266
        %2529 = vmatpush.msra.mxu0 %v2264
        %2530 = vmatpush.msra.mxu0 %v2262
        %2531 = vmatpush.msra.mxu0 %v2260
        %2532 = vmatpush.msra.mxu0 %v2258
        %2533 = vmatpush.msra.mxu0 %v2256
        %2534 = vmatpush.msra.mxu0 %v2254
        %2535 = vmatpush.msra.mxu0 %v2252
        %2536 = vmatpush.msra.mxu0 %v2250
        %2537 = vmatpush.msra.mxu0 %v2248
        %2538 = vmatpush.msra.mxu0 %v2246
        %2539 = vmatpush.msra.mxu0 %v2244
        %2540 = vmatpush.msra.mxu0 %v2242
        %2541 = vmatpush.msra.mxu0 %v2240
        %2542 = vmatpush.msra.mxu0 %v2238
        %2543 = vmatpush.msra.mxu0 %v2236
        %2544 = vmatmul.f32.gmra.mxu0 %v2340
        %v2545 = vpop.f32.mrf.mxu0
        %v2546 = vadd.f32 %v2526, %v2545
        %2547 = vdwg.mxu0
        %2548 = vmatpush.msra.mxu0 %v2298
        %2549 = vmatpush.msra.mxu0 %v2296
        %2550 = vmatpush.msra.mxu0 %v2294
        %2551 = vmatpush.msra.mxu0 %v2292
        %2552 = vmatpush.msra.mxu0 %v2290
        %2553 = vmatpush.msra.mxu0 %v2288
        %2554 = vmatpush.msra.mxu0 %v2286
        %2555 = vmatpush.msra.mxu0 %v2284
        %2556 = vmatpush.msra.mxu0 %v2282
        %2557 = vmatpush.msra.mxu0 %v2280
        %2558 = vmatpush.msra.mxu0 %v2278
        %2559 = vmatpush.msra.mxu0 %v2276
        %2560 = vmatpush.msra.mxu0 %v2274
        %2561 = vmatpush.msra.mxu0 %v2272
        %2562 = vmatpush.msra.mxu0 %v2270
        %2563 = vmatpush.msra.mxu0 %v2268
        %2564 = vmatmul.f32.gmra.mxu0 %v2341
        %v2565 = vpop.f32.mrf.mxu0
        %v2566 = vadd.f32 %v2546, %v2565
        %2567 = vdwg.mxu0
        %2568 = vmatpush.msra.mxu0 %v2330
        %2569 = vmatpush.msra.mxu0 %v2328
        %2570 = vmatpush.msra.mxu0 %v2326
        %2571 = vmatpush.msra.mxu0 %v2324
        %2572 = vmatpush.msra.mxu0 %v2322
        %2573 = vmatpush.msra.mxu0 %v2320
        %2574 = vmatpush.msra.mxu0 %v2318
        %2575 = vmatpush.msra.mxu0 %v2316
        %2576 = vmatpush.msra.mxu0 %v2314
        %2577 = vmatpush.msra.mxu0 %v2312
        %2578 = vmatpush.msra.mxu0 %v2310
        %2579 = vmatpush.msra.mxu0 %v2308
        %2580 = vmatpush.msra.mxu0 %v2306
        %2581 = vmatpush.msra.mxu0 %v2304
        %2582 = vmatpush.msra.mxu0 %v2302
        %2583 = vmatpush.msra.mxu0 %v2300
        %2584 = vmatmul.f32.gmra.mxu0 %v2342
        %v2585 = vpop.f32.mrf.mxu0
        %v2586 = vadd.f32 %v2566, %v2585
        %2587 = vdwg.mxu0
        %s2588 = smul.u32 %s32, 2
        %s2589 = smul.addr %s2588, 8
        %s2590 = scalar_lea.vmem [#allocation2], %s2589
        %2591 = vst [vmem:[%s2590] sm:$0xff] %v2466
        %2592 = vst [vmem:[%s2590 + $0x8] sm:$0xff] %v2586
        %p2593 = scmp.eq.s32.totalorder %s32, 1
        // Predicated region
        $region77: #{tpu_custom_call.1} parent=51 // pred_check
          %p2594 = pneg %p2593
        $region78: #{tpu_custom_call.1} parent=51 // pred_check_branch
          %2596 = sbr.rel (%p2594) target = $region80
        $region79: #{tpu_custom_call.1} parent=51 // pred_region
          %v2597 = vld [vmem:[#allocation2] sm:$0xff]
          %v2598 = vld [vmem:[#allocation2 + $0x8] sm:$0xff]
          %2599 = vst [vmem:[#allocation14] sm:$0xff] %v2597
          %2600 = vst [vmem:[#allocation14 + $0x8] sm:$0xff] %v2598
          %s2601 = scalar_lea.vmem [#allocation2], 16
          %v2602 = vld [vmem:[%s2601] sm:$0xff]
          %v2603 = vld [vmem:[%s2601 + $0x8] sm:$0xff]
          %2604 = vst [vmem:[#allocation14 + $0x10] sm:$0xff] %v2602
          %2605 = vst [vmem:[#allocation14 + $0x18] sm:$0xff] %v2603
          %v2606 = vld [vmem:[#allocation14] sm:$0xff]
          %v2607 = vld [vmem:[#allocation14 + $0x8] sm:$0xff]
          %v2608 = vld [vmem:[#allocation14 + $0x10] sm:$0xff]
          %v2609 = vld [vmem:[#allocation14 + $0x18] sm:$0xff]
          %v2610 = vld [vmem:[%s4] sm:$0xff]
          %v2611 = vld [vmem:[%s4 + $0x8] sm:$0xff]
          %v2612 = vld [vmem:[%s4 + $0x10] sm:$0xff]
          %v2613 = vld [vmem:[%s4 + $0x18] sm:$0xff]
          %v2614 = vld [vmem:[%s4 + $0x20] sm:$0xff]
          %v2615 = vld [vmem:[%s4 + $0x28] sm:$0xff]
          %v2616 = vld [vmem:[%s4 + $0x30] sm:$0xff]
          %v2617 = vld [vmem:[%s4 + $0x38] sm:$0xff]
          %v2618 = vld [vmem:[%s4 + $0x40] sm:$0xff]
          %v2619 = vld [vmem:[%s4 + $0x48] sm:$0xff]
          %v2620 = vld [vmem:[%s4 + $0x50] sm:$0xff]
          %v2621 = vld [vmem:[%s4 + $0x58] sm:$0xff]
          %v2622 = vld [vmem:[%s4 + $0x60] sm:$0xff]
          %v2623 = vld [vmem:[%s4 + $0x68] sm:$0xff]
          %v2624 = vld [vmem:[%s4 + $0x70] sm:$0xff]
          %v2625 = vld [vmem:[%s4 + $0x78] sm:$0xff]
          %v2626 = vld [vmem:[%s4 + $0x80] sm:$0xff]
          %v2627 = vld [vmem:[%s4 + $0x88] sm:$0xff]
          %v2628 = vld [vmem:[%s4 + $0x90] sm:$0xff]
          %v2629 = vld [vmem:[%s4 + $0x98] sm:$0xff]
          %v2630 = vld [vmem:[%s4 + $0xa0] sm:$0xff]
          %v2631 = vld [vmem:[%s4 + $0xa8] sm:$0xff]
          %v2632 = vld [vmem:[%s4 + $0xb0] sm:$0xff]
          %v2633 = vld [vmem:[%s4 + $0xb8] sm:$0xff]
          %v2634 = vld [vmem:[%s4 + $0xc0] sm:$0xff]
          %v2635 = vld [vmem:[%s4 + $0xc8] sm:$0xff]
          %v2636 = vld [vmem:[%s4 + $0xd0] sm:$0xff]
          %v2637 = vld [vmem:[%s4 + $0xd8] sm:$0xff]
          %v2638 = vld [vmem:[%s4 + $0xe0] sm:$0xff]
          %v2639 = vld [vmem:[%s4 + $0xe8] sm:$0xff]
          %v2640 = vld [vmem:[%s4 + $0xf0] sm:$0xff]
          %v2641 = vld [vmem:[%s4 + $0xf8] sm:$0xff]
          %v2642 = vld [vmem:[%s4 + $0x100] sm:$0xff]
          %v2643 = vld [vmem:[%s4 + $0x108] sm:$0xff]
          %v2644 = vld [vmem:[%s4 + $0x110] sm:$0xff]
          %v2645 = vld [vmem:[%s4 + $0x118] sm:$0xff]
          %v2646 = vld [vmem:[%s4 + $0x120] sm:$0xff]
          %v2647 = vld [vmem:[%s4 + $0x128] sm:$0xff]
          %v2648 = vld [vmem:[%s4 + $0x130] sm:$0xff]
          %v2649 = vld [vmem:[%s4 + $0x138] sm:$0xff]
          %v2650 = vld [vmem:[%s4 + $0x140] sm:$0xff]
          %v2651 = vld [vmem:[%s4 + $0x148] sm:$0xff]
          %v2652 = vld [vmem:[%s4 + $0x150] sm:$0xff]
          %v2653 = vld [vmem:[%s4 + $0x158] sm:$0xff]
          %v2654 = vld [vmem:[%s4 + $0x160] sm:$0xff]
          %v2655 = vld [vmem:[%s4 + $0x168] sm:$0xff]
          %v2656 = vld [vmem:[%s4 + $0x170] sm:$0xff]
          %v2657 = vld [vmem:[%s4 + $0x178] sm:$0xff]
          %v2658 = vld [vmem:[%s4 + $0x180] sm:$0xff]
          %v2659 = vld [vmem:[%s4 + $0x188] sm:$0xff]
          %v2660 = vld [vmem:[%s4 + $0x190] sm:$0xff]
          %v2661 = vld [vmem:[%s4 + $0x198] sm:$0xff]
          %v2662 = vld [vmem:[%s4 + $0x1a0] sm:$0xff]
          %v2663 = vld [vmem:[%s4 + $0x1a8] sm:$0xff]
          %v2664 = vld [vmem:[%s4 + $0x1b0] sm:$0xff]
          %v2665 = vld [vmem:[%s4 + $0x1b8] sm:$0xff]
          %v2666 = vld [vmem:[%s4 + $0x1c0] sm:$0xff]
          %v2667 = vld [vmem:[%s4 + $0x1c8] sm:$0xff]
          %v2668 = vld [vmem:[%s4 + $0x1d0] sm:$0xff]
          %v2669 = vld [vmem:[%s4 + $0x1d8] sm:$0xff]
          %v2670 = vld [vmem:[%s4 + $0x1e0] sm:$0xff]
          %v2671 = vld [vmem:[%s4 + $0x1e8] sm:$0xff]
          %v2672 = vld [vmem:[%s4 + $0x1f0] sm:$0xff]
          %v2673 = vld [vmem:[%s4 + $0x1f8] sm:$0xff]
          %2674 = vmatpush.msra.mxu0 %v2625
          %2675 = vmatpush.msra.mxu0 %v2624
          %2676 = vmatpush.msra.mxu0 %v2623
          %2677 = vmatpush.msra.mxu0 %v2622
          %2678 = vmatpush.msra.mxu0 %v2621
          %2679 = vmatpush.msra.mxu0 %v2620
          %2680 = vmatpush.msra.mxu0 %v2619
          %2681 = vmatpush.msra.mxu0 %v2618
          %2682 = vmatpush.msra.mxu0 %v2617
          %2683 = vmatpush.msra.mxu0 %v2616
          %2684 = vmatpush.msra.mxu0 %v2615
          %2685 = vmatpush.msra.mxu0 %v2614
          %2686 = vmatpush.msra.mxu0 %v2613
          %2687 = vmatpush.msra.mxu0 %v2612
          %2688 = vmatpush.msra.mxu0 %v2611
          %2689 = vmatpush.msra.mxu0 %v2610
          %2690 = vmatmul.f32.gmra.mxu0 %v2606
          %v2691 = vpop.f32.mrf.mxu0
          %v2692 = vadd.f32 0.0, %v2691
          %2693 = vdwg.mxu0
          %2694 = vmatpush.msra.mxu0 %v2641
          %2695 = vmatpush.msra.mxu0 %v2640
          %2696 = vmatpush.msra.mxu0 %v2639
          %2697 = vmatpush.msra.mxu0 %v2638
          %2698 = vmatpush.msra.mxu0 %v2637
          %2699 = vmatpush.msra.mxu0 %v2636
          %2700 = vmatpush.msra.mxu0 %v2635
          %2701 = vmatpush.msra.mxu0 %v2634
          %2702 = vmatpush.msra.mxu0 %v2633
          %2703 = vmatpush.msra.mxu0 %v2632
          %2704 = vmatpush.msra.mxu0 %v2631
          %2705 = vmatpush.msra.mxu0 %v2630
          %2706 = vmatpush.msra.mxu0 %v2629
          %2707 = vmatpush.msra.mxu0 %v2628
          %2708 = vmatpush.msra.mxu0 %v2627
          %2709 = vmatpush.msra.mxu0 %v2626
          %2710 = vmatmul.f32.gmra.mxu0 %v2607
          %v2711 = vpop.f32.mrf.mxu0
          %v2712 = vadd.f32 %v2692, %v2711
          %2713 = vdwg.mxu0
          %2714 = vmatpush.msra.mxu0 %v2657
          %2715 = vmatpush.msra.mxu0 %v2656
          %2716 = vmatpush.msra.mxu0 %v2655
          %2717 = vmatpush.msra.mxu0 %v2654
          %2718 = vmatpush.msra.mxu0 %v2653
          %2719 = vmatpush.msra.mxu0 %v2652
          %2720 = vmatpush.msra.mxu0 %v2651
          %2721 = vmatpush.msra.mxu0 %v2650
          %2722 = vmatpush.msra.mxu0 %v2649
          %2723 = vmatpush.msra.mxu0 %v2648
          %2724 = vmatpush.msra.mxu0 %v2647
          %2725 = vmatpush.msra.mxu0 %v2646
          %2726 = vmatpush.msra.mxu0 %v2645
          %2727 = vmatpush.msra.mxu0 %v2644
          %2728 = vmatpush.msra.mxu0 %v2643
          %2729 = vmatpush.msra.mxu0 %v2642
          %2730 = vmatmul.f32.gmra.mxu0 %v2608
          %v2731 = vpop.f32.mrf.mxu0
          %v2732 = vadd.f32 %v2712, %v2731
          %2733 = vdwg.mxu0
          %2734 = vmatpush.msra.mxu0 %v2673
          %2735 = vmatpush.msra.mxu0 %v2672
          %2736 = vmatpush.msra.mxu0 %v2671
          %2737 = vmatpush.msra.mxu0 %v2670
          %2738 = vmatpush.msra.mxu0 %v2669
          %2739 = vmatpush.msra.mxu0 %v2668
          %2740 = vmatpush.msra.mxu0 %v2667
          %2741 = vmatpush.msra.mxu0 %v2666
          %2742 = vmatpush.msra.mxu0 %v2665
          %2743 = vmatpush.msra.mxu0 %v2664
          %2744 = vmatpush.msra.mxu0 %v2663
          %2745 = vmatpush.msra.mxu0 %v2662
          %2746 = vmatpush.msra.mxu0 %v2661
          %2747 = vmatpush.msra.mxu0 %v2660
          %2748 = vmatpush.msra.mxu0 %v2659
          %2749 = vmatpush.msra.mxu0 %v2658
          %2750 = vmatmul.f32.gmra.mxu0 %v2609
          %v2751 = vpop.f32.mrf.mxu0
          %v2752 = vadd.f32 %v2732, %v2751
          %2753 = vdwg.mxu0
          %v2754 = vmax.f32 %v2752, 0.0
          %v2755 = vld [vmem:[#allocation11] sm:$0xff]
          %v2756 = vld [vmem:[#allocation11 + $0x8] sm:$0xff]
          %v2757 = vld [vmem:[#allocation11 + $0x10] sm:$0xff]
          %v2758 = vld [vmem:[#allocation11 + $0x18] sm:$0xff]
          %v2759 = vld [vmem:[#allocation11 + $0x20] sm:$0xff]
          %v2760 = vld [vmem:[#allocation11 + $0x28] sm:$0xff]
          %v2761 = vld [vmem:[#allocation11 + $0x30] sm:$0xff]
          %v2762 = vld [vmem:[#allocation11 + $0x38] sm:$0xff]
          %vm2763 = vcmask 130048
          %v2765 = vsel %vm2763, %v2754, 0
          %2767 = vmatpush.msra.mxu0 0.0
          %2768 = vmatpush.msra.mxu0 0.0
          %2769 = vmatpush.msra.mxu0 0.0
          %2770 = vmatpush.msra.mxu0 0.0
          %2771 = vmatpush.msra.mxu0 0.0
          %2772 = vmatpush.msra.mxu0 0.0
          %2773 = vmatpush.msra.mxu0 0.0
          %2774 = vmatpush.msra.mxu0 0.0
          %2775 = vmatpush.msra.mxu0 0.0
          %2776 = vmatpush.msra.mxu0 0.0
          %2777 = vmatpush.msra.mxu0 0.0
          %2778 = vmatpush.msra.mxu0 0.0
          %2779 = vmatpush.msra.mxu0 0.0
          %2780 = vmatpush.msra.mxu0 0.0
          %2781 = vmatpush.msra.mxu0 %v2759
          %2782 = vmatpush.msra.mxu0 %v2755
          %2783 = vmatmul.f32.gmra.mxu0 %v2765
          %v2784 = vpop.f32.mrf.mxu0
          %v2785 = vadd.f32 0.0, %v2784
          %2786 = vdwg.mxu0
          %2787 = vmatpush.msra.mxu0 0.0
          %2788 = vmatpush.msra.mxu0 0.0
          %2789 = vmatpush.msra.mxu0 0.0
          %2790 = vmatpush.msra.mxu0 0.0
          %2791 = vmatpush.msra.mxu0 0.0
          %2792 = vmatpush.msra.mxu0 0.0
          %2793 = vmatpush.msra.mxu0 0.0
          %2794 = vmatpush.msra.mxu0 0.0
          %2795 = vmatpush.msra.mxu0 0.0
          %2796 = vmatpush.msra.mxu0 0.0
          %2797 = vmatpush.msra.mxu0 0.0
          %2798 = vmatpush.msra.mxu0 0.0
          %2799 = vmatpush.msra.mxu0 0.0
          %2800 = vmatpush.msra.mxu0 0.0
          %2801 = vmatpush.msra.mxu0 %v2760
          %2802 = vmatpush.msra.mxu0 %v2756
          %2803 = vmatmul.f32.gmra.mxu0 %v2765
          %v2804 = vpop.f32.mrf.mxu0
          %v2805 = vadd.f32 0.0, %v2804
          %2806 = vdwg.mxu0
          %2807 = vmatpush.msra.mxu0 0.0
          %2808 = vmatpush.msra.mxu0 0.0
          %2809 = vmatpush.msra.mxu0 0.0
          %2810 = vmatpush.msra.mxu0 0.0
          %2811 = vmatpush.msra.mxu0 0.0
          %2812 = vmatpush.msra.mxu0 0.0
          %2813 = vmatpush.msra.mxu0 0.0
          %2814 = vmatpush.msra.mxu0 0.0
          %2815 = vmatpush.msra.mxu0 0.0
          %2816 = vmatpush.msra.mxu0 0.0
          %2817 = vmatpush.msra.mxu0 0.0
          %2818 = vmatpush.msra.mxu0 0.0
          %2819 = vmatpush.msra.mxu0 0.0
          %2820 = vmatpush.msra.mxu0 0.0
          %2821 = vmatpush.msra.mxu0 %v2761
          %2822 = vmatpush.msra.mxu0 %v2757
          %2823 = vmatmul.f32.gmra.mxu0 %v2765
          %v2824 = vpop.f32.mrf.mxu0
          %v2825 = vadd.f32 0.0, %v2824
          %2826 = vdwg.mxu0
          %2827 = vmatpush.msra.mxu0 0.0
          %2828 = vmatpush.msra.mxu0 0.0
          %2829 = vmatpush.msra.mxu0 0.0
          %2830 = vmatpush.msra.mxu0 0.0
          %2831 = vmatpush.msra.mxu0 0.0
          %2832 = vmatpush.msra.mxu0 0.0
          %2833 = vmatpush.msra.mxu0 0.0
          %2834 = vmatpush.msra.mxu0 0.0
          %2835 = vmatpush.msra.mxu0 0.0
          %2836 = vmatpush.msra.mxu0 0.0
          %2837 = vmatpush.msra.mxu0 0.0
          %2838 = vmatpush.msra.mxu0 0.0
          %2839 = vmatpush.msra.mxu0 0.0
          %2840 = vmatpush.msra.mxu0 0.0
          %2841 = vmatpush.msra.mxu0 %v2762
          %2842 = vmatpush.msra.mxu0 %v2758
          %2843 = vmatmul.f32.gmra.mxu0 %v2765
          %v2844 = vpop.f32.mrf.mxu0
          %v2845 = vadd.f32 0.0, %v2844
          %2846 = vdwg.mxu0
          %v2847 = vsub.f32 %v2606, %v2785
          %v2848 = vsub.f32 %v2607, %v2805
          %v2849 = vsub.f32 %v2608, %v2825
          %v2850 = vsub.f32 %v2609, %v2845
          %v2851 = vld [vmem:[%s6] sm:$0xff]
          %v2852 = vld [vmem:[%s6 + $0x8] sm:$0xff]
          %v2853 = vld [vmem:[%s6 + $0x10] sm:$0xff]
          %v2854 = vld [vmem:[%s6 + $0x18] sm:$0xff]
          %v2855 = vld [vmem:[%s6 + $0x20] sm:$0xff]
          %v2856 = vld [vmem:[%s6 + $0x28] sm:$0xff]
          %v2857 = vld [vmem:[%s6 + $0x30] sm:$0xff]
          %v2858 = vld [vmem:[%s6 + $0x38] sm:$0xff]
          %v2859 = vld [vmem:[%s6 + $0x40] sm:$0xff]
          %v2860 = vld [vmem:[%s6 + $0x48] sm:$0xff]
          %v2861 = vld [vmem:[%s6 + $0x50] sm:$0xff]
          %v2862 = vld [vmem:[%s6 + $0x58] sm:$0xff]
          %v2863 = vld [vmem:[%s6 + $0x60] sm:$0xff]
          %v2864 = vld [vmem:[%s6 + $0x68] sm:$0xff]
          %v2865 = vld [vmem:[%s6 + $0x70] sm:$0xff]
          %v2866 = vld [vmem:[%s6 + $0x78] sm:$0xff]
          %v2867 = vld [vmem:[%s6 + $0x80] sm:$0xff]
          %v2868 = vld [vmem:[%s6 + $0x88] sm:$0xff]
          %v2869 = vld [vmem:[%s6 + $0x90] sm:$0xff]
          %v2870 = vld [vmem:[%s6 + $0x98] sm:$0xff]
          %v2871 = vld [vmem:[%s6 + $0xa0] sm:$0xff]
          %v2872 = vld [vmem:[%s6 + $0xa8] sm:$0xff]
          %v2873 = vld [vmem:[%s6 + $0xb0] sm:$0xff]
          %v2874 = vld [vmem:[%s6 + $0xb8] sm:$0xff]
          %v2875 = vld [vmem:[%s6 + $0xc0] sm:$0xff]
          %v2876 = vld [vmem:[%s6 + $0xc8] sm:$0xff]
          %v2877 = vld [vmem:[%s6 + $0xd0] sm:$0xff]
          %v2878 = vld [vmem:[%s6 + $0xd8] sm:$0xff]
          %v2879 = vld [vmem:[%s6 + $0xe0] sm:$0xff]
          %v2880 = vld [vmem:[%s6 + $0xe8] sm:$0xff]
          %v2881 = vld [vmem:[%s6 + $0xf0] sm:$0xff]
          %v2882 = vld [vmem:[%s6 + $0xf8] sm:$0xff]
          %v2883 = vld [vmem:[%s6 + $0x100] sm:$0xff]
          %v2884 = vld [vmem:[%s6 + $0x108] sm:$0xff]
          %v2885 = vld [vmem:[%s6 + $0x110] sm:$0xff]
          %v2886 = vld [vmem:[%s6 + $0x118] sm:$0xff]
          %v2887 = vld [vmem:[%s6 + $0x120] sm:$0xff]
          %v2888 = vld [vmem:[%s6 + $0x128] sm:$0xff]
          %v2889 = vld [vmem:[%s6 + $0x130] sm:$0xff]
          %v2890 = vld [vmem:[%s6 + $0x138] sm:$0xff]
          %v2891 = vld [vmem:[%s6 + $0x140] sm:$0xff]
          %v2892 = vld [vmem:[%s6 + $0x148] sm:$0xff]
          %v2893 = vld [vmem:[%s6 + $0x150] sm:$0xff]
          %v2894 = vld [vmem:[%s6 + $0x158] sm:$0xff]
          %v2895 = vld [vmem:[%s6 + $0x160] sm:$0xff]
          %v2896 = vld [vmem:[%s6 + $0x168] sm:$0xff]
          %v2897 = vld [vmem:[%s6 + $0x170] sm:$0xff]
          %v2898 = vld [vmem:[%s6 + $0x178] sm:$0xff]
          %v2899 = vld [vmem:[%s6 + $0x180] sm:$0xff]
          %v2900 = vld [vmem:[%s6 + $0x188] sm:$0xff]
          %v2901 = vld [vmem:[%s6 + $0x190] sm:$0xff]
          %v2902 = vld [vmem:[%s6 + $0x198] sm:$0xff]
          %v2903 = vld [vmem:[%s6 + $0x1a0] sm:$0xff]
          %v2904 = vld [vmem:[%s6 + $0x1a8] sm:$0xff]
          %v2905 = vld [vmem:[%s6 + $0x1b0] sm:$0xff]
          %v2906 = vld [vmem:[%s6 + $0x1b8] sm:$0xff]
          %v2907 = vld [vmem:[%s6 + $0x1c0] sm:$0xff]
          %v2908 = vld [vmem:[%s6 + $0x1c8] sm:$0xff]
          %v2909 = vld [vmem:[%s6 + $0x1d0] sm:$0xff]
          %v2910 = vld [vmem:[%s6 + $0x1d8] sm:$0xff]
          %v2911 = vld [vmem:[%s6 + $0x1e0] sm:$0xff]
          %v2912 = vld [vmem:[%s6 + $0x1e8] sm:$0xff]
          %v2913 = vld [vmem:[%s6 + $0x1f0] sm:$0xff]
          %v2914 = vld [vmem:[%s6 + $0x1f8] sm:$0xff]
          %v2915 = vld [vmem:[#allocation13] sm:$0x1]
          %v2917 = vperm.slane %v2915, 0
          %2919 = vmatpush.msra.mxu0 %v2866
          %2920 = vmatpush.msra.mxu0 %v2865
          %2921 = vmatpush.msra.mxu0 %v2864
          %2922 = vmatpush.msra.mxu0 %v2863
          %2923 = vmatpush.msra.mxu0 %v2862
          %2924 = vmatpush.msra.mxu0 %v2861
          %2925 = vmatpush.msra.mxu0 %v2860
          %2926 = vmatpush.msra.mxu0 %v2859
          %2927 = vmatpush.msra.mxu0 %v2858
          %2928 = vmatpush.msra.mxu0 %v2857
          %2929 = vmatpush.msra.mxu0 %v2856
          %2930 = vmatpush.msra.mxu0 %v2855
          %2931 = vmatpush.msra.mxu0 %v2854
          %2932 = vmatpush.msra.mxu0 %v2853
          %2933 = vmatpush.msra.mxu0 %v2852
          %2934 = vmatpush.msra.mxu0 %v2851
          %2935 = vmatmul.f32.gmra.mxu0 %v2847
          %v2936 = vpop.f32.mrf.mxu0
          %v2937 = vadd.f32 %v2917, %v2936
          %2938 = vdwg.mxu0
          %2939 = vmatpush.msra.mxu0 %v2882
          %2940 = vmatpush.msra.mxu0 %v2881
          %2941 = vmatpush.msra.mxu0 %v2880
          %2942 = vmatpush.msra.mxu0 %v2879
          %2943 = vmatpush.msra.mxu0 %v2878
          %2944 = vmatpush.msra.mxu0 %v2877
          %2945 = vmatpush.msra.mxu0 %v2876
          %2946 = vmatpush.msra.mxu0 %v2875
          %2947 = vmatpush.msra.mxu0 %v2874
          %2948 = vmatpush.msra.mxu0 %v2873
          %2949 = vmatpush.msra.mxu0 %v2872
          %2950 = vmatpush.msra.mxu0 %v2871
          %2951 = vmatpush.msra.mxu0 %v2870
          %2952 = vmatpush.msra.mxu0 %v2869
          %2953 = vmatpush.msra.mxu0 %v2868
          %2954 = vmatpush.msra.mxu0 %v2867
          %2955 = vmatmul.f32.gmra.mxu0 %v2848
          %v2956 = vpop.f32.mrf.mxu0
          %v2957 = vadd.f32 %v2937, %v2956
          %2958 = vdwg.mxu0
          %2959 = vmatpush.msra.mxu0 %v2898
          %2960 = vmatpush.msra.mxu0 %v2897
          %2961 = vmatpush.msra.mxu0 %v2896
          %2962 = vmatpush.msra.mxu0 %v2895
          %2963 = vmatpush.msra.mxu0 %v2894
          %2964 = vmatpush.msra.mxu0 %v2893
          %2965 = vmatpush.msra.mxu0 %v2892
          %2966 = vmatpush.msra.mxu0 %v2891
          %2967 = vmatpush.msra.mxu0 %v2890
          %2968 = vmatpush.msra.mxu0 %v2889
          %2969 = vmatpush.msra.mxu0 %v2888
          %2970 = vmatpush.msra.mxu0 %v2887
          %2971 = vmatpush.msra.mxu0 %v2886
          %2972 = vmatpush.msra.mxu0 %v2885
          %2973 = vmatpush.msra.mxu0 %v2884
          %2974 = vmatpush.msra.mxu0 %v2883
          %2975 = vmatmul.f32.gmra.mxu0 %v2849
          %v2976 = vpop.f32.mrf.mxu0
          %v2977 = vadd.f32 %v2957, %v2976
          %2978 = vdwg.mxu0
          %2979 = vmatpush.msra.mxu0 %v2914
          %2980 = vmatpush.msra.mxu0 %v2913
          %2981 = vmatpush.msra.mxu0 %v2912
          %2982 = vmatpush.msra.mxu0 %v2911
          %2983 = vmatpush.msra.mxu0 %v2910
          %2984 = vmatpush.msra.mxu0 %v2909
          %2985 = vmatpush.msra.mxu0 %v2908
          %2986 = vmatpush.msra.mxu0 %v2907
          %2987 = vmatpush.msra.mxu0 %v2906
          %2988 = vmatpush.msra.mxu0 %v2905
          %2989 = vmatpush.msra.mxu0 %v2904
          %2990 = vmatpush.msra.mxu0 %v2903
          %2991 = vmatpush.msra.mxu0 %v2902
          %2992 = vmatpush.msra.mxu0 %v2901
          %2993 = vmatpush.msra.mxu0 %v2900
          %2994 = vmatpush.msra.mxu0 %v2899
          %2995 = vmatmul.f32.gmra.mxu0 %v2850
          %v2996 = vpop.f32.mrf.mxu0
          %v2997 = vadd.f32 %v2977, %v2996
          %2998 = vdwg.mxu0
          %2999 = vst [vmem:[#allocation18] sm:$0xff] %v2785
          %3000 = vst [vmem:[#allocation18 + $0x8] sm:$0xff] %v2805
          %3001 = vst [vmem:[#allocation18 + $0x10] sm:$0xff] %v2825
          %3002 = vst [vmem:[#allocation18 + $0x18] sm:$0xff] %v2845
          %3003 = vst [vmem:[#allocation17] sm:$0xff] %v2847
          %3004 = vst [vmem:[#allocation17 + $0x8] sm:$0xff] %v2848
          %3005 = vst [vmem:[#allocation17 + $0x10] sm:$0xff] %v2849
          %3006 = vst [vmem:[#allocation17 + $0x18] sm:$0xff] %v2850
          %vm3007 = vcmask 80896
          %3008 = vst.msk [vmem:[#allocation15] sm:$0xff] %vm3007, %v2997
        $region80: #{tpu_custom_call.1} parent=51 // pred_fallthru
          _
        // Predicated region
        $region81: #{tpu_custom_call.1} parent=51 // pred_check
          %p3009 = pneg %p223
        $region82: #{tpu_custom_call.1} parent=51 // pred_check_branch
          %3011 = sbr.rel (%p3009) target = $region84
        $region83: #{tpu_custom_call.1} parent=51 // pred_region
          %3013 = vsyncadd [#allocation5], 0
          %s3015 = sshll.u32 [#allocation14], 4
          %s3016 = int_to_ptr.vmem [resolvable:$true] %s3015
          %s3017 = sshll.u32 %s8, 4
          %s3018 = int_to_ptr.hbm [resolvable:$true] %s3017
          %3020 = dma.vmem_to_hbm [thread:$0]  %s3016, 512, %s3018, [#allocation5]
        $region84: #{tpu_custom_call.1} parent=51 // pred_fallthru
          _
        // Predicated region
        $region85: #{tpu_custom_call.1} parent=51 // pred_check
          %p3021 = pneg %p244
        $region86: #{tpu_custom_call.1} parent=51 // pred_check_branch
          %3023 = sbr.rel (%p3021) target = $region88
        $region87: #{tpu_custom_call.1} parent=51 // pred_region
          %3025 = vsyncadd [#allocation16], 0
          %s3027 = sshll.u32 [#allocation15], 4
          %s3028 = int_to_ptr.vmem [resolvable:$true] %s3027
          %s3029 = sshll.u32 %s9, 4
          %s3030 = int_to_ptr.hbm [resolvable:$true] %s3029
          %3032 = dma.vmem_to_hbm [thread:$0]  %s3028, 128, %s3030, [#allocation16]
        $region88: #{tpu_custom_call.1} parent=51 // pred_fallthru
          _
        // Predicated region
        $region89: #{tpu_custom_call.1} parent=51 // pred_check
          %p3033 = pneg %p265
        $region90: #{tpu_custom_call.1} parent=51 // pred_check_branch
          %3035 = sbr.rel (%p3033) target = $region92
        $region91: #{tpu_custom_call.1} parent=51 // pred_region
          %3037 = vsyncadd [#allocation16], 0
          %s3039 = sshll.u32 [#allocation17], 4
          %s3040 = int_to_ptr.vmem [resolvable:$true] %s3039
          %s3041 = sshll.u32 %s10, 4
          %s3042 = int_to_ptr.hbm [resolvable:$true] %s3041
          %3044 = dma.vmem_to_hbm [thread:$0]  %s3040, 512, %s3042, [#allocation16]
        $region92: #{tpu_custom_call.1} parent=51 // pred_fallthru
          _
        // Predicated region
        $region93: #{tpu_custom_call.1} parent=51 // pred_check
          %p3045 = pneg %p286
        $region94: #{tpu_custom_call.1} parent=51 // pred_check_branch
          %3047 = sbr.rel (%p3045) target = $region96
        $region95: #{tpu_custom_call.1} parent=51 // pred_region
          %3049 = vsyncadd [#allocation19], 0
          %s3051 = sshll.u32 [#allocation18], 4
          %s3052 = int_to_ptr.vmem [resolvable:$true] %s3051
          %s3053 = sshll.u32 %s11, 4
          %s3054 = int_to_ptr.hbm [resolvable:$true] %s3053
          %3056 = dma.vmem_to_hbm [thread:$0]  %s3052, 512, %s3054, [#allocation19]
        $region96: #{tpu_custom_call.1} parent=51 // pred_fallthru
          _
        // Predicated region
        $region97: #{tpu_custom_call.1} parent=51 // pred_check
          %p3057 = pneg %p223
        $region98: #{tpu_custom_call.1} parent=51 // pred_check_branch
          %3059 = sbr.rel (%p3057) target = $region100
        $region99: #{tpu_custom_call.1} parent=51 // pred_region
          %3061 = dma.done [#allocation5], 512
        $region100: #{tpu_custom_call.1} parent=51 // pred_fallthru
          _
        // Predicated region
        $region101: #{tpu_custom_call.1} parent=51 // pred_check
          %p3062 = pneg %p244
        $region102: #{tpu_custom_call.1} parent=51 // pred_check_branch
          %3064 = sbr.rel (%p3062) target = $region104
        $region103: #{tpu_custom_call.1} parent=51 // pred_region
          %3066 = dma.done [#allocation16], 128
        $region104: #{tpu_custom_call.1} parent=51 // pred_fallthru
          _
        // Predicated region
        $region105: #{tpu_custom_call.1} parent=51 // pred_check
          %p3067 = pneg %p265
        $region106: #{tpu_custom_call.1} parent=51 // pred_check_branch
          %3069 = sbr.rel (%p3067) target = $region108
        $region107: #{tpu_custom_call.1} parent=51 // pred_region
          %3071 = dma.done [#allocation16], 512
        $region108: #{tpu_custom_call.1} parent=51 // pred_fallthru
          _
        // Predicated region
        $region109: #{tpu_custom_call.1} parent=51 // pred_check
          %p3072 = pneg %p286
        $region110: #{tpu_custom_call.1} parent=51 // pred_check_branch
          %3074 = sbr.rel (%p3072) target = $region112
        $region111: #{tpu_custom_call.1} parent=51 // pred_region
          %3076 = dma.done [#allocation19], 512
        $region112: #{tpu_custom_call.1} parent=51 // pred_fallthru
          _
      $region52: #{tpu_custom_call.1} parent=5 // pred_fallthru
        _
      %p3077 = scmp.le.s32.totalorder 2, %s27
      // Predicated region
      $region113: #{tpu_custom_call.1} parent=5 // pred_check
        %p3078 = pneg %p3077
      $region114: #{tpu_custom_call.1} parent=5 // pred_check_branch
        %3080 = sbr.rel (%p3078) target = $region116
      $region115: #{tpu_custom_call.1} parent=5 // pred_region
        %s3081 = ssub.s32 %s27, 2
      $region116: #{tpu_custom_call.1} parent=5 // pred_fallthru
        _
    $region6: #{tpu_custom_call.1} parent=1 // loop_footer
      %s31 = sadd.s32 1, %s27
    $region7: #{tpu_custom_call.1} parent=1 // loop_footer_branch
      %26 = sbr.rel target = $region3
    $region8: #{tpu_custom_call.1} parent=1 // loop_exit
      _
    %3082 = vsyncpa [#allocation4], 1
    %s3083 = scalar_lea.sflag [#allocation4], 1
    %3084 = vsyncpa %s3083, 1
    %3085 = vsyncpa [#allocation9], 1
    %s3086 = scalar_lea.sflag [#allocation9], 1
    %3087 = vsyncpa %s3086, 1
    %3088 = vsyncpa [#allocation12], 1
    %3089 = vsyncpa [#allocation5], 1
    %s3090 = scalar_lea.sflag [#allocation5], 1
    %3091 = vsyncpa %s3090, 1
    %3092 = vsyncpa [#allocation16], 1
    %3093 = vsyncpa [#allocation19], 1
    %3094 = vsyncpa [#allocation6], 1
    %s3095 = scalar_lea.sflag [#allocation6], 1
    %3096 = vsyncpa %s3095, 1

</llo_original>
